<compile_context>
chip_gen: v7x
topology: tpu7x:2x2x1
jax: 0.10.0
libtpu: 0.0.40
codegen_flags: <defaults>
</compile_context>

<pallas_src>
import jax
import jax.numpy as jnp
from jax import lax
from jax.experimental import pallas as pl
from jax.experimental.pallas import tpu as pltpu


# Tile caps: v6e/v7x MXUs are 2x256x256, so up to 256-wide output tiles; on
# v5e (4x128x128) 128 is enough but 256 costs nothing at these problem sizes.
_TM_MAX = 256
_TN_MAX = 256


def _round_up(x, m):
    return -(-x // m) * m


def _pick_tiles(M, N):
    # Block dims must be multiples of (8, 128) OR equal to the full array dim;
    # ragged last tiles are handled by the cdiv grid (no HBM-side padding).
    tm = min(_TM_MAX, _round_up(M, 8))
    tn = N if N <= _TN_MAX else _TN_MAX
    return tm, tn


# ----------------------------- matmul kernels -------------------------------

def _matmul_kernel(a_ref, b_ref, o_ref):
    o_ref[...] = jnp.dot(a_ref[...], b_ref[...],
                         preferred_element_type=jnp.float32)


def pallas_matmul(a, b):
    """(M, K) @ (K, N) -> (M, N) f32.  bf16 inputs feed the MXU, f32 accumulate.
    K (= Cin) is kept whole per block: it is small for every layer here."""
    M, K = a.shape
    K2, N = b.shape
    assert K == K2
    a = a.astype(jnp.bfloat16)
    b = b.astype(jnp.bfloat16)
    tm, tn = _pick_tiles(M, N)
    return pl.pallas_call(
        _matmul_kernel,
        out_shape=jax.ShapeDtypeStruct((M, N), jnp.float32),
        grid=(pl.cdiv(M, tm), pl.cdiv(N, tn)),
        in_specs=[pl.BlockSpec((tm, K), lambda i, j: (i, 0)),
                  pl.BlockSpec((K, tn), lambda i, j: (0, j))],
        out_specs=pl.BlockSpec((tm, tn), lambda i, j: (i, j)),
        compiler_params=pltpu.CompilerParams(
            dimension_semantics=("parallel", "parallel")),
    )(a, b)


def _star_matmul_kernel(ar_ref, ag_ref, br_ref, bg_ref, o_ref):
    o_ref[...] = (
        jnp.dot(ar_ref[...], br_ref[...], preferred_element_type=jnp.float32)
        + jnp.dot(ag_ref[...], bg_ref[...], preferred_element_type=jnp.float32))


def star_matmul(a_red, a_green, b_red, b_green):
    """Batched star-shaped matmul over the class axis G:
        out[g] = a_red @ b_red[g] + a_green[g] @ b_green[g]
    a_red: (M, Kr) shared, a_green: (G, M, Kg), b_*: (G, K*, N) -> (G, M, N) f32.
    One pallas_call covers all classes; the shared red activation block is
    reused per class without materializing the per-class channel concat."""
    M, Kr = a_red.shape
    G, M2, Kg = a_green.shape
    G2, Kr2, N = b_red.shape
    assert (M, Kr, G) == (M2, Kr2, G2) and b_green.shape == (G, Kg, N)
    a_red = a_red.astype(jnp.bfloat16)
    a_green = a_green.astype(jnp.bfloat16)
    b_red = b_red.astype(jnp.bfloat16)
    b_green = b_green.astype(jnp.bfloat16)
    tm, tn = _pick_tiles(M, N)
    return pl.pallas_call(
        _star_matmul_kernel,
        out_shape=jax.ShapeDtypeStruct((G, M, N), jnp.float32),
        grid=(G, pl.cdiv(M, tm), pl.cdiv(N, tn)),
        in_specs=[
            pl.BlockSpec((tm, Kr), lambda g, i, j: (i, 0)),
            pl.BlockSpec((None, tm, Kg), lambda g, i, j: (g, i, 0)),
            pl.BlockSpec((None, Kr, tn), lambda g, i, j: (g, 0, j)),
            pl.BlockSpec((None, Kg, tn), lambda g, i, j: (g, 0, j)),
        ],
        out_specs=pl.BlockSpec((None, tm, tn), lambda g, i, j: (g, i, j)),
        compiler_params=pltpu.CompilerParams(
            dimension_semantics=("parallel", "parallel", "parallel")),
    )(a_red, a_green, b_red, b_green)


# ----------------------- fused BatchNorm + activation ------------------------

def _make_bn_act_kernel(inv_l, eps, use_bn, act):
    def kernel(x_ref, g_ref, b_ref, o_ref):
        x = x_ref[...]                                        # (L, tc) f32
        if use_bn:
            mean = jnp.sum(x, axis=0, keepdims=True) * inv_l
            xc = x - mean
            # two-pass variance: avoids E[x^2]-E[x]^2 cancellation
            var = jnp.sum(xc * xc, axis=0, keepdims=True) * inv_l
            x = xc * lax.rsqrt(var + eps) * g_ref[...] + b_ref[...]
        if act == "relu":
            x = jnp.maximum(x, 0.0)
        elif act == "tanh":
            x = jnp.tanh(x)
        o_ref[...] = x
    return kernel


def bn_act(x, gamma, beta, use_bn, act, eps=1e-5):
    """Fused training-mode BatchNorm2d (batch stats) + activation.
    x: (G, L, C) channels-last with L = B*H*W; gamma/beta: (G, C).
    Stats are per (group, channel) over L; the green branch passes all classes
    at once (G = n_classes) so one pallas_call covers them."""
    G, L, C = x.shape
    tc = 128 if C % 128 == 0 else C     # full-C blocks for the small-C case
    kernel = _make_bn_act_kernel(1.0 / L, eps, use_bn, act)
    # TODO(synk): for very large B*H*W, tile L (two-pass: stats reduction then
    # normalize+act) so one block stays under v7x's 32 MiB scoped-VMEM default;
    # whole-L blocks are the right choice at these sizes.
    return pl.pallas_call(
        kernel,
        out_shape=jax.ShapeDtypeStruct((G, L, C), jnp.float32),
        grid=(G, pl.cdiv(C, tc)),
        in_specs=[
            pl.BlockSpec((None, L, tc), lambda g, c: (g, 0, c)),
            pl.BlockSpec((None, 1, tc), lambda g, c: (g, 0, c)),
            pl.BlockSpec((None, 1, tc), lambda g, c: (g, 0, c)),
        ],
        out_specs=pl.BlockSpec((None, L, tc), lambda g, c: (g, 0, c)),
        compiler_params=pltpu.CompilerParams(
            dimension_semantics=("parallel", "parallel")),
    )(x.astype(jnp.float32),
      gamma.reshape(G, 1, C).astype(jnp.float32),
      beta.reshape(G, 1, C).astype(jnp.float32))


# -------------------- col2im for ConvTranspose2d(4, 2, 1) --------------------

def _shift_down(t, axis):
    """out[i] = t[i-1], zero at i=0."""
    pads = [(0, 0)] * t.ndim
    pads[axis] = (1, 0)
    return lax.slice_in_dim(jnp.pad(t, pads), 0, t.shape[axis], axis=axis)


def _shift_up(t, axis):
    """out[i] = t[i+1], zero at i = n-1."""
    pads = [(0, 0)] * t.ndim
    pads[axis] = (0, 1)
    return lax.slice_in_dim(jnp.pad(t, pads), 1, t.shape[axis] + 1, axis=axis)


def col2im_k4s2p1(c):
    """Scatter-add the per-pixel contributions of ConvTranspose2d(k=4,s=2,p=1).
    c: (N, H, W, kh=4, kw=4, C) -> (N, 2H, 2W, C).
    Output row 2m   <- (ih=m, kh=1) + (ih=m-1, kh=3)
    Output row 2m+1 <- (ih=m, kh=2) + (ih=m+1, kh=0)   (same along columns)."""
    Nb, H, W, _, _, C = c.shape
    re = c[:, :, :, 1] + _shift_down(c[:, :, :, 3], axis=1)    # (N,H,W,4,C)
    ro = c[:, :, :, 2] + _shift_up(c[:, :, :, 0], axis=1)
    ee = re[:, :, :, 1] + _shift_down(re[:, :, :, 3], axis=2)  # (N,H,W,C)
    eo = re[:, :, :, 2] + _shift_up(re[:, :, :, 0], axis=2)
    oe = ro[:, :, :, 1] + _shift_down(ro[:, :, :, 3], axis=2)
    oo = ro[:, :, :, 2] + _shift_up(ro[:, :, :, 0], axis=2)
    even = jnp.stack([ee, eo], axis=3).reshape(Nb, H, 2 * W, C)
    odd = jnp.stack([oe, oo], axis=3).reshape(Nb, H, 2 * W, C)
    return jnp.stack([even, odd], axis=2).reshape(Nb, 2 * H, 2 * W, C)


# ------------------------- DCGAN_G_starShaped model --------------------------

def build_layer_configs(isize, nz, nc, ngf, red_portion=0.5):
    if isinstance(isize, int):
        isize = (isize, isize)
    tis = (isize[0], isize[1])
    cngf = ngf // 2
    while tis[0] > 4 and tis[1] > 4:
        assert tis[0] % 2 == 0 and tis[1] % 2 == 0
        tis = (tis[0] // 2, tis[1] // 2)
        cngf *= 2

    def cfg(n_in, n_out, kind, k, use_bn, act):
        n_in_red = int(n_in * red_portion)
        n_out_red = int(n_out * red_portion)
        return dict(n_in=n_in, n_in_red=n_in_red, n_out=n_out,
                    n_out_red=n_out_red, n_out_green=n_out - n_out_red,
                    kind=kind, k=k, use_bn=use_bn, act=act)

    layers = [cfg(nz, cngf, "fc", tis, True, "relu")]
    csize = tis[0]
    while csize < isize[0] // 2:
        layers.append(cfg(cngf, cngf // 2, "up", (4, 4), True, "relu"))
        cngf //= 2
        csize *= 2
    layers.append(cfg(cngf, nc, "up", (4, 4), False, "tanh"))
    return layers


def init_params(key, layer_cfgs, n_classes):
    params = []
    for cfg in layer_cfgs:
        kH, kW = cfg["k"]
        key, k1, k2 = jax.random.split(key, 3)
        params.append(dict(
            w_red=0.1 * jax.random.normal(
                k1, (cfg["n_in_red"], cfg["n_out_red"], kH, kW), jnp.float32),
            w_green=0.1 * jax.random.normal(
                k2, (n_classes, cfg["n_in"], cfg["n_out_green"], kH, kW),
                jnp.float32),
            # BatchNorm2d affine params (PyTorch default init: weight=1, bias=0)
            g_red=jnp.ones((cfg["n_out_red"],), jnp.float32),
            b_red=jnp.zeros((cfg["n_out_red"],), jnp.float32),
            g_green=jnp.ones((n_classes, cfg["n_out_green"]), jnp.float32),
            b_green=jnp.zeros((n_classes, cfg["n_out_green"]), jnp.float32),
        ))
    return params, key


def dcgan_g_star_forward(cfgs, params, x, n_classes, nz_red):
    """i_class=None path: returns stacked per-class images (n_classes, B, nc, H, W).
    x is NCHW noise (B, nz, 1, 1) like the PyTorch module."""
    B, nz = x.shape[0], x.shape[1]
    red_act = x[:, :nz_red, 0, 0]                                  # (B, nz_red)
    green_act = jnp.broadcast_to(x[:, nz_red:, 0, 0][None],
                                 (n_classes, B, nz - nz_red))      # (G, B, nz_green)

    for cfg, p in zip(cfgs, params):
        kH, kW = cfg["k"]
        cin, cin_red = cfg["n_in"], cfg["n_in_red"]
        cin_green = cin - cin_red
        cr, cg = cfg["n_out_red"], cfg["n_out_green"]

        # weights -> channels-last matmul layout (Cin, kH*kW*Cout)
        wm_r = p["w_red"].transpose(0, 2, 3, 1).reshape(cin_red, kH * kW * cr)
        wm_g = p["w_green"].transpose(0, 1, 3, 4, 2).reshape(
            n_classes, cin, kH * kW * cg)
        wgr, wgg = wm_g[:, :cin_red], wm_g[:, cin_red:]  # torch.cat([red, green]) order

        if cfg["kind"] == "fc":        # 1x1 spatial input: pure matmul
            a_r = red_act.reshape(B, cin_red)
            a_g = green_act.reshape(n_classes, B, cin_green)
            y_r = pallas_matmul(a_r, wm_r).reshape(B, kH, kW, cr)
            y_g = star_matmul(a_r, a_g, wgr, wgg).reshape(
                n_classes, B, kH, kW, cg)
            H, W = kH, kW
        else:                          # ConvTranspose2d(k=4, s=2, p=1)
            _, Hc, Wc, _ = red_act.shape
            a_r = red_act.reshape(B * Hc * Wc, cin_red)
            a_g = green_act.reshape(n_classes, B * Hc * Wc, cin_green)
            y_r = pallas_matmul(a_r, wm_r).reshape(B, Hc, Wc, kH, kW, cr)
            y_r = col2im_k4s2p1(y_r)
            y_g = star_matmul(a_r, a_g, wgr, wgg).reshape(
                n_classes * B, Hc, Wc, kH, kW, cg)
            y_g = col2im_k4s2p1(y_g).reshape(n_classes, B, 2 * Hc, 2 * Wc, cg)
            H, W = 2 * Hc, 2 * Wc

        L = B * H * W
        y_r = bn_act(y_r.reshape(1, L, cr),
                     p["g_red"].reshape(1, cr), p["b_red"].reshape(1, cr),
                     cfg["use_bn"], cfg["act"]).reshape(B, H, W, cr)
        y_g = bn_act(y_g.reshape(n_classes, L, cg),
                     p["g_green"], p["b_green"],
                     cfg["use_bn"], cfg["act"]).reshape(n_classes, B, H, W, cg)
        red_act, green_act = y_r, y_g

    red_b = jnp.broadcast_to(red_act[None], (n_classes,) + red_act.shape)
    imgs = jnp.concatenate([red_b, green_act], axis=-1)    # (G, B, H, W, nc)
    return imgs.transpose(0, 1, 4, 2, 3)                   # -> (G, B, nc, H, W)


if __name__ == "__main__":
    # Small config: isize=16, nz=8, nc=4, ngf=8, n_classes=2, batch=2
    isize, nz, nc, ngf, n_classes = 16, 8, 4, 8, 2
    B = 2
    red_portion = 0.5
    nz_red = int(nz * red_portion)

    key = jax.random.PRNGKey(0)
    key, kx = jax.random.split(key)
    x = jax.random.normal(kx, (B, nz, 1, 1), jnp.float32)   # NCHW noise input

    cfgs = build_layer_configs(isize, nz, nc, ngf, red_portion)
    params, key = init_params(key, cfgs, n_classes)

    fwd = jax.jit(lambda prm, inp: dcgan_g_star_forward(
        cfgs, prm, inp, n_classes, nz_red))
    out = jax.block_until_ready(fwd(params, x))

    assert out.shape == (n_classes, B, nc, isize, isize), out.shape
    assert bool(jnp.all(jnp.isfinite(out)))
    print("KERNEL_OK")
</pallas_src>

<mosaic_0001>
module attributes {stable_mosaic.version = 11 : i64} {
  func.func @_matmul_kernel(%arg0: i32, %arg1: i32, %arg2: memref<8x4xbf16, #tpu.memory_space<vmem>>, %arg3: memref<4x128xbf16, #tpu.memory_space<vmem>>, %arg4: memref<8x128xf32, #tpu.memory_space<vmem>>) attributes {dimension_semantics = [#tpu.dimension_semantics<parallel>, #tpu.dimension_semantics<parallel>], iteration_bounds = array<i64: 1, 1>, scalar_prefetch = 0 : i64, scratch_operands = 0 : i64, tpu.core_type = #tpu.core_type<tc>, window_params = [{transform_indices = @transform_0, window_bounds = array<i64: 8, 4>}, {transform_indices = @transform_1, window_bounds = array<i64: 4, 128>}, {transform_indices = @transform_2, window_bounds = array<i64: 8, 128>}]} {
    %c0 = arith.constant 0 : index
    %c0_0 = arith.constant 0 : index
    %0 = vector.load %arg2[%c0, %c0_0] : memref<8x4xbf16, #tpu.memory_space<vmem>>, vector<8x4xbf16>
    %c0_1 = arith.constant 0 : index
    %c0_2 = arith.constant 0 : index
    %1 = vector.load %arg3[%c0_1, %c0_2] : memref<4x128xbf16, #tpu.memory_space<vmem>>, vector<4x128xbf16>
    %cst = arith.constant dense<0.000000e+00> : vector<8x128xf32>
    %2 = tpu.matmul %0, %1, %cst {dimension_numbers = #tpu.dot_dimension_numbers<[1], [0], [0], [1], [0, 0, 1, 1], [], []>} : vector<8x4xbf16>, vector<4x128xbf16>, vector<8x128xf32> -> vector<8x128xf32>
    %c0_3 = arith.constant 0 : index
    %c0_4 = arith.constant 0 : index
    %3 = vector.load %arg4[%c0_3, %c0_4] : memref<8x128xf32, #tpu.memory_space<vmem>>, vector<8x128xf32>
    tpu.vector_store %arg4[%c0_3, %c0_4], %2 {strides = array<i32>} : memref<8x128xf32, #tpu.memory_space<vmem>>, vector<8x128xf32>,
    return
  }
  func.func @transform_0(%arg0: i32, %arg1: i32) -> (i32, i32) {
    %c0_i32 = arith.constant 0 : i32
    %c0_i32_0 = arith.constant 0 : i32
    return %arg0, %c0_i32 : i32, i32
  }
  func.func @transform_1(%arg0: i32, %arg1: i32) -> (i32, i32) {
    %c0_i32 = arith.constant 0 : i32
    %c0_i32_0 = arith.constant 0 : i32
    return %c0_i32, %arg1 : i32, i32
  }
  func.func @transform_2(%arg0: i32, %arg1: i32) -> (i32, i32) {
    %c0_i32 = arith.constant 0 : i32
    return %arg0, %arg1 : i32, i32
  }
}

module attributes {stable_mosaic.version = 11 : i64} {
  func.func @kernel(%arg0: i32, %arg1: i32, %arg2: memref<1x32x8xf32, #tpu.memory_space<vmem>>, %arg3: memref<1x1x8xf32, #tpu.memory_space<vmem>>, %arg4: memref<1x1x8xf32, #tpu.memory_space<vmem>>, %arg5: memref<1x32x8xf32, #tpu.memory_space<vmem>>) attributes {dimension_semantics = [#tpu.dimension_semantics<parallel>, #tpu.dimension_semantics<parallel>], iteration_bounds = array<i64: 1, 1>, scalar_prefetch = 0 : i64, scratch_operands = 0 : i64, tpu.core_type = #tpu.core_type<tc>, window_params = [{transform_indices = @transform_0, window_bounds = array<i64: 1, 32, 8>}, {transform_indices = @transform_1, window_bounds = array<i64: 1, 1, 8>}, {transform_indices = @transform_2, window_bounds = array<i64: 1, 1, 8>}, {transform_indices = @transform_3, window_bounds = array<i64: 1, 32, 8>}]} {
    %c0 = arith.constant 0 : index
    %c0_0 = arith.constant 0 : index
    %c0_1 = arith.constant 0 : index
    %0 = vector.load %arg2[%c0, %c0_0, %c0_1] : memref<1x32x8xf32, #tpu.memory_space<vmem>>, vector<1x32x8xf32>
    %1 = vector.shape_cast %0 : vector<1x32x8xf32> to vector<32x8xf32>
    %cst = arith.constant dense<0.000000e+00> : vector<8xf32>
    %2 = vector.multi_reduction <add>, %1, %cst [0] : vector<32x8xf32> to vector<8xf32>
    %3 = vector.shape_cast %2 : vector<8xf32> to vector<1x8xf32>
    %cst_2 = arith.constant 3.125000e-02 : f32
    %4 = vector.broadcast %cst_2 : f32 to vector<1x8xf32>
    %5 = arith.mulf %3, %4 : vector<1x8xf32>
    %6 = vector.broadcast %5 : vector<1x8xf32> to vector<32x8xf32>
    %7 = arith.subf %1, %6 : vector<32x8xf32>
    %8 = arith.mulf %7, %7 : vector<32x8xf32>
    %cst_3 = arith.constant dense<0.000000e+00> : vector<8xf32>
    %9 = vector.multi_reduction <add>, %8, %cst_3 [0] : vector<32x8xf32> to vector<8xf32>
    %10 = vector.shape_cast %9 : vector<8xf32> to vector<1x8xf32>
    %cst_4 = arith.constant 3.125000e-02 : f32
    %11 = vector.broadcast %cst_4 : f32 to vector<1x8xf32>
    %12 = arith.mulf %10, %11 : vector<1x8xf32>
    %cst_5 = arith.constant 9.99999974E-6 : f32
    %13 = vector.broadcast %cst_5 : f32 to vector<1x8xf32>
    %14 = arith.addf %12, %13 : vector<1x8xf32>
    %15 = math.rsqrt %14 : vector<1x8xf32>
    %16 = vector.broadcast %15 : vector<1x8xf32> to vector<32x8xf32>
    %17 = arith.mulf %7, %16 : vector<32x8xf32>
    %c0_6 = arith.constant 0 : index
    %c0_7 = arith.constant 0 : index
    %c0_8 = arith.constant 0 : index
    %18 = vector.load %arg3[%c0_6, %c0_7, %c0_8] : memref<1x1x8xf32, #tpu.memory_space<vmem>>, vector<1x1x8xf32>
    %19 = vector.shape_cast %18 : vector<1x1x8xf32> to vector<1x8xf32>
    %20 = vector.broadcast %19 : vector<1x8xf32> to vector<32x8xf32>
    %21 = arith.mulf %17, %20 : vector<32x8xf32>
    %c0_9 = arith.constant 0 : index
    %c0_10 = arith.constant 0 : index
    %c0_11 = arith.constant 0 : index
    %22 = vector.load %arg4[%c0_9, %c0_10, %c0_11] : memref<1x1x8xf32, #tpu.memory_space<vmem>>, vector<1x1x8xf32>
    %23 = vector.shape_cast %22 : vector<1x1x8xf32> to vector<1x8xf32>
    %24 = vector.broadcast %23 : vector<1x8xf32> to vector<32x8xf32>
    %25 = arith.addf %21, %24 : vector<32x8xf32>
    %cst_12 = arith.constant 0.000000e+00 : f32
    %26 = vector.broadcast %cst_12 : f32 to vector<32x8xf32>
    %27 = arith.maximumf %25, %26 : vector<32x8xf32>
    %c0_13 = arith.constant 0 : index
    %c0_14 = arith.constant 0 : index
    %c0_15 = arith.constant 0 : index
    %28 = vector.load %arg5[%c0_13, %c0_14, %c0_15] : memref<1x32x8xf32, #tpu.memory_space<vmem>>, vector<1x32x8xf32>
    %29 = vector.shape_cast %28 : vector<1x32x8xf32> to vector<32x8xf32>
    %30 = vector.shape_cast %27 : vector<32x8xf32> to vector<1x32x8xf32>
    tpu.vector_store %arg5[%c0_13, %c0_14, %c0_15], %30 {strides = array<i32>} : memref<1x32x8xf32, #tpu.memory_space<vmem>>, vector<1x32x8xf32>,
    return
  }
  func.func @transform_0(%arg0: i32, %arg1: i32) -> (i32, i32, i32) {
    %c0_i32 = arith.constant 0 : i32
    %c0_i32_0 = arith.constant 0 : i32
    return %arg0, %c0_i32, %arg1 : i32, i32, i32
  }
  func.func @transform_1(%arg0: i32, %arg1: i32) -> (i32, i32, i32) {
    %c0_i32 = arith.constant 0 : i32
    %c0_i32_0 = arith.constant 0 : i32
    return %arg0, %c0_i32, %arg1 : i32, i32, i32
  }
  func.func @transform_2(%arg0: i32, %arg1: i32) -> (i32, i32, i32) {
    %c0_i32 = arith.constant 0 : i32
    %c0_i32_0 = arith.constant 0 : i32
    return %arg0, %c0_i32, %arg1 : i32, i32, i32
  }
  func.func @transform_3(%arg0: i32, %arg1: i32) -> (i32, i32, i32) {
    %c0_i32 = arith.constant 0 : i32
    %c0_i32_0 = arith.constant 0 : i32
    return %arg0, %c0_i32, %arg1 : i32, i32, i32
  }
}

module attributes {stable_mosaic.version = 11 : i64} {
  func.func @_matmul_kernel(%arg0: i32, %arg1: i32, %arg2: memref<32x8xbf16, #tpu.memory_space<vmem>>, %arg3: memref<8x64xbf16, #tpu.memory_space<vmem>>, %arg4: memref<32x64xf32, #tpu.memory_space<vmem>>) attributes {dimension_semantics = [#tpu.dimension_semantics<parallel>, #tpu.dimension_semantics<parallel>], iteration_bounds = array<i64: 1, 1>, scalar_prefetch = 0 : i64, scratch_operands = 0 : i64, tpu.core_type = #tpu.core_type<tc>, window_params = [{transform_indices = @transform_0, window_bounds = array<i64: 32, 8>}, {transform_indices = @transform_1, window_bounds = array<i64: 8, 64>}, {transform_indices = @transform_2, window_bounds = array<i64: 32, 64>}]} {
    %c0 = arith.constant 0 : index
    %c0_0 = arith.constant 0 : index
    %0 = vector.load %arg2[%c0, %c0_0] : memref<32x8xbf16, #tpu.memory_space<vmem>>, vector<32x8xbf16>
    %c0_1 = arith.constant 0 : index
    %c0_2 = arith.constant 0 : index
    %1 = vector.load %arg3[%c0_1, %c0_2] : memref<8x64xbf16, #tpu.memory_space<vmem>>, vector<8x64xbf16>
    %cst = arith.constant dense<0.000000e+00> : vector<32x64xf32>
    %2 = tpu.matmul %0, %1, %cst {dimension_numbers = #tpu.dot_dimension_numbers<[1], [0], [0], [1], [0, 0, 1, 1], [], []>} : vector<32x8xbf16>, vector<8x64xbf16>, vector<32x64xf32> -> vector<32x64xf32>
    %c0_3 = arith.constant 0 : index
    %c0_4 = arith.constant 0 : index
    %3 = vector.load %arg4[%c0_3, %c0_4] : memref<32x64xf32, #tpu.memory_space<vmem>>, vector<32x64xf32>
    tpu.vector_store %arg4[%c0_3, %c0_4], %2 {strides = array<i32>} : memref<32x64xf32, #tpu.memory_space<vmem>>, vector<32x64xf32>,
    return
  }
  func.func @transform_0(%arg0: i32, %arg1: i32) -> (i32, i32) {
    %c0_i32 = arith.constant 0 : i32
    %c0_i32_0 = arith.constant 0 : i32
    return %arg0, %c0_i32 : i32, i32
  }
  func.func @transform_1(%arg0: i32, %arg1: i32) -> (i32, i32) {
    %c0_i32 = arith.constant 0 : i32
    %c0_i32_0 = arith.constant 0 : i32
    return %c0_i32, %arg1 : i32, i32
  }
  func.func @transform_2(%arg0: i32, %arg1: i32) -> (i32, i32) {
    %c0_i32 = arith.constant 0 : i32
    return %arg0, %arg1 : i32, i32
  }
}

module attributes {stable_mosaic.version = 11 : i64} {
  func.func @_star_matmul_kernel(%arg0: i32, %arg1: i32, %arg2: i32, %arg3: memref<8x4xbf16, #tpu.memory_space<vmem>>, %arg4: memref<1x8x4xbf16, #tpu.memory_space<vmem>>, %arg5: memref<1x4x128xbf16, #tpu.memory_space<vmem>>, %arg6: memref<1x4x128xbf16, #tpu.memory_space<vmem>>, %arg7: memref<1x8x128xf32, #tpu.memory_space<vmem>>) attributes {dimension_semantics = [#tpu.dimension_semantics<parallel>, #tpu.dimension_semantics<parallel>, #tpu.dimension_semantics<parallel>], iteration_bounds = array<i64: 2, 1, 1>, scalar_prefetch = 0 : i64, scratch_operands = 0 : i64, tpu.core_type = #tpu.core_type<tc>, window_params = [{transform_indices = @transform_0, window_bounds = array<i64: 8, 4>}, {transform_indices = @transform_1, window_bounds = array<i64: 1, 8, 4>}, {transform_indices = @transform_2, window_bounds = array<i64: 1, 4, 128>}, {transform_indices = @transform_3, window_bounds = array<i64: 1, 4, 128>}, {transform_indices = @transform_4, window_bounds = array<i64: 1, 8, 128>}]} {
    %c0 = arith.constant 0 : index
    %c0_0 = arith.constant 0 : index
    %0 = vector.load %arg3[%c0, %c0_0] : memref<8x4xbf16, #tpu.memory_space<vmem>>, vector<8x4xbf16>
    %c0_1 = arith.constant 0 : index
    %c0_2 = arith.constant 0 : index
    %c0_3 = arith.constant 0 : index
    %1 = vector.load %arg5[%c0_1, %c0_2, %c0_3] : memref<1x4x128xbf16, #tpu.memory_space<vmem>>, vector<1x4x128xbf16>
    %2 = vector.shape_cast %1 : vector<1x4x128xbf16> to vector<4x128xbf16>
    %cst = arith.constant dense<0.000000e+00> : vector<8x128xf32>
    %3 = tpu.matmul %0, %2, %cst {dimension_numbers = #tpu.dot_dimension_numbers<[1], [0], [0], [1], [0, 0, 1, 1], [], []>} : vector<8x4xbf16>, vector<4x128xbf16>, vector<8x128xf32> -> vector<8x128xf32>
    %c0_4 = arith.constant 0 : index
    %c0_5 = arith.constant 0 : index
    %c0_6 = arith.constant 0 : index
    %4 = vector.load %arg4[%c0_4, %c0_5, %c0_6] : memref<1x8x4xbf16, #tpu.memory_space<vmem>>, vector<1x8x4xbf16>
    %5 = vector.shape_cast %4 : vector<1x8x4xbf16> to vector<8x4xbf16>
    %c0_7 = arith.constant 0 : index
    %c0_8 = arith.constant 0 : index
    %c0_9 = arith.constant 0 : index
    %6 = vector.load %arg6[%c0_7, %c0_8, %c0_9] : memref<1x4x128xbf16, #tpu.memory_space<vmem>>, vector<1x4x128xbf16>
    %7 = vector.shape_cast %6 : vector<1x4x128xbf16> to vector<4x128xbf16>
    %cst_10 = arith.constant dense<0.000000e+00> : vector<8x128xf32>
    %8 = tpu.matmul %5, %7, %cst_10 {dimension_numbers = #tpu.dot_dimension_numbers<[1], [0], [0], [1], [0, 0, 1, 1], [], []>} : vector<8x4xbf16>, vector<4x128xbf16>, vector<8x128xf32> -> vector<8x128xf32>
    %9 = arith.addf %3, %8 : vector<8x128xf32>
    %c0_11 = arith.constant 0 : index
    %c0_12 = arith.constant 0 : index
    %c0_13 = arith.constant 0 : index
    %10 = vector.load %arg7[%c0_11, %c0_12, %c0_13] : memref<1x8x128xf32, #tpu.memory_space<vmem>>, vector<1x8x128xf32>
    %11 = vector.shape_cast %10 : vector<1x8x128xf32> to vector<8x128xf32>
    %12 = vector.shape_cast %9 : vector<8x128xf32> to vector<1x8x128xf32>
    tpu.vector_store %arg7[%c0_11, %c0_12, %c0_13], %12 {strides = array<i32>} : memref<1x8x128xf32, #tpu.memory_space<vmem>>, vector<1x8x128xf32>,
    return
  }
  func.func @transform_0(%arg0: i32, %arg1: i32, %arg2: i32) -> (i32, i32) {
    %c0_i32 = arith.constant 0 : i32
    %c0_i32_0 = arith.constant 0 : i32
    return %arg1, %c0_i32 : i32, i32
  }
  func.func @transform_1(%arg0: i32, %arg1: i32, %arg2: i32) -> (i32, i32, i32) {
    %c0_i32 = arith.constant 0 : i32
    %c0_i32_0 = arith.constant 0 : i32
    return %arg0, %arg1, %c0_i32 : i32, i32, i32
  }
  func.func @transform_2(%arg0: i32, %arg1: i32, %arg2: i32) -> (i32, i32, i32) {
    %c0_i32 = arith.constant 0 : i32
    %c0_i32_0 = arith.constant 0 : i32
    return %arg0, %c0_i32, %arg2 : i32, i32, i32
  }
  func.func @transform_3(%arg0: i32, %arg1: i32, %arg2: i32) -> (i32, i32, i32) {
    %c0_i32 = arith.constant 0 : i32
    %c0_i32_0 = arith.constant 0 : i32
    return %arg0, %c0_i32, %arg2 : i32, i32, i32
  }
  func.func @transform_4(%arg0: i32, %arg1: i32, %arg2: i32) -> (i32, i32, i32) {
    %c0_i32 = arith.constant 0 : i32
    return %arg0, %arg1, %arg2 : i32, i32, i32
  }
}

module attributes {stable_mosaic.version = 11 : i64} {
  func.func @kernel(%arg0: i32, %arg1: i32, %arg2: memref<1x128x4xf32, #tpu.memory_space<vmem>>, %arg3: memref<1x1x4xf32, #tpu.memory_space<vmem>>, %arg4: memref<1x1x4xf32, #tpu.memory_space<vmem>>, %arg5: memref<1x128x4xf32, #tpu.memory_space<vmem>>) attributes {dimension_semantics = [#tpu.dimension_semantics<parallel>, #tpu.dimension_semantics<parallel>], iteration_bounds = array<i64: 1, 1>, scalar_prefetch = 0 : i64, scratch_operands = 0 : i64, tpu.core_type = #tpu.core_type<tc>, window_params = [{transform_indices = @transform_0, window_bounds = array<i64: 1, 128, 4>}, {transform_indices = @transform_1, window_bounds = array<i64: 1, 1, 4>}, {transform_indices = @transform_2, window_bounds = array<i64: 1, 1, 4>}, {transform_indices = @transform_3, window_bounds = array<i64: 1, 128, 4>}]} {
    %c0 = arith.constant 0 : index
    %c0_0 = arith.constant 0 : index
    %c0_1 = arith.constant 0 : index
    %0 = vector.load %arg2[%c0, %c0_0, %c0_1] : memref<1x128x4xf32, #tpu.memory_space<vmem>>, vector<1x128x4xf32>
    %1 = vector.shape_cast %0 : vector<1x128x4xf32> to vector<128x4xf32>
    %cst = arith.constant dense<0.000000e+00> : vector<4xf32>
    %2 = vector.multi_reduction <add>, %1, %cst [0] : vector<128x4xf32> to vector<4xf32>
    %3 = vector.shape_cast %2 : vector<4xf32> to vector<1x4xf32>
    %cst_2 = arith.constant 7.812500e-03 : f32
    %4 = vector.broadcast %cst_2 : f32 to vector<1x4xf32>
    %5 = arith.mulf %3, %4 : vector<1x4xf32>
    %6 = vector.broadcast %5 : vector<1x4xf32> to vector<128x4xf32>
    %7 = arith.subf %1, %6 : vector<128x4xf32>
    %8 = arith.mulf %7, %7 : vector<128x4xf32>
    %cst_3 = arith.constant dense<0.000000e+00> : vector<4xf32>
    %9 = vector.multi_reduction <add>, %8, %cst_3 [0] : vector<128x4xf32> to vector<4xf32>
    %10 = vector.shape_cast %9 : vector<4xf32> to vector<1x4xf32>
    %cst_4 = arith.constant 7.812500e-03 : f32
    %11 = vector.broadcast %cst_4 : f32 to vector<1x4xf32>
    %12 = arith.mulf %10, %11 : vector<1x4xf32>
    %cst_5 = arith.constant 9.99999974E-6 : f32
    %13 = vector.broadcast %cst_5 : f32 to vector<1x4xf32>
    %14 = arith.addf %12, %13 : vector<1x4xf32>
    %15 = math.rsqrt %14 : vector<1x4xf32>
    %16 = vector.broadcast %15 : vector<1x4xf32> to vector<128x4xf32>
    %17 = arith.mulf %7, %16 : vector<128x4xf32>
    %c0_6 = arith.constant 0 : index
    %c0_7 = arith.constant 0 : index
    %c0_8 = arith.constant 0 : index
    %18 = vector.load %arg3[%c0_6, %c0_7, %c0_8] : memref<1x1x4xf32, #tpu.memory_space<vmem>>, vector<1x1x4xf32>
    %19 = vector.shape_cast %18 : vector<1x1x4xf32> to vector<1x4xf32>
    %20 = vector.broadcast %19 : vector<1x4xf32> to vector<128x4xf32>
    %21 = arith.mulf %17, %20 : vector<128x4xf32>
    %c0_9 = arith.constant 0 : index
    %c0_10 = arith.constant 0 : index
    %c0_11 = arith.constant 0 : index
    %22 = vector.load %arg4[%c0_9, %c0_10, %c0_11] : memref<1x1x4xf32, #tpu.memory_space<vmem>>, vector<1x1x4xf32>
    %23 = vector.shape_cast %22 : vector<1x1x4xf32> to vector<1x4xf32>
    %24 = vector.broadcast %23 : vector<1x4xf32> to vector<128x4xf32>
    %25 = arith.addf %21, %24 : vector<128x4xf32>
    %cst_12 = arith.constant 0.000000e+00 : f32
    %26 = vector.broadcast %cst_12 : f32 to vector<128x4xf32>
    %27 = arith.maximumf %25, %26 : vector<128x4xf32>
    %c0_13 = arith.constant 0 : index
    %c0_14 = arith.constant 0 : index
    %c0_15 = arith.constant 0 : index
    %28 = vector.load %arg5[%c0_13, %c0_14, %c0_15] : memref<1x128x4xf32, #tpu.memory_space<vmem>>, vector<1x128x4xf32>
    %29 = vector.shape_cast %28 : vector<1x128x4xf32> to vector<128x4xf32>
    %30 = vector.shape_cast %27 : vector<128x4xf32> to vector<1x128x4xf32>
    tpu.vector_store %arg5[%c0_13, %c0_14, %c0_15], %30 {strides = array<i32>} : memref<1x128x4xf32, #tpu.memory_space<vmem>>, vector<1x128x4xf32>,
    return
  }
  func.func @transform_0(%arg0: i32, %arg1: i32) -> (i32, i32, i32) {
    %c0_i32 = arith.constant 0 : i32
    %c0_i32_0 = arith.constant 0 : i32
    return %arg0, %c0_i32, %arg1 : i32, i32, i32
  }
  func.func @transform_1(%arg0: i32, %arg1: i32) -> (i32, i32, i32) {
    %c0_i32 = arith.constant 0 : i32
    %c0_i32_0 = arith.constant 0 : i32
    return %arg0, %c0_i32, %arg1 : i32, i32, i32
  }
  func.func @transform_2(%arg0: i32, %arg1: i32) -> (i32, i32, i32) {
    %c0_i32 = arith.constant 0 : i32
    %c0_i32_0 = arith.constant 0 : i32
    return %arg0, %c0_i32, %arg1 : i32, i32, i32
  }
  func.func @transform_3(%arg0: i32, %arg1: i32) -> (i32, i32, i32) {
    %c0_i32 = arith.constant 0 : i32
    %c0_i32_0 = arith.constant 0 : i32
    return %arg0, %c0_i32, %arg1 : i32, i32, i32
  }
}

module attributes {stable_mosaic.version = 11 : i64} {
  func.func @kernel(%arg0: i32, %arg1: i32, %arg2: memref<1x32x8xf32, #tpu.memory_space<vmem>>, %arg3: memref<1x1x8xf32, #tpu.memory_space<vmem>>, %arg4: memref<1x1x8xf32, #tpu.memory_space<vmem>>, %arg5: memref<1x32x8xf32, #tpu.memory_space<vmem>>) attributes {dimension_semantics = [#tpu.dimension_semantics<parallel>, #tpu.dimension_semantics<parallel>], iteration_bounds = array<i64: 2, 1>, scalar_prefetch = 0 : i64, scratch_operands = 0 : i64, tpu.core_type = #tpu.core_type<tc>, window_params = [{transform_indices = @transform_0, window_bounds = array<i64: 1, 32, 8>}, {transform_indices = @transform_1, window_bounds = array<i64: 1, 1, 8>}, {transform_indices = @transform_2, window_bounds = array<i64: 1, 1, 8>}, {transform_indices = @transform_3, window_bounds = array<i64: 1, 32, 8>}]} {
    %c0 = arith.constant 0 : index
    %c0_0 = arith.constant 0 : index
    %c0_1 = arith.constant 0 : index
    %0 = vector.load %arg2[%c0, %c0_0, %c0_1] : memref<1x32x8xf32, #tpu.memory_space<vmem>>, vector<1x32x8xf32>
    %1 = vector.shape_cast %0 : vector<1x32x8xf32> to vector<32x8xf32>
    %cst = arith.constant dense<0.000000e+00> : vector<8xf32>
    %2 = vector.multi_reduction <add>, %1, %cst [0] : vector<32x8xf32> to vector<8xf32>
    %3 = vector.shape_cast %2 : vector<8xf32> to vector<1x8xf32>
    %cst_2 = arith.constant 3.125000e-02 : f32
    %4 = vector.broadcast %cst_2 : f32 to vector<1x8xf32>
    %5 = arith.mulf %3, %4 : vector<1x8xf32>
    %6 = vector.broadcast %5 : vector<1x8xf32> to vector<32x8xf32>
    %7 = arith.subf %1, %6 : vector<32x8xf32>
    %8 = arith.mulf %7, %7 : vector<32x8xf32>
    %cst_3 = arith.constant dense<0.000000e+00> : vector<8xf32>
    %9 = vector.multi_reduction <add>, %8, %cst_3 [0] : vector<32x8xf32> to vector<8xf32>
    %10 = vector.shape_cast %9 : vector<8xf32> to vector<1x8xf32>
    %cst_4 = arith.constant 3.125000e-02 : f32
    %11 = vector.broadcast %cst_4 : f32 to vector<1x8xf32>
    %12 = arith.mulf %10, %11 : vector<1x8xf32>
    %cst_5 = arith.constant 9.99999974E-6 : f32
    %13 = vector.broadcast %cst_5 : f32 to vector<1x8xf32>
    %14 = arith.addf %12, %13 : vector<1x8xf32>
    %15 = math.rsqrt %14 : vector<1x8xf32>
    %16 = vector.broadcast %15 : vector<1x8xf32> to vector<32x8xf32>
    %17 = arith.mulf %7, %16 : vector<32x8xf32>
    %c0_6 = arith.constant 0 : index
    %c0_7 = arith.constant 0 : index
    %c0_8 = arith.constant 0 : index
    %18 = vector.load %arg3[%c0_6, %c0_7, %c0_8] : memref<1x1x8xf32, #tpu.memory_space<vmem>>, vector<1x1x8xf32>
    %19 = vector.shape_cast %18 : vector<1x1x8xf32> to vector<1x8xf32>
    %20 = vector.broadcast %19 : vector<1x8xf32> to vector<32x8xf32>
    %21 = arith.mulf %17, %20 : vector<32x8xf32>
    %c0_9 = arith.constant 0 : index
    %c0_10 = arith.constant 0 : index
    %c0_11 = arith.constant 0 : index
    %22 = vector.load %arg4[%c0_9, %c0_10, %c0_11] : memref<1x1x8xf32, #tpu.memory_space<vmem>>, vector<1x1x8xf32>
    %23 = vector.shape_cast %22 : vector<1x1x8xf32> to vector<1x8xf32>
    %24 = vector.broadcast %23 : vector<1x8xf32> to vector<32x8xf32>
    %25 = arith.addf %21, %24 : vector<32x8xf32>
    %cst_12 = arith.constant 0.000000e+00 : f32
    %26 = vector.broadcast %cst_12 : f32 to vector<32x8xf32>
    %27 = arith.maximumf %25, %26 : vector<32x8xf32>
    %c0_13 = arith.constant 0 : index
    %c0_14 = arith.constant 0 : index
    %c0_15 = arith.constant 0 : index
    %28 = vector.load %arg5[%c0_13, %c0_14, %c0_15] : memref<1x32x8xf32, #tpu.memory_space<vmem>>, vector<1x32x8xf32>
    %29 = vector.shape_cast %28 : vector<1x32x8xf32> to vector<32x8xf32>
    %30 = vector.shape_cast %27 : vector<32x8xf32> to vector<1x32x8xf32>
    tpu.vector_store %arg5[%c0_13, %c0_14, %c0_15], %30 {strides = array<i32>} : memref<1x32x8xf32, #tpu.memory_space<vmem>>, vector<1x32x8xf32>,
    return
  }
  func.func @transform_0(%arg0: i32, %arg1: i32) -> (i32, i32, i32) {
    %c0_i32 = arith.constant 0 : i32
    %c0_i32_0 = arith.constant 0 : i32
    return %arg0, %c0_i32, %arg1 : i32, i32, i32
  }
  func.func @transform_1(%arg0: i32, %arg1: i32) -> (i32, i32, i32) {
    %c0_i32 = arith.constant 0 : i32
    %c0_i32_0 = arith.constant 0 : i32
    return %arg0, %c0_i32, %arg1 : i32, i32, i32
  }
  func.func @transform_2(%arg0: i32, %arg1: i32) -> (i32, i32, i32) {
    %c0_i32 = arith.constant 0 : i32
    %c0_i32_0 = arith.constant 0 : i32
    return %arg0, %c0_i32, %arg1 : i32, i32, i32
  }
  func.func @transform_3(%arg0: i32, %arg1: i32) -> (i32, i32, i32) {
    %c0_i32 = arith.constant 0 : i32
    %c0_i32_0 = arith.constant 0 : i32
    return %arg0, %c0_i32, %arg1 : i32, i32, i32
  }
}

module attributes {stable_mosaic.version = 11 : i64} {
  func.func @_star_matmul_kernel(%arg0: i32, %arg1: i32, %arg2: i32, %arg3: memref<32x8xbf16, #tpu.memory_space<vmem>>, %arg4: memref<1x32x8xbf16, #tpu.memory_space<vmem>>, %arg5: memref<1x8x64xbf16, #tpu.memory_space<vmem>>, %arg6: memref<1x8x64xbf16, #tpu.memory_space<vmem>>, %arg7: memref<1x32x64xf32, #tpu.memory_space<vmem>>) attributes {dimension_semantics = [#tpu.dimension_semantics<parallel>, #tpu.dimension_semantics<parallel>, #tpu.dimension_semantics<parallel>], iteration_bounds = array<i64: 2, 1, 1>, scalar_prefetch = 0 : i64, scratch_operands = 0 : i64, tpu.core_type = #tpu.core_type<tc>, window_params = [{transform_indices = @transform_0, window_bounds = array<i64: 32, 8>}, {transform_indices = @transform_1, window_bounds = array<i64: 1, 32, 8>}, {transform_indices = @transform_2, window_bounds = array<i64: 1, 8, 64>}, {transform_indices = @transform_3, window_bounds = array<i64: 1, 8, 64>}, {transform_indices = @transform_4, window_bounds = array<i64: 1, 32, 64>}]} {
    %c0 = arith.constant 0 : index
    %c0_0 = arith.constant 0 : index
    %0 = vector.load %arg3[%c0, %c0_0] : memref<32x8xbf16, #tpu.memory_space<vmem>>, vector<32x8xbf16>
    %c0_1 = arith.constant 0 : index
    %c0_2 = arith.constant 0 : index
    %c0_3 = arith.constant 0 : index
    %1 = vector.load %arg5[%c0_1, %c0_2, %c0_3] : memref<1x8x64xbf16, #tpu.memory_space<vmem>>, vector<1x8x64xbf16>
    %2 = vector.shape_cast %1 : vector<1x8x64xbf16> to vector<8x64xbf16>
    %cst = arith.constant dense<0.000000e+00> : vector<32x64xf32>
    %3 = tpu.matmul %0, %2, %cst {dimension_numbers = #tpu.dot_dimension_numbers<[1], [0], [0], [1], [0, 0, 1, 1], [], []>} : vector<32x8xbf16>, vector<8x64xbf16>, vector<32x64xf32> -> vector<32x64xf32>
    %c0_4 = arith.constant 0 : index
    %c0_5 = arith.constant 0 : index
    %c0_6 = arith.constant 0 : index
    %4 = vector.load %arg4[%c0_4, %c0_5, %c0_6] : memref<1x32x8xbf16, #tpu.memory_space<vmem>>, vector<1x32x8xbf16>
    %5 = vector.shape_cast %4 : vector<1x32x8xbf16> to vector<32x8xbf16>
    %c0_7 = arith.constant 0 : index
    %c0_8 = arith.constant 0 : index
    %c0_9 = arith.constant 0 : index
    %6 = vector.load %arg6[%c0_7, %c0_8, %c0_9] : memref<1x8x64xbf16, #tpu.memory_space<vmem>>, vector<1x8x64xbf16>
    %7 = vector.shape_cast %6 : vector<1x8x64xbf16> to vector<8x64xbf16>
    %cst_10 = arith.constant dense<0.000000e+00> : vector<32x64xf32>
    %8 = tpu.matmul %5, %7, %cst_10 {dimension_numbers = #tpu.dot_dimension_numbers<[1], [0], [0], [1], [0, 0, 1, 1], [], []>} : vector<32x8xbf16>, vector<8x64xbf16>, vector<32x64xf32> -> vector<32x64xf32>
    %9 = arith.addf %3, %8 : vector<32x64xf32>
    %c0_11 = arith.constant 0 : index
    %c0_12 = arith.constant 0 : index
    %c0_13 = arith.constant 0 : index
    %10 = vector.load %arg7[%c0_11, %c0_12, %c0_13] : memref<1x32x64xf32, #tpu.memory_space<vmem>>, vector<1x32x64xf32>
    %11 = vector.shape_cast %10 : vector<1x32x64xf32> to vector<32x64xf32>
    %12 = vector.shape_cast %9 : vector<32x64xf32> to vector<1x32x64xf32>
    tpu.vector_store %arg7[%c0_11, %c0_12, %c0_13], %12 {strides = array<i32>} : memref<1x32x64xf32, #tpu.memory_space<vmem>>, vector<1x32x64xf32>,
    return
  }
  func.func @transform_0(%arg0: i32, %arg1: i32, %arg2: i32) -> (i32, i32) {
    %c0_i32 = arith.constant 0 : i32
    %c0_i32_0 = arith.constant 0 : i32
    return %arg1, %c0_i32 : i32, i32
  }
  func.func @transform_1(%arg0: i32, %arg1: i32, %arg2: i32) -> (i32, i32, i32) {
    %c0_i32 = arith.constant 0 : i32
    %c0_i32_0 = arith.constant 0 : i32
    return %arg0, %arg1, %c0_i32 : i32, i32, i32
  }
  func.func @transform_2(%arg0: i32, %arg1: i32, %arg2: i32) -> (i32, i32, i32) {
    %c0_i32 = arith.constant 0 : i32
    %c0_i32_0 = arith.constant 0 : i32
    return %arg0, %c0_i32, %arg2 : i32, i32, i32
  }
  func.func @transform_3(%arg0: i32, %arg1: i32, %arg2: i32) -> (i32, i32, i32) {
    %c0_i32 = arith.constant 0 : i32
    %c0_i32_0 = arith.constant 0 : i32
    return %arg0, %c0_i32, %arg2 : i32, i32, i32
  }
  func.func @transform_4(%arg0: i32, %arg1: i32, %arg2: i32) -> (i32, i32, i32) {
    %c0_i32 = arith.constant 0 : i32
    return %arg0, %arg1, %arg2 : i32, i32, i32
  }
}

module attributes {stable_mosaic.version = 11 : i64} {
  func.func @kernel(%arg0: i32, %arg1: i32, %arg2: memref<1x128x4xf32, #tpu.memory_space<vmem>>, %arg3: memref<1x1x4xf32, #tpu.memory_space<vmem>>, %arg4: memref<1x1x4xf32, #tpu.memory_space<vmem>>, %arg5: memref<1x128x4xf32, #tpu.memory_space<vmem>>) attributes {dimension_semantics = [#tpu.dimension_semantics<parallel>, #tpu.dimension_semantics<parallel>], iteration_bounds = array<i64: 2, 1>, scalar_prefetch = 0 : i64, scratch_operands = 0 : i64, tpu.core_type = #tpu.core_type<tc>, window_params = [{transform_indices = @transform_0, window_bounds = array<i64: 1, 128, 4>}, {transform_indices = @transform_1, window_bounds = array<i64: 1, 1, 4>}, {transform_indices = @transform_2, window_bounds = array<i64: 1, 1, 4>}, {transform_indices = @transform_3, window_bounds = array<i64: 1, 128, 4>}]} {
    %c0 = arith.constant 0 : index
    %c0_0 = arith.constant 0 : index
    %c0_1 = arith.constant 0 : index
    %0 = vector.load %arg2[%c0, %c0_0, %c0_1] : memref<1x128x4xf32, #tpu.memory_space<vmem>>, vector<1x128x4xf32>
    %1 = vector.shape_cast %0 : vector<1x128x4xf32> to vector<128x4xf32>
    %cst = arith.constant dense<0.000000e+00> : vector<4xf32>
    %2 = vector.multi_reduction <add>, %1, %cst [0] : vector<128x4xf32> to vector<4xf32>
    %3 = vector.shape_cast %2 : vector<4xf32> to vector<1x4xf32>
    %cst_2 = arith.constant 7.812500e-03 : f32
    %4 = vector.broadcast %cst_2 : f32 to vector<1x4xf32>
    %5 = arith.mulf %3, %4 : vector<1x4xf32>
    %6 = vector.broadcast %5 : vector<1x4xf32> to vector<128x4xf32>
    %7 = arith.subf %1, %6 : vector<128x4xf32>
    %8 = arith.mulf %7, %7 : vector<128x4xf32>
    %cst_3 = arith.constant dense<0.000000e+00> : vector<4xf32>
    %9 = vector.multi_reduction <add>, %8, %cst_3 [0] : vector<128x4xf32> to vector<4xf32>
    %10 = vector.shape_cast %9 : vector<4xf32> to vector<1x4xf32>
    %cst_4 = arith.constant 7.812500e-03 : f32
    %11 = vector.broadcast %cst_4 : f32 to vector<1x4xf32>
    %12 = arith.mulf %10, %11 : vector<1x4xf32>
    %cst_5 = arith.constant 9.99999974E-6 : f32
    %13 = vector.broadcast %cst_5 : f32 to vector<1x4xf32>
    %14 = arith.addf %12, %13 : vector<1x4xf32>
    %15 = math.rsqrt %14 : vector<1x4xf32>
    %16 = vector.broadcast %15 : vector<1x4xf32> to vector<128x4xf32>
    %17 = arith.mulf %7, %16 : vector<128x4xf32>
    %c0_6 = arith.constant 0 : index
    %c0_7 = arith.constant 0 : index
    %c0_8 = arith.constant 0 : index
    %18 = vector.load %arg3[%c0_6, %c0_7, %c0_8] : memref<1x1x4xf32, #tpu.memory_space<vmem>>, vector<1x1x4xf32>
    %19 = vector.shape_cast %18 : vector<1x1x4xf32> to vector<1x4xf32>
    %20 = vector.broadcast %19 : vector<1x4xf32> to vector<128x4xf32>
    %21 = arith.mulf %17, %20 : vector<128x4xf32>
    %c0_9 = arith.constant 0 : index
    %c0_10 = arith.constant 0 : index
    %c0_11 = arith.constant 0 : index
    %22 = vector.load %arg4[%c0_9, %c0_10, %c0_11] : memref<1x1x4xf32, #tpu.memory_space<vmem>>, vector<1x1x4xf32>
    %23 = vector.shape_cast %22 : vector<1x1x4xf32> to vector<1x4xf32>
    %24 = vector.broadcast %23 : vector<1x4xf32> to vector<128x4xf32>
    %25 = arith.addf %21, %24 : vector<128x4xf32>
    %cst_12 = arith.constant 0.000000e+00 : f32
    %26 = vector.broadcast %cst_12 : f32 to vector<128x4xf32>
    %27 = arith.maximumf %25, %26 : vector<128x4xf32>
    %c0_13 = arith.constant 0 : index
    %c0_14 = arith.constant 0 : index
    %c0_15 = arith.constant 0 : index
    %28 = vector.load %arg5[%c0_13, %c0_14, %c0_15] : memref<1x128x4xf32, #tpu.memory_space<vmem>>, vector<1x128x4xf32>
    %29 = vector.shape_cast %28 : vector<1x128x4xf32> to vector<128x4xf32>
    %30 = vector.shape_cast %27 : vector<128x4xf32> to vector<1x128x4xf32>
    tpu.vector_store %arg5[%c0_13, %c0_14, %c0_15], %30 {strides = array<i32>} : memref<1x128x4xf32, #tpu.memory_space<vmem>>, vector<1x128x4xf32>,
    return
  }
  func.func @transform_0(%arg0: i32, %arg1: i32) -> (i32, i32, i32) {
    %c0_i32 = arith.constant 0 : i32
    %c0_i32_0 = arith.constant 0 : i32
    return %arg0, %c0_i32, %arg1 : i32, i32, i32
  }
  func.func @transform_1(%arg0: i32, %arg1: i32) -> (i32, i32, i32) {
    %c0_i32 = arith.constant 0 : i32
    %c0_i32_0 = arith.constant 0 : i32
    return %arg0, %c0_i32, %arg1 : i32, i32, i32
  }
  func.func @transform_2(%arg0: i32, %arg1: i32) -> (i32, i32, i32) {
    %c0_i32 = arith.constant 0 : i32
    %c0_i32_0 = arith.constant 0 : i32
    return %arg0, %c0_i32, %arg1 : i32, i32, i32
  }
  func.func @transform_3(%arg0: i32, %arg1: i32) -> (i32, i32, i32) {
    %c0_i32 = arith.constant 0 : i32
    %c0_i32_0 = arith.constant 0 : i32
    return %arg0, %c0_i32, %arg1 : i32, i32, i32
  }
}

module attributes {stable_mosaic.version = 11 : i64} {
  func.func @_star_matmul_kernel(%arg0: i32, %arg1: i32, %arg2: i32, %arg3: memref<128x4xbf16, #tpu.memory_space<vmem>>, %arg4: memref<1x128x4xbf16, #tpu.memory_space<vmem>>, %arg5: memref<1x4x32xbf16, #tpu.memory_space<vmem>>, %arg6: memref<1x4x32xbf16, #tpu.memory_space<vmem>>, %arg7: memref<1x128x32xf32, #tpu.memory_space<vmem>>) attributes {dimension_semantics = [#tpu.dimension_semantics<parallel>, #tpu.dimension_semantics<parallel>, #tpu.dimension_semantics<parallel>], iteration_bounds = array<i64: 2, 1, 1>, scalar_prefetch = 0 : i64, scratch_operands = 0 : i64, tpu.core_type = #tpu.core_type<tc>, window_params = [{transform_indices = @transform_0, window_bounds = array<i64: 128, 4>}, {transform_indices = @transform_1, window_bounds = array<i64: 1, 128, 4>}, {transform_indices = @transform_2, window_bounds = array<i64: 1, 4, 32>}, {transform_indices = @transform_3, window_bounds = array<i64: 1, 4, 32>}, {transform_indices = @transform_4, window_bounds = array<i64: 1, 128, 32>}]} {
    %c0 = arith.constant 0 : index
    %c0_0 = arith.constant 0 : index
    %0 = vector.load %arg3[%c0, %c0_0] : memref<128x4xbf16, #tpu.memory_space<vmem>>, vector<128x4xbf16>
    %c0_1 = arith.constant 0 : index
    %c0_2 = arith.constant 0 : index
    %c0_3 = arith.constant 0 : index
    %1 = vector.load %arg5[%c0_1, %c0_2, %c0_3] : memref<1x4x32xbf16, #tpu.memory_space<vmem>>, vector<1x4x32xbf16>
    %2 = vector.shape_cast %1 : vector<1x4x32xbf16> to vector<4x32xbf16>
    %cst = arith.constant dense<0.000000e+00> : vector<128x32xf32>
    %3 = tpu.matmul %0, %2, %cst {dimension_numbers = #tpu.dot_dimension_numbers<[1], [0], [0], [1], [0, 0, 1, 1], [], []>} : vector<128x4xbf16>, vector<4x32xbf16>, vector<128x32xf32> -> vector<128x32xf32>
    %c0_4 = arith.constant 0 : index
    %c0_5 = arith.constant 0 : index
    %c0_6 = arith.constant 0 : index
    %4 = vector.load %arg4[%c0_4, %c0_5, %c0_6] : memref<1x128x4xbf16, #tpu.memory_space<vmem>>, vector<1x128x4xbf16>
    %5 = vector.shape_cast %4 : vector<1x128x4xbf16> to vector<128x4xbf16>
    %c0_7 = arith.constant 0 : index
    %c0_8 = arith.constant 0 : index
    %c0_9 = arith.constant 0 : index
    %6 = vector.load %arg6[%c0_7, %c0_8, %c0_9] : memref<1x4x32xbf16, #tpu.memory_space<vmem>>, vector<1x4x32xbf16>
    %7 = vector.shape_cast %6 : vector<1x4x32xbf16> to vector<4x32xbf16>
    %cst_10 = arith.constant dense<0.000000e+00> : vector<128x32xf32>
    %8 = tpu.matmul %5, %7, %cst_10 {dimension_numbers = #tpu.dot_dimension_numbers<[1], [0], [0], [1], [0, 0, 1, 1], [], []>} : vector<128x4xbf16>, vector<4x32xbf16>, vector<128x32xf32> -> vector<128x32xf32>
    %9 = arith.addf %3, %8 : vector<128x32xf32>
    %c0_11 = arith.constant 0 : index
    %c0_12 = arith.constant 0 : index
    %c0_13 = arith.constant 0 : index
    %10 = vector.load %arg7[%c0_11, %c0_12, %c0_13] : memref<1x128x32xf32, #tpu.memory_space<vmem>>, vector<1x128x32xf32>
    %11 = vector.shape_cast %10 : vector<1x128x32xf32> to vector<128x32xf32>
    %12 = vector.shape_cast %9 : vector<128x32xf32> to vector<1x128x32xf32>
    tpu.vector_store %arg7[%c0_11, %c0_12, %c0_13], %12 {strides = array<i32>} : memref<1x128x32xf32, #tpu.memory_space<vmem>>, vector<1x128x32xf32>,
    return
  }
  func.func @transform_0(%arg0: i32, %arg1: i32, %arg2: i32) -> (i32, i32) {
    %c0_i32 = arith.constant 0 : i32
    %c0_i32_0 = arith.constant 0 : i32
    return %arg1, %c0_i32 : i32, i32
  }
  func.func @transform_1(%arg0: i32, %arg1: i32, %arg2: i32) -> (i32, i32, i32) {
    %c0_i32 = arith.constant 0 : i32
    %c0_i32_0 = arith.constant 0 : i32
    return %arg0, %arg1, %c0_i32 : i32, i32, i32
  }
  func.func @transform_2(%arg0: i32, %arg1: i32, %arg2: i32) -> (i32, i32, i32) {
    %c0_i32 = arith.constant 0 : i32
    %c0_i32_0 = arith.constant 0 : i32
    return %arg0, %c0_i32, %arg2 : i32, i32, i32
  }
  func.func @transform_3(%arg0: i32, %arg1: i32, %arg2: i32) -> (i32, i32, i32) {
    %c0_i32 = arith.constant 0 : i32
    %c0_i32_0 = arith.constant 0 : i32
    return %arg0, %c0_i32, %arg2 : i32, i32, i32
  }
  func.func @transform_4(%arg0: i32, %arg1: i32, %arg2: i32) -> (i32, i32, i32) {
    %c0_i32 = arith.constant 0 : i32
    return %arg0, %arg1, %arg2 : i32, i32, i32
  }
}

module attributes {stable_mosaic.version = 11 : i64} {
  func.func @kernel(%arg0: i32, %arg1: i32, %arg2: memref<1x512x2xf32, #tpu.memory_space<vmem>>, %arg3: memref<1x1x2xf32, #tpu.memory_space<vmem>>, %arg4: memref<1x1x2xf32, #tpu.memory_space<vmem>>, %arg5: memref<1x512x2xf32, #tpu.memory_space<vmem>>) attributes {dimension_semantics = [#tpu.dimension_semantics<parallel>, #tpu.dimension_semantics<parallel>], iteration_bounds = array<i64: 2, 1>, scalar_prefetch = 0 : i64, scratch_operands = 0 : i64, tpu.core_type = #tpu.core_type<tc>, window_params = [{transform_indices = @transform_0, window_bounds = array<i64: 1, 512, 2>}, {transform_indices = @transform_1, window_bounds = array<i64: 1, 1, 2>}, {transform_indices = @transform_2, window_bounds = array<i64: 1, 1, 2>}, {transform_indices = @transform_3, window_bounds = array<i64: 1, 512, 2>}]} {
    %c0 = arith.constant 0 : index
    %c0_0 = arith.constant 0 : index
    %c0_1 = arith.constant 0 : index
    %0 = vector.load %arg2[%c0, %c0_0, %c0_1] : memref<1x512x2xf32, #tpu.memory_space<vmem>>, vector<1x512x2xf32>
    %1 = vector.shape_cast %0 : vector<1x512x2xf32> to vector<512x2xf32>
    %2 = math.tanh %1 : vector<512x2xf32>
    %c0_2 = arith.constant 0 : index
    %c0_3 = arith.constant 0 : index
    %c0_4 = arith.constant 0 : index
    %3 = vector.load %arg5[%c0_2, %c0_3, %c0_4] : memref<1x512x2xf32, #tpu.memory_space<vmem>>, vector<1x512x2xf32>
    %4 = vector.shape_cast %3 : vector<1x512x2xf32> to vector<512x2xf32>
    %5 = vector.shape_cast %2 : vector<512x2xf32> to vector<1x512x2xf32>
    tpu.vector_store %arg5[%c0_2, %c0_3, %c0_4], %5 {strides = array<i32>} : memref<1x512x2xf32, #tpu.memory_space<vmem>>, vector<1x512x2xf32>,
    return
  }
  func.func @transform_0(%arg0: i32, %arg1: i32) -> (i32, i32, i32) {
    %c0_i32 = arith.constant 0 : i32
    %c0_i32_0 = arith.constant 0 : i32
    return %arg0, %c0_i32, %arg1 : i32, i32, i32
  }
  func.func @transform_1(%arg0: i32, %arg1: i32) -> (i32, i32, i32) {
    %c0_i32 = arith.constant 0 : i32
    %c0_i32_0 = arith.constant 0 : i32
    return %arg0, %c0_i32, %arg1 : i32, i32, i32
  }
  func.func @transform_2(%arg0: i32, %arg1: i32) -> (i32, i32, i32) {
    %c0_i32 = arith.constant 0 : i32
    %c0_i32_0 = arith.constant 0 : i32
    return %arg0, %c0_i32, %arg1 : i32, i32, i32
  }
  func.func @transform_3(%arg0: i32, %arg1: i32) -> (i32, i32, i32) {
    %c0_i32 = arith.constant 0 : i32
    %c0_i32_0 = arith.constant 0 : i32
    return %arg0, %c0_i32, %arg1 : i32, i32, i32
  }
}

module attributes {stable_mosaic.version = 11 : i64} {
  func.func @_matmul_kernel(%arg0: i32, %arg1: i32, %arg2: memref<128x4xbf16, #tpu.memory_space<vmem>>, %arg3: memref<4x32xbf16, #tpu.memory_space<vmem>>, %arg4: memref<128x32xf32, #tpu.memory_space<vmem>>) attributes {dimension_semantics = [#tpu.dimension_semantics<parallel>, #tpu.dimension_semantics<parallel>], iteration_bounds = array<i64: 1, 1>, scalar_prefetch = 0 : i64, scratch_operands = 0 : i64, tpu.core_type = #tpu.core_type<tc>, window_params = [{transform_indices = @transform_0, window_bounds = array<i64: 128, 4>}, {transform_indices = @transform_1, window_bounds = array<i64: 4, 32>}, {transform_indices = @transform_2, window_bounds = array<i64: 128, 32>}]} {
    %c0 = arith.constant 0 : index
    %c0_0 = arith.constant 0 : index
    %0 = vector.load %arg2[%c0, %c0_0] : memref<128x4xbf16, #tpu.memory_space<vmem>>, vector<128x4xbf16>
    %c0_1 = arith.constant 0 : index
    %c0_2 = arith.constant 0 : index
    %1 = vector.load %arg3[%c0_1, %c0_2] : memref<4x32xbf16, #tpu.memory_space<vmem>>, vector<4x32xbf16>
    %cst = arith.constant dense<0.000000e+00> : vector<128x32xf32>
    %2 = tpu.matmul %0, %1, %cst {dimension_numbers = #tpu.dot_dimension_numbers<[1], [0], [0], [1], [0, 0, 1, 1], [], []>} : vector<128x4xbf16>, vector<4x32xbf16>, vector<128x32xf32> -> vector<128x32xf32>
    %c0_3 = arith.constant 0 : index
    %c0_4 = arith.constant 0 : index
    %3 = vector.load %arg4[%c0_3, %c0_4] : memref<128x32xf32, #tpu.memory_space<vmem>>, vector<128x32xf32>
    tpu.vector_store %arg4[%c0_3, %c0_4], %2 {strides = array<i32>} : memref<128x32xf32, #tpu.memory_space<vmem>>, vector<128x32xf32>,
    return
  }
  func.func @transform_0(%arg0: i32, %arg1: i32) -> (i32, i32) {
    %c0_i32 = arith.constant 0 : i32
    %c0_i32_0 = arith.constant 0 : i32
    return %arg0, %c0_i32 : i32, i32
  }
  func.func @transform_1(%arg0: i32, %arg1: i32) -> (i32, i32) {
    %c0_i32 = arith.constant 0 : i32
    %c0_i32_0 = arith.constant 0 : i32
    return %c0_i32, %arg1 : i32, i32
  }
  func.func @transform_2(%arg0: i32, %arg1: i32) -> (i32, i32) {
    %c0_i32 = arith.constant 0 : i32
    return %arg0, %arg1 : i32, i32
  }
}

module attributes {stable_mosaic.version = 11 : i64} {
  func.func @kernel(%arg0: i32, %arg1: i32, %arg2: memref<1x512x2xf32, #tpu.memory_space<vmem>>, %arg3: memref<1x1x2xf32, #tpu.memory_space<vmem>>, %arg4: memref<1x1x2xf32, #tpu.memory_space<vmem>>, %arg5: memref<1x512x2xf32, #tpu.memory_space<vmem>>) attributes {dimension_semantics = [#tpu.dimension_semantics<parallel>, #tpu.dimension_semantics<parallel>], iteration_bounds = array<i64: 1, 1>, scalar_prefetch = 0 : i64, scratch_operands = 0 : i64, tpu.core_type = #tpu.core_type<tc>, window_params = [{transform_indices = @transform_0, window_bounds = array<i64: 1, 512, 2>}, {transform_indices = @transform_1, window_bounds = array<i64: 1, 1, 2>}, {transform_indices = @transform_2, window_bounds = array<i64: 1, 1, 2>}, {transform_indices = @transform_3, window_bounds = array<i64: 1, 512, 2>}]} {
    %c0 = arith.constant 0 : index
    %c0_0 = arith.constant 0 : index
    %c0_1 = arith.constant 0 : index
    %0 = vector.load %arg2[%c0, %c0_0, %c0_1] : memref<1x512x2xf32, #tpu.memory_space<vmem>>, vector<1x512x2xf32>
    %1 = vector.shape_cast %0 : vector<1x512x2xf32> to vector<512x2xf32>
    %2 = math.tanh %1 : vector<512x2xf32>
    %c0_2 = arith.constant 0 : index
    %c0_3 = arith.constant 0 : index
    %c0_4 = arith.constant 0 : index
    %3 = vector.load %arg5[%c0_2, %c0_3, %c0_4] : memref<1x512x2xf32, #tpu.memory_space<vmem>>, vector<1x512x2xf32>
    %4 = vector.shape_cast %3 : vector<1x512x2xf32> to vector<512x2xf32>
    %5 = vector.shape_cast %2 : vector<512x2xf32> to vector<1x512x2xf32>
    tpu.vector_store %arg5[%c0_2, %c0_3, %c0_4], %5 {strides = array<i32>} : memref<1x512x2xf32, #tpu.memory_space<vmem>>, vector<1x512x2xf32>,
    return
  }
  func.func @transform_0(%arg0: i32, %arg1: i32) -> (i32, i32, i32) {
    %c0_i32 = arith.constant 0 : i32
    %c0_i32_0 = arith.constant 0 : i32
    return %arg0, %c0_i32, %arg1 : i32, i32, i32
  }
  func.func @transform_1(%arg0: i32, %arg1: i32) -> (i32, i32, i32) {
    %c0_i32 = arith.constant 0 : i32
    %c0_i32_0 = arith.constant 0 : i32
    return %arg0, %c0_i32, %arg1 : i32, i32, i32
  }
  func.func @transform_2(%arg0: i32, %arg1: i32) -> (i32, i32, i32) {
    %c0_i32 = arith.constant 0 : i32
    %c0_i32_0 = arith.constant 0 : i32
    return %arg0, %c0_i32, %arg1 : i32, i32, i32
  }
  func.func @transform_3(%arg0: i32, %arg1: i32) -> (i32, i32, i32) {
    %c0_i32 = arith.constant 0 : i32
    %c0_i32_0 = arith.constant 0 : i32
    return %arg0, %c0_i32, %arg1 : i32, i32, i32
  }
}

</mosaic_0001>

<llo_original>
// kernel: _lambda_.14
$region0: #{_lambda_.14}
  #allocation0 [shape = 'u32[]', space=smem, size = 0x4, offset = 0x4, fixed_abs, tag = 'smem constant byte address 0x4 - core index']
  #allocation1 [shape = 'u32[144,128]{1,0:T(1,128)}', space=vmem, size = 0x12000, scoped, tag = 'internal scratch']
  %s0 = inlined_call_operand.vmem [shape: f32[1,32,8], index: 0, kind: input, shape index: {}]
  %s1 = inlined_call_operand.vmem [shape: f32[1,1,8], index: 1, kind: input, shape index: {}]
  %s2 = inlined_call_operand.vmem [shape: f32[1,1,8], index: 2, kind: input, shape index: {}]
  %s3 = inlined_call_operand.vmem [shape: f32[1,32,8], index: 3, kind: output, shape index: {}]
  %s4 = sld [smem:[#allocation0]]
  $region22: #{_lambda_.14} parent=0
    _
  %s6 = ssub.s32 1, %s4
  %s7 = scalar_select 0, %s6, %s4
  // Predicated region
  $region2: #{_lambda_.14} parent=0 // pred_check
    _
  $region3: #{_lambda_.14} parent=0 // pred_check_branch
    %9 = sbr.rel (0) target = $region5
  $region4: #{_lambda_.14} parent=0 // pred_region
    _
  $region5: #{_lambda_.14} parent=0 // pred_fallthru
    _
  // Predicated region
  $region6: #{_lambda_.14} parent=0 // pred_check
    _
  $region7: #{_lambda_.14} parent=0 // pred_check_branch
    %11 = sbr.rel (0) target = $region9
  $region8: #{_lambda_.14} parent=0 // pred_region
    _
  $region9: #{_lambda_.14} parent=0 // pred_fallthru
    _
  // Predicated region
  $region10: #{_lambda_.14} parent=0 // pred_check
    _
  $region11: #{_lambda_.14} parent=0 // pred_check_branch
    %13 = sbr.rel (0) target = $region13
  $region12: #{_lambda_.14} parent=0 // pred_region
    _
  $region13: #{_lambda_.14} parent=0 // pred_fallthru
    _
  %v14 = vld [vmem:[%s0] sm:$0xff]
  %v15 = vld [vmem:[%s0 + $0x8] sm:$0xff]
  %v16 = vld [vmem:[%s0 + $0x10] sm:$0xff]
  %v17 = vld [vmem:[%s0 + $0x18] sm:$0xff]
  %vm18 = vcmask 64512
  %v19 = vsel %vm18, %v14, 0.0
  %v20 = vsel %vm18, %v15, 0.0
  %v21 = vadd.f32 %v19, %v20
  %v22 = vsel %vm18, %v16, 0.0
  %v23 = vadd.f32 %v21, %v22
  %v24 = vsel %vm18, %v17, 0.0
  %v25 = vadd.f32 %v23, %v24
  %v26 = vrot.slane %v25, 4
  %v27 = vadd.f32 %v25, %v26
  %v28 = vrot.slane %v27, 2
  %v29 = vadd.f32 %v27, %v28
  %v30 = vrot.slane %v29, 1
  %v31 = vadd.f32 %v29, %v30
  %v32 = vmul.f32 %v31, 0.03125
  %v33 = vsub.f32 %v14, %v32
  %v34 = vsub.f32 %v15, %v32
  %v35 = vsub.f32 %v16, %v32
  %v36 = vsub.f32 %v17, %v32
  %v37 = vmul.f32 %v33, %v33
  %v38 = vmul.f32 %v34, %v34
  %v39 = vmul.f32 %v35, %v35
  %v40 = vmul.f32 %v36, %v36
  %v41 = vsel %vm18, %v37, 0.0
  %v42 = vsel %vm18, %v38, 0.0
  %v43 = vadd.f32 %v41, %v42
  %v44 = vsel %vm18, %v39, 0.0
  %v45 = vadd.f32 %v43, %v44
  %v46 = vsel %vm18, %v40, 0.0
  %v47 = vadd.f32 %v45, %v46
  %v48 = vrot.slane %v47, 4
  %v49 = vadd.f32 %v47, %v48
  %v50 = vrot.slane %v49, 2
  %v51 = vadd.f32 %v49, %v50
  %v52 = vrot.slane %v51, 1
  %v53 = vadd.f32 %v51, %v52
  %v54 = vmul.f32 %v53, 0.03125
  %v55 = vadd.f32 %v54, 1e-05
  %v56 = vrsqrt.pop %v55
  %v57 = vmul.f32 %v33, %v56
  %v58 = vmul.f32 %v34, %v56
  %v59 = vmul.f32 %v35, %v56
  %v60 = vmul.f32 %v36, %v56
  %v61 = vld [vmem:[%s1] sm:$0x1]
  %v63 = vlaneseq
  %v64 = vshrl.u32 %v63, 7
  %v65 = vsub.s32 0, %v64
  %v66 = vrot.slane %v61, %v65
  %v68 = vmul.f32 %v57, %v66
  %v69 = vmul.f32 %v58, %v66
  %v70 = vmul.f32 %v59, %v66
  %v71 = vmul.f32 %v60, %v66
  %v72 = vld [vmem:[%s2] sm:$0x1]
  %v74 = vlaneseq
  %v75 = vshrl.u32 %v74, 7
  %v76 = vsub.s32 0, %v75
  %v77 = vrot.slane %v72, %v76
  %v79 = vadd.f32 %v68, %v77
  %v80 = vadd.f32 %v69, %v77
  %v81 = vadd.f32 %v70, %v77
  %v82 = vadd.f32 %v71, %v77
  %v83 = vmax.f32 %v79, 0.0
  %v84 = vmax.f32 %v80, 0.0
  %v85 = vmax.f32 %v81, 0.0
  %v86 = vmax.f32 %v82, 0.0
  %87 = vst.msk [vmem:[%s3] sm:$0xff] %vm18, %v83
  %88 = vst.msk [vmem:[%s3 + $0x8] sm:$0xff] %vm18, %v84
  %89 = vst.msk [vmem:[%s3 + $0x10] sm:$0xff] %vm18, %v85
  %90 = vst.msk [vmem:[%s3 + $0x18] sm:$0xff] %vm18, %v86
  // Predicated region
  $region14: #{_lambda_.14} parent=0 // pred_check
    _
  $region15: #{_lambda_.14} parent=0 // pred_check_branch
    %92 = sbr.rel (0) target = $region17
  $region16: #{_lambda_.14} parent=0 // pred_region
    _
  $region17: #{_lambda_.14} parent=0 // pred_fallthru
    _
  // Predicated region
  $region18: #{_lambda_.14} parent=0 // pred_check
    _
  $region19: #{_lambda_.14} parent=0 // pred_check_branch
    %94 = sbr.rel (0) target = $region21
  $region20: #{_lambda_.14} parent=0 // pred_region
    _
  $region21: #{_lambda_.14} parent=0 // pred_fallthru
    _

// kernel: _lambda_.12
$region0: #{_lambda_.12}
  #allocation0 [shape = 'u32[]', space=smem, size = 0x4, offset = 0x4, fixed_abs, tag = 'smem constant byte address 0x4 - core index']
  #allocation1 [shape = 'u32[144,128]{1,0:T(1,128)}', space=vmem, size = 0x12000, scoped, tag = 'internal scratch']
  %s0 = inlined_call_operand.vmem [shape: bf16[2,4], index: 0, kind: input, shape index: {}]
  %s1 = inlined_call_operand.vmem [shape: bf16[4,128], index: 1, kind: input, shape index: {}]
  %s2 = inlined_call_operand.vmem [shape: f32[2,128], index: 2, kind: output, shape index: {}]
  %s3 = sld [smem:[#allocation0]]
  $region48: #{_lambda_.12} parent=0
    _
  %s5 = ssub.s32 1, %s3
  %s6 = scalar_select 0, %s5, %s3
  $region1: #{_lambda_.12} parent=0
    #allocation2 [shape = 'u8[4096]{0}', space=vmem, size = 0x1000, scoped, tag = 'output window, operand 0, single buffered']
    // Predicated region
    $region2: #{_lambda_.12} parent=1 // pred_check
      _
    $region3: #{_lambda_.12} parent=1 // pred_check_branch
      %8 = sbr.rel (0) target = $region5
    $region4: #{_lambda_.12} parent=1 // pred_region
      _
    $region5: #{_lambda_.12} parent=1 // pred_fallthru
      _
    // Predicated region
    $region6: #{_lambda_.12} parent=1 // pred_check
      _
    $region7: #{_lambda_.12} parent=1 // pred_check_branch
      %10 = sbr.rel (0) target = $region9
    $region8: #{_lambda_.12} parent=1 // pred_region
      _
    $region9: #{_lambda_.12} parent=1 // pred_fallthru
      _
    %v12 = vld [vmem:[%s0] sm:$0x1]
    %v13 = vld [vmem:[%s0 + $0x1] sm:$0x1]
    %v14 = vld [vmem:[%s0 + $0x2] sm:$0x1]
    %v15 = vld [vmem:[%s0 + $0x3] sm:$0x1]
    %v16 = vld [vmem:[%s1] sm:$0x3]
    %v21 = vcombine.low %v12, %v13
    %v22 = vcombine.low %v14, %v15
    %v24 = vunpack.c.l.s4 1966171168
    %v25 = vunpack.c.0.s8 %v24
    %v26 = vlaneseq
    %v27 = vshrl.u32 %v26, 7
    %v28 = vsub.s32 %v25, %v27
    %v29 = vrot.slane %v21, %v28
    %v31 = vunpack.c.l.s4 1966171168
    %v32 = vunpack.c.0.s8 %v31
    %v33 = vlaneseq
    %v34 = vshrl.u32 %v33, 7
    %v35 = vsub.s32 %v32, %v34
    %v36 = vrot.slane %v22, %v35
    %v37 = vcombine.low %v29, %v36
    %v39 = vunpack.c.l.s4 1966171168
    %v40 = vunpack.c.0.s8 %v39
    %v41 = vlaneseq
    %v42 = vshrl.u32 %v41, 7
    %v43 = vsub.s32 %v40, %v42
    %v44 = vrot.slane %v37, %v43
    %vm45 = vcmask 31744
    %v47 = vsel %vm45, %v44, 0
    %vm49 = vcmask 1041408
    %v51 = vsel %vm49, %v16, 0
    %53 = vmatprep.subr.bf16.mxu0 0
    %54 = vmatpush1.bf16.msra.mxu0 %v51
    %55 = vmatprep.subr.bf16.mxu0 0
    %56 = vmatpush1.bf16.msra.mxu0 0
    %57 = vmatprep.subr.bf16.mxu0 0
    %58 = vmatpush1.bf16.msra.mxu0 0
    %59 = vmatprep.subr.bf16.mxu0 0
    %60 = vmatpush1.bf16.msra.mxu0 0
    %61 = vmatprep.subr.bf16.mxu0 0
    %62 = vmatpush1.bf16.msra.mxu0 0
    %63 = vmatprep.subr.bf16.mxu0 0
    %64 = vmatpush1.bf16.msra.mxu0 0
    %65 = vmatprep.subr.bf16.mxu0 0
    %66 = vmatpush1.bf16.msra.mxu0 0
    %67 = vmatprep.subr.bf16.mxu0 0
    %68 = vmatpush1.bf16.msra.mxu0 0
    %69 = vmatprep.subr.bf16.mxu0 0
    %70 = vmatpush1.bf16.msra.mxu0 0
    %71 = vmatprep.subr.bf16.mxu0 0
    %72 = vmatpush1.bf16.msra.mxu0 0
    %73 = vmatprep.subr.bf16.mxu0 0
    %74 = vmatpush1.bf16.msra.mxu0 0
    %75 = vmatprep.subr.bf16.mxu0 0
    %76 = vmatpush1.bf16.msra.mxu0 0
    %77 = vmatprep.subr.bf16.mxu0 0
    %78 = vmatpush1.bf16.msra.mxu0 0
    %79 = vmatprep.subr.bf16.mxu0 0
    %80 = vmatpush1.bf16.msra.mxu0 0
    %81 = vmatprep.subr.bf16.mxu0 0
    %82 = vmatpush1.bf16.msra.mxu0 0
    %83 = vmatprep.subr.bf16.mxu0 0
    %84 = vmatpush1.bf16.msra.mxu0 0
    %85 = vmatprep.mubr.bf16.mxu0 0
    %86 = vmatmul.mubr.bf16.gmra.mrb[0].mxu0 %v47
    %v87 = vpop.f32.mrb[0].mxu0
    %v88 = vadd.f32 0.0, %v87
    %v89 = vpop.f32.mrb[0].mxu0
    %v90 = vpop.f32.mrb[0].mxu0
    %v91 = vpop.f32.mrb[0].mxu0
    %92 = vdwg.mxu0
    %93 = vst [vmem:[#allocation2] sm:$0xff] %v88
    // Predicated region
    $region10: #{_lambda_.12} parent=1 // pred_check
      _
    $region11: #{_lambda_.12} parent=1 // pred_check_branch
      %95 = sbr.rel (0) target = $region13
    $region12: #{_lambda_.12} parent=1 // pred_region
      // Predicated region
      $region14: #{_lambda_.12} parent=12 // pred_check
        _
      $region15: #{_lambda_.12} parent=12 // pred_check_branch
        %97 = sbr.rel (0) target = $region17
      $region16: #{_lambda_.12} parent=12 // pred_region
        // Predicated region
        $region18: #{_lambda_.12} parent=16 // pred_check
          _
        $region19: #{_lambda_.12} parent=16 // pred_check_branch
          %99 = sbr.rel target = $region21
        $region20: #{_lambda_.12} parent=16 // pred_region
          // Predicated region
          $region33: #{_lambda_.12} parent=20 // pred_check
            _
          $region34: #{_lambda_.12} parent=20 // pred_check_branch
            %114 = sbr.rel (0) target = $region36
          $region35: #{_lambda_.12} parent=20 // pred_region
            loop: start=0, step=1, limit=1
            $region37: #{_lambda_.12} parent=35 // loop_pre_header
              _
            $region38: #{_lambda_.12} parent=35 // loop_header
              %s117 = sphi 0, %s121
              %p118 = scmp.ge.s32.totalorder %s117, 1
              %s122 = sphi [#allocation2], [#allocation2]
              %s123 = sphi %s2, %s2
            $region39: #{_lambda_.12} parent=35 // loop_header_branch
              %120 = sbr.rel (%p118) target = $region43
            $region40: #{_lambda_.12} parent=35 // loop_body
              %v124 = vld [vmem:[%s122] sm:$0x3]
              %125 = vst [vmem:[%s123] sm:$0x3] %v124
            $region41: #{_lambda_.12} parent=35 // loop_footer
              %s121 = sadd.s32 1, %s117
            $region42: #{_lambda_.12} parent=35 // loop_footer_branch
              %116 = sbr.rel target = $region38
            $region43: #{_lambda_.12} parent=35 // loop_exit
              _
          $region36: #{_lambda_.12} parent=20 // pred_fallthru
            _
        $region21: #{_lambda_.12} parent=16 // pred_fallthru
          _
        // Predicated region
        $region22: #{_lambda_.12} parent=16 // pred_check
          _
        $region23: #{_lambda_.12} parent=16 // pred_check_branch
          %101 = sbr.rel (0) target = $region25
        $region24: #{_lambda_.12} parent=16 // pred_region
          loop: start=0, step=1, limit=1
          $region26: #{_lambda_.12} parent=24 // loop_pre_header
            _
          $region27: #{_lambda_.12} parent=24 // loop_header
            %s104 = sphi 0, %s108
            %p105 = scmp.ge.s32.totalorder %s104, 1
            %s109 = sphi [#allocation2], [#allocation2]
            %s110 = sphi %s2, %s2
          $region28: #{_lambda_.12} parent=24 // loop_header_branch
            %107 = sbr.rel (%p105) target = $region32
          $region29: #{_lambda_.12} parent=24 // loop_body
            %v111 = vld [vmem:[%s109] sm:$0x3]
            %112 = vst [vmem:[%s110] sm:$0x3] %v111
          $region30: #{_lambda_.12} parent=24 // loop_footer
            %s108 = sadd.s32 1, %s104
          $region31: #{_lambda_.12} parent=24 // loop_footer_branch
            %103 = sbr.rel target = $region27
          $region32: #{_lambda_.12} parent=24 // loop_exit
            _
        $region25: #{_lambda_.12} parent=16 // pred_fallthru
          _
      $region17: #{_lambda_.12} parent=12 // pred_fallthru
        _
      %126 = vnop
    $region13: #{_lambda_.12} parent=1 // pred_fallthru
      _
    // Predicated region
    $region44: #{_lambda_.12} parent=1 // pred_check
      _
    $region45: #{_lambda_.12} parent=1 // pred_check_branch
      %128 = sbr.rel (0) target = $region47
    $region46: #{_lambda_.12} parent=1 // pred_region
      _
    $region47: #{_lambda_.12} parent=1 // pred_fallthru
      _

// kernel: _lambda_.16
$region0: #{_lambda_.16}
  #allocation0 [shape = 'u32[]', space=smem, size = 0x4, offset = 0x4, fixed_abs, tag = 'smem constant byte address 0x4 - core index']
  #allocation1 [shape = 'u32[144,128]{1,0:T(1,128)}', space=vmem, size = 0x12000, scoped, tag = 'internal scratch']
  %s0 = inlined_call_operand.vmem [shape: bf16[32,8], index: 0, kind: input, shape index: {}]
  %s1 = inlined_call_operand.vmem [shape: bf16[8,64], index: 1, kind: input, shape index: {}]
  %s2 = inlined_call_operand.vmem [shape: f32[32,64], index: 2, kind: output, shape index: {}]
  %s3 = sld [smem:[#allocation0]]
  $region18: #{_lambda_.16} parent=0
    _
  %s5 = ssub.s32 1, %s3
  %s6 = scalar_select 0, %s5, %s3
  // Predicated region
  $region2: #{_lambda_.16} parent=0 // pred_check
    _
  $region3: #{_lambda_.16} parent=0 // pred_check_branch
    %8 = sbr.rel (0) target = $region5
  $region4: #{_lambda_.16} parent=0 // pred_region
    _
  $region5: #{_lambda_.16} parent=0 // pred_fallthru
    _
  // Predicated region
  $region6: #{_lambda_.16} parent=0 // pred_check
    _
  $region7: #{_lambda_.16} parent=0 // pred_check_branch
    %10 = sbr.rel (0) target = $region9
  $region8: #{_lambda_.16} parent=0 // pred_region
    _
  $region9: #{_lambda_.16} parent=0 // pred_fallthru
    _
  %v12 = vld [vmem:[%s0] sm:$0xf]
  %v13 = vld [vmem:[%s0 + $0x4] sm:$0xf]
  %v14 = vld [vmem:[%s0 + $0x8] sm:$0xf]
  %v15 = vld [vmem:[%s0 + $0xc] sm:$0xf]
  %v16 = vld [vmem:[%s1] sm:$0xf]
  %v21 = vunpack.c.l.b16 %v12
  %v22 = vunpack.c.l.b16 %v13
  %v23 = vunpack.c.l.b16 %v14
  %v24 = vunpack.c.l.b16 %v15
  %v25 = vpack.c.b16 %v22, %v21
  %v26 = vpack.c.b16 %v24, %v23
  %vm27 = vcmask 64512
  %v29 = vsel %vm27, %v25, 0
  %v32 = vsel %vm27, %v26, 0
  %vm34 = vcmask 1043456
  %v36 = vsel %vm34, %v16, 0
  %38 = vmatprep.subr.bf16.mxu0 0
  %39 = vmatpush1.bf16.msra.mxu0 %v36
  %40 = vmatprep.subr.bf16.mxu0 0
  %41 = vmatpush1.bf16.msra.mxu0 0
  %42 = vmatprep.subr.bf16.mxu0 0
  %43 = vmatpush1.bf16.msra.mxu0 0
  %44 = vmatprep.subr.bf16.mxu0 0
  %45 = vmatpush1.bf16.msra.mxu0 0
  %46 = vmatprep.subr.bf16.mxu0 0
  %47 = vmatpush1.bf16.msra.mxu0 0
  %48 = vmatprep.subr.bf16.mxu0 0
  %49 = vmatpush1.bf16.msra.mxu0 0
  %50 = vmatprep.subr.bf16.mxu0 0
  %51 = vmatpush1.bf16.msra.mxu0 0
  %52 = vmatprep.subr.bf16.mxu0 0
  %53 = vmatpush1.bf16.msra.mxu0 0
  %54 = vmatprep.subr.bf16.mxu0 0
  %55 = vmatpush1.bf16.msra.mxu0 0
  %56 = vmatprep.subr.bf16.mxu0 0
  %57 = vmatpush1.bf16.msra.mxu0 0
  %58 = vmatprep.subr.bf16.mxu0 0
  %59 = vmatpush1.bf16.msra.mxu0 0
  %60 = vmatprep.subr.bf16.mxu0 0
  %61 = vmatpush1.bf16.msra.mxu0 0
  %62 = vmatprep.subr.bf16.mxu0 0
  %63 = vmatpush1.bf16.msra.mxu0 0
  %64 = vmatprep.subr.bf16.mxu0 0
  %65 = vmatpush1.bf16.msra.mxu0 0
  %66 = vmatprep.subr.bf16.mxu0 0
  %67 = vmatpush1.bf16.msra.mxu0 0
  %68 = vmatprep.subr.bf16.mxu0 0
  %69 = vmatpush1.bf16.msra.mxu0 0
  %70 = vmatprep.mubr.bf16.mxu0 0
  %71 = vmatmul.mubr.bf16.gmra.mrb[0].mxu0 %v29
  %v72 = vpop.f32.mrb[0].mxu0
  %v73 = vadd.f32 0.0, %v72
  %v74 = vpop.f32.mrb[0].mxu0
  %v75 = vpop.f32.mrb[0].mxu0
  %v76 = vadd.f32 0.0, %v75
  %v77 = vpop.f32.mrb[0].mxu0
  %78 = vmatprep.mubr.bf16.mxu0 0
  %79 = vmatmul.mubr.bf16.gmra.mrb[0].mxu0 %v32
  %v80 = vpop.f32.mrb[0].mxu0
  %v81 = vadd.f32 0.0, %v80
  %v82 = vpop.f32.mrb[0].mxu0
  %v83 = vpop.f32.mrb[0].mxu0
  %v84 = vadd.f32 0.0, %v83
  %v85 = vpop.f32.mrb[0].mxu0
  %86 = vdwg.mxu0
  %vm87 = vcmask 523264
  %88 = vst.msk [vmem:[%s2] sm:$0xff] %vm87, %v73
  %89 = vst.msk [vmem:[%s2 + $0x8] sm:$0xff] %vm87, %v76
  %90 = vst.msk [vmem:[%s2 + $0x10] sm:$0xff] %vm87, %v81
  %91 = vst.msk [vmem:[%s2 + $0x18] sm:$0xff] %vm87, %v84
  // Predicated region
  $region10: #{_lambda_.16} parent=0 // pred_check
    _
  $region11: #{_lambda_.16} parent=0 // pred_check_branch
    %93 = sbr.rel (0) target = $region13
  $region12: #{_lambda_.16} parent=0 // pred_region
    _
  $region13: #{_lambda_.16} parent=0 // pred_fallthru
    _
  // Predicated region
  $region14: #{_lambda_.16} parent=0 // pred_check
    _
  $region15: #{_lambda_.16} parent=0 // pred_check_branch
    %95 = sbr.rel (0) target = $region17
  $region16: #{_lambda_.16} parent=0 // pred_region
    _
  $region17: #{_lambda_.16} parent=0 // pred_fallthru
    _

// kernel: _lambda_.13
$region0: #{_lambda_.13}
  #allocation0 [shape = 'u32[]', space=smem, size = 0x4, offset = 0x4, fixed_abs, tag = 'smem constant byte address 0x4 - core index']
  #allocation1 [shape = 'u32[144,128]{1,0:T(1,128)}', space=vmem, size = 0x12000, scoped, tag = 'internal scratch']
  %s0 = inlined_call_operand.vmem [shape: bf16[2,4], index: 0, kind: input, shape index: {}]
  %s1 = inlined_call_operand.vmem [shape: bf16[2,2,4], index: 1, kind: input, shape index: {}]
  %s2 = inlined_call_operand.vmem [shape: bf16[2,4,128], index: 2, kind: input, shape index: {}]
  %s3 = inlined_call_operand.vmem [shape: bf16[2,4,128], index: 3, kind: input, shape index: {}]
  %s4 = inlined_call_operand.vmem [shape: f32[2,2,128], index: 4, kind: output, shape index: {}]
  %s5 = sld [smem:[#allocation0]]
  $region79: #{_lambda_.13} parent=0
    _
  %s7 = ssub.s32 1, %s5
  %s8 = scalar_select 0, %s7, %s5
  $region1: #{_lambda_.13} parent=0
    #allocation2 [shape = 'u8[8192]{0}', space=vmem, size = 0x2000, scoped, tag = 'output window, operand 0']
    loop: start=0, step=1, limit=4
    $region2: #{_lambda_.13} parent=1 // loop_pre_header
      _
    $region3: #{_lambda_.13} parent=1 // loop_header
      %s10 = sphi 0, %s14
      %p11 = scmp.ge.s32.totalorder %s10, 4
      %s17 = sphi 0, %s36
      %s18 = sphi 0, %s32
      %s19 = sphi 0, %s28
      %s20 = sphi 0, %s17
      %s21 = sphi 0, %s18
      %s22 = sphi 0, %s19
      %s23 = sphi 0, %s20
      %s24 = sphi 0, %s21
      %s25 = sphi 0, %s22
      %s39 = sphi 0, %s41
      %s42 = sphi 0, %s39
      %s43 = sphi 0, %s42
      %s59 = sphi 0, %s43
      %s67 = sphi 0, %s69
      %s70 = sphi 0, %s67
      %s71 = sphi 0, %s70
      %s87 = sphi 0, %s71
      %s95 = sphi 0, %s97
      %s98 = sphi 0, %s95
      %s99 = sphi 0, %s98
      %s115 = sphi 0, %s99
      %s123 = sphi 0, %s125
      %s126 = sphi 0, %s123
      %s127 = sphi 0, %s126
      %s143 = sphi 0, %s127
      %s153 = sphi 0, %s155
      %s156 = sphi 0, %s153
      %s157 = sphi 0, %s156
      %s173 = sphi 0, %s157
    $region4: #{_lambda_.13} parent=1 // loop_header_branch
      %13 = sbr.rel (%p11) target = $region8
    $region5: #{_lambda_.13} parent=1 // loop_body
      %s15 = ssub.s32 %s10, 1
      %s16 = ssub.s32 %s10, 2
      %s26 = sadd.s32 1, %s19
      %p27 = scmp.ge.s32.totalorder %s26, 1
      %s28 = scalar_select %p27, 0, %s26
      %s29 = sadd.s32 1, %s18
      %s30 = scalar_select %p27, %s29, %s18
      %p31 = scmp.ge.s32.totalorder %s30, 1
      %s32 = scalar_select %p31, 0, %s30
      %s33 = sadd.s32 1, %s17
      %s34 = scalar_select %p31, %s33, %s17
      %p35 = scmp.ge.s32.totalorder %s34, 2
      %s36 = scalar_select %p35, 0, %s34
      %s37 = ssub.s32 %s18, %s32
      %p38 = scmp.eq.s32.totalorder %s37, 0
      %s40 = sadd.s32 %s39, 1
      %s41 = scalar_select %p38, %s39, %s40
      %p44 = pneg %p38
      %p45 = scmp.eq.s32.totalorder %s10, 1
      %p46 = por %p44, %p45
      %p47 = scmp.ne.s32.totalorder %s39, %s42
      %p48 = scmp.eq.s32.totalorder %s10, 0
      %p49 = por %p47, %p48
      %p50 = scmp.ne.s32.totalorder %s39, %s42
      %p51 = scmp.eq.s32.totalorder %s15, 1
      %p52 = por %p50, %p51
      %p53 = scmp.ne.s32.totalorder %s42, %s43
      %p54 = scmp.eq.s32.totalorder %s15, 0
      %p55 = por %p53, %p54
      %p56 = scmp.ne.s32.totalorder %s42, %s43
      %p57 = scmp.eq.s32.totalorder %s16, 1
      %p58 = por %p56, %p57
      %p60 = scmp.ne.s32.totalorder %s43, %s59
      %p61 = scmp.eq.s32.totalorder %s16, 0
      %p62 = por %p60, %p61
      %s63 = ssub.s32 %s17, %s36
      %s64 = ssub.s32 %s18, %s32
      %s65 = sor.u32 %s63, %s64
      %p66 = scmp.eq.s32.totalorder %s65, 0
      %s68 = sadd.s32 %s67, 1
      %s69 = scalar_select %p66, %s67, %s68
      %p72 = pneg %p66
      %p73 = scmp.eq.s32.totalorder %s10, 1
      %p74 = por %p72, %p73
      %p75 = scmp.ne.s32.totalorder %s67, %s70
      %p76 = scmp.eq.s32.totalorder %s10, 0
      %p77 = por %p75, %p76
      %p78 = scmp.ne.s32.totalorder %s67, %s70
      %p79 = scmp.eq.s32.totalorder %s15, 1
      %p80 = por %p78, %p79
      %p81 = scmp.ne.s32.totalorder %s70, %s71
      %p82 = scmp.eq.s32.totalorder %s15, 0
      %p83 = por %p81, %p82
      %p84 = scmp.ne.s32.totalorder %s70, %s71
      %p85 = scmp.eq.s32.totalorder %s16, 1
      %p86 = por %p84, %p85
      %p88 = scmp.ne.s32.totalorder %s71, %s87
      %p89 = scmp.eq.s32.totalorder %s16, 0
      %p90 = por %p88, %p89
      %s91 = ssub.s32 %s17, %s36
      %s92 = ssub.s32 %s19, %s28
      %s93 = sor.u32 %s91, %s92
      %p94 = scmp.eq.s32.totalorder %s93, 0
      %s96 = sadd.s32 %s95, 1
      %s97 = scalar_select %p94, %s95, %s96
      %p100 = pneg %p94
      %p101 = scmp.eq.s32.totalorder %s10, 1
      %p102 = por %p100, %p101
      %p103 = scmp.ne.s32.totalorder %s95, %s98
      %p104 = scmp.eq.s32.totalorder %s10, 0
      %p105 = por %p103, %p104
      %p106 = scmp.ne.s32.totalorder %s95, %s98
      %p107 = scmp.eq.s32.totalorder %s15, 1
      %p108 = por %p106, %p107
      %p109 = scmp.ne.s32.totalorder %s98, %s99
      %p110 = scmp.eq.s32.totalorder %s15, 0
      %p111 = por %p109, %p110
      %p112 = scmp.ne.s32.totalorder %s98, %s99
      %p113 = scmp.eq.s32.totalorder %s16, 1
      %p114 = por %p112, %p113
      %p116 = scmp.ne.s32.totalorder %s99, %s115
      %p117 = scmp.eq.s32.totalorder %s16, 0
      %p118 = por %p116, %p117
      %s119 = ssub.s32 %s17, %s36
      %s120 = ssub.s32 %s19, %s28
      %s121 = sor.u32 %s119, %s120
      %p122 = scmp.eq.s32.totalorder %s121, 0
      %s124 = sadd.s32 %s123, 1
      %s125 = scalar_select %p122, %s123, %s124
      %p128 = pneg %p122
      %p129 = scmp.eq.s32.totalorder %s10, 1
      %p130 = por %p128, %p129
      %p131 = scmp.ne.s32.totalorder %s123, %s126
      %p132 = scmp.eq.s32.totalorder %s10, 0
      %p133 = por %p131, %p132
      %p134 = scmp.ne.s32.totalorder %s123, %s126
      %p135 = scmp.eq.s32.totalorder %s15, 1
      %p136 = por %p134, %p135
      %p137 = scmp.ne.s32.totalorder %s126, %s127
      %p138 = scmp.eq.s32.totalorder %s15, 0
      %p139 = por %p137, %p138
      %p140 = scmp.ne.s32.totalorder %s126, %s127
      %p141 = scmp.eq.s32.totalorder %s16, 1
      %p142 = por %p140, %p141
      %p144 = scmp.ne.s32.totalorder %s127, %s143
      %p145 = scmp.eq.s32.totalorder %s16, 0
      %p146 = por %p144, %p145
      %s147 = ssub.s32 %s17, %s36
      %s148 = ssub.s32 %s18, %s32
      %s149 = sor.u32 %s147, %s148
      %s150 = ssub.s32 %s19, %s28
      %s151 = sor.u32 %s149, %s150
      %p152 = scmp.eq.s32.totalorder %s151, 0
      %s154 = sadd.s32 %s153, 1
      %s155 = scalar_select %p152, %s153, %s154
      %p158 = pneg %p152
      %p159 = scmp.eq.s32.totalorder %s10, 1
      %p160 = por %p158, %p159
      %p161 = scmp.ne.s32.totalorder %s153, %s156
      %p162 = scmp.eq.s32.totalorder %s10, 0
      %p163 = por %p161, %p162
      %p164 = scmp.ne.s32.totalorder %s153, %s156
      %p165 = scmp.eq.s32.totalorder %s15, 1
      %p166 = por %p164, %p165
      %p167 = scmp.ne.s32.totalorder %s156, %s157
      %p168 = scmp.eq.s32.totalorder %s15, 0
      %p169 = por %p167, %p168
      %p170 = scmp.ne.s32.totalorder %s156, %s157
      %p171 = scmp.eq.s32.totalorder %s16, 1
      %p172 = por %p170, %p171
      %p174 = scmp.ne.s32.totalorder %s157, %s173
      %p175 = scmp.eq.s32.totalorder %s16, 0
      %p176 = por %p174, %p175
      %p177 = scmp.le.s32.totalorder 1, %s10
      %p178 = scmp.lt.s32.totalorder %s10, 3
      %p179 = pnand %p177, %p178
      %p180 = pneg %p179
      // Predicated region
      $region9: #{_lambda_.13} parent=5 // pred_check
        _
      $region10: #{_lambda_.13} parent=5 // pred_check_branch
        %182 = sbr.rel (%p179) target = $region12
      $region11: #{_lambda_.13} parent=5 // pred_region
        %s183 = ssub.s32 %s10, 1
        // Predicated region
        $region13: #{_lambda_.13} parent=11 // pred_check
          %p184 = pneg %p55
        $region14: #{_lambda_.13} parent=11 // pred_check_branch
          %186 = sbr.rel (%p184) target = $region16
        $region15: #{_lambda_.13} parent=11 // pred_region
          %s187 = smul.u32 4, %s21
          %s188 = ssub.s32 1, %s187
          %s189 = smul.u32 16, %s188
          %p190 = scmp.lt.s32.totalorder %s187, 0
          %s191 = scalar_select %p190, %s187, 0
          %s192 = scalar_lea.vmem %s0, %s191
          %s193 = smul.u32 4, %s21
          %s194 = ssub.s32 1, %s193
          %s195 = smul.u32 16, %s194
        $region16: #{_lambda_.13} parent=11 // pred_fallthru
          _
      $region12: #{_lambda_.13} parent=5 // pred_fallthru
        _
      %p196 = scmp.lt.s32.totalorder %s10, 2
      // Predicated region
      $region17: #{_lambda_.13} parent=5 // pred_check
        %p197 = pneg %p196
      $region18: #{_lambda_.13} parent=5 // pred_check_branch
        %199 = sbr.rel (%p197) target = $region20
      $region19: #{_lambda_.13} parent=5 // pred_region
        // Predicated region
        $region21: #{_lambda_.13} parent=19 // pred_check
          %p200 = pneg %p77
        $region22: #{_lambda_.13} parent=19 // pred_check_branch
          %202 = sbr.rel (%p200) target = $region24
        $region23: #{_lambda_.13} parent=19 // pred_region
          %s203 = smul.u32 4, %s18
          %s204 = ssub.s32 1, %s203
          %s205 = smul.u32 16, %s204
          %p206 = scmp.lt.s32.totalorder %s17, 1
          %s207 = scalar_select %p206, %s17, 1
          %p208 = scmp.lt.s32.totalorder %s203, 0
          %s209 = scalar_select %p208, %s203, 0
          %s210 = sadd.s32 %s209, %s207
          %s211 = scalar_lea.vmem %s1, %s210
          %s212 = smul.u32 4, %s18
          %s213 = ssub.s32 1, %s212
          %s214 = smul.u32 16, %s213
        $region24: #{_lambda_.13} parent=19 // pred_fallthru
          _
        // Predicated region
        $region25: #{_lambda_.13} parent=19 // pred_check
          %p215 = pneg %p105
        $region26: #{_lambda_.13} parent=19 // pred_check_branch
          %217 = sbr.rel (%p215) target = $region28
        $region27: #{_lambda_.13} parent=19 // pred_region
          %p218 = scmp.lt.s32.totalorder %s17, 1
          %s219 = scalar_select %p218, %s17, 1
          %p220 = scmp.lt.s32.totalorder %s19, 0
          %s221 = scalar_select %p220, %s19, 0
          %s222 = sadd.s32 %s221, %s219
          %s223 = smul.addr %s222, 2
          %s224 = scalar_lea.vmem %s2, %s223
        $region28: #{_lambda_.13} parent=19 // pred_fallthru
          _
        // Predicated region
        $region29: #{_lambda_.13} parent=19 // pred_check
          %p225 = pneg %p133
        $region30: #{_lambda_.13} parent=19 // pred_check_branch
          %227 = sbr.rel (%p225) target = $region32
        $region31: #{_lambda_.13} parent=19 // pred_region
          %p228 = scmp.lt.s32.totalorder %s17, 1
          %s229 = scalar_select %p228, %s17, 1
          %p230 = scmp.lt.s32.totalorder %s19, 0
          %s231 = scalar_select %p230, %s19, 0
          %s232 = sadd.s32 %s231, %s229
          %s233 = smul.addr %s232, 2
          %s234 = scalar_lea.vmem %s3, %s233
        $region32: #{_lambda_.13} parent=19 // pred_fallthru
          _
      $region20: #{_lambda_.13} parent=5 // pred_fallthru
        _
      %p235 = scmp.le.s32.totalorder 1, %s10
      %p236 = scmp.lt.s32.totalorder %s10, 3
      %p237 = pnand %p235, %p236
      %p238 = pneg %p237
      // Predicated region
      $region33: #{_lambda_.13} parent=5 // pred_check
        _
      $region34: #{_lambda_.13} parent=5 // pred_check_branch
        %240 = sbr.rel (%p237) target = $region36
      $region35: #{_lambda_.13} parent=5 // pred_region
        %s241 = ssub.s32 %s10, 1
        %s242 = smul.u32 4, %s21
        %s243 = ssub.s32 1, %s242
        %s244 = smul.u32 16, %s243
        %p245 = scmp.lt.s32.totalorder %s242, 0
        %s246 = scalar_select %p245, %s242, 0
        %s247 = scalar_lea.vmem %s0, %s246
        %p248 = pneg %p55
        %p249 = pneg %p52
        %s250 = smul.u32 4, %s21
        %s251 = ssub.s32 1, %s250
        %s252 = smul.u32 16, %s251
        %p253 = scmp.lt.s32.totalorder %s20, 1
        %s254 = scalar_select %p253, %s20, 1
        %p255 = scmp.lt.s32.totalorder %s250, 0
        %s256 = scalar_select %p255, %s250, 0
        %s257 = sadd.s32 %s256, %s254
        %s258 = scalar_lea.vmem %s1, %s257
        %p259 = pneg %p83
        %p260 = pneg %p80
        %p261 = scmp.lt.s32.totalorder %s20, 1
        %s262 = scalar_select %p261, %s20, 1
        %p263 = scmp.lt.s32.totalorder %s22, 0
        %s264 = scalar_select %p263, %s22, 0
        %s265 = sadd.s32 %s264, %s262
        %s266 = smul.addr %s265, 2
        %s267 = scalar_lea.vmem %s2, %s266
        %p268 = pneg %p111
        %p269 = pneg %p108
        %p270 = scmp.lt.s32.totalorder %s20, 1
        %s271 = scalar_select %p270, %s20, 1
        %p272 = scmp.lt.s32.totalorder %s22, 0
        %s273 = scalar_select %p272, %s22, 0
        %s274 = sadd.s32 %s273, %s271
        %s275 = smul.addr %s274, 2
        %s276 = scalar_lea.vmem %s3, %s275
        %p277 = pneg %p139
        %p278 = pneg %p136
        %p279 = pneg %p169
        %p280 = pneg %p166
        %s281 = sand.u32 %s156, 1
        %s282 = sand.u32 %s156, 1
        %s283 = smul.addr %s282, 8
        %s284 = scalar_lea.vmem [#allocation2], %s283
        %s285 = smul.u32 4, %s21
        %s286 = ssub.s32 1, %s285
        %s287 = smul.u32 16, %s286
        %p288 = scmp.lt.s32.totalorder %s285, 0
        %s289 = scalar_select %p288, %s285, 0
        %s290 = scalar_lea.vmem %s0, %s289
        %s291 = smul.u32 4, %s21
        %s292 = ssub.s32 1, %s291
        %s293 = smul.u32 16, %s292
        %s294 = smul.u32 4, %s21
        %s295 = ssub.s32 1, %s294
        %s296 = smul.u32 16, %s295
        %p297 = scmp.lt.s32.totalorder %s20, 1
        %s298 = scalar_select %p297, %s20, 1
        %p299 = scmp.lt.s32.totalorder %s294, 0
        %s300 = scalar_select %p299, %s294, 0
        %s301 = sadd.s32 %s300, %s298
        %s302 = scalar_lea.vmem %s1, %s301
        %s303 = smul.u32 4, %s21
        %s304 = ssub.s32 1, %s303
        %s305 = smul.u32 16, %s304
        %p306 = scmp.lt.s32.totalorder %s20, 1
        %s307 = scalar_select %p306, %s20, 1
        %p308 = scmp.lt.s32.totalorder %s22, 0
        %s309 = scalar_select %p308, %s22, 0
        %s310 = sadd.s32 %s309, %s307
        %s311 = smul.addr %s310, 2
        %s312 = scalar_lea.vmem %s2, %s311
        %p313 = scmp.lt.s32.totalorder %s20, 1
        %s314 = scalar_select %p313, %s20, 1
        %p315 = scmp.lt.s32.totalorder %s22, 0
        %s316 = scalar_select %p315, %s22, 0
        %s317 = sadd.s32 %s316, %s314
        %s318 = smul.addr %s317, 2
        %s319 = scalar_lea.vmem %s3, %s318
        %s320 = smul.u32 4, %s21
        %s321 = ssub.s32 1, %s320
        %s322 = smul.u32 32, %s321
        %v324 = vld [vmem:[%s290] sm:$0x1]
        %v325 = vld [vmem:[%s290 + $0x1] sm:$0x1]
        %v326 = vld [vmem:[%s290 + $0x2] sm:$0x1]
        %v327 = vld [vmem:[%s290 + $0x3] sm:$0x1]
        %v328 = vld [vmem:[%s312] sm:$0x3]
        %v329 = vld [vmem:[%s302] sm:$0x1]
        %v330 = vld [vmem:[%s302 + $0x1] sm:$0x1]
        %v331 = vld [vmem:[%s302 + $0x2] sm:$0x1]
        %v332 = vld [vmem:[%s302 + $0x3] sm:$0x1]
        %v333 = vld [vmem:[%s319] sm:$0x3]
        %v338 = vcombine.low %v329, %v330
        %v339 = vcombine.low %v331, %v332
        %v341 = vunpack.c.l.s4 1966171168
        %v342 = vunpack.c.0.s8 %v341
        %v343 = vlaneseq
        %v344 = vshrl.u32 %v343, 7
        %v345 = vsub.s32 %v342, %v344
        %v346 = vrot.slane %v338, %v345
        %v348 = vunpack.c.l.s4 1966171168
        %v349 = vunpack.c.0.s8 %v348
        %v350 = vlaneseq
        %v351 = vshrl.u32 %v350, 7
        %v352 = vsub.s32 %v349, %v351
        %v353 = vrot.slane %v339, %v352
        %v354 = vcombine.low %v346, %v353
        %v356 = vunpack.c.l.s4 1966171168
        %v357 = vunpack.c.0.s8 %v356
        %v358 = vlaneseq
        %v359 = vshrl.u32 %v358, 7
        %v360 = vsub.s32 %v357, %v359
        %v361 = vrot.slane %v354, %v360
        %vm362 = vcmask 31744
        %v364 = vsel %vm362, %v361, 0
        %vm366 = vcmask 1041408
        %v368 = vsel %vm366, %v333, 0
        %370 = vmatprep.subr.bf16.mxu0 0
        %371 = vmatpush1.bf16.msra.mxu0 %v368
        %372 = vmatprep.subr.bf16.mxu0 0
        %373 = vmatpush1.bf16.msra.mxu0 0
        %374 = vmatprep.subr.bf16.mxu0 0
        %375 = vmatpush1.bf16.msra.mxu0 0
        %376 = vmatprep.subr.bf16.mxu0 0
        %377 = vmatpush1.bf16.msra.mxu0 0
        %378 = vmatprep.subr.bf16.mxu0 0
        %379 = vmatpush1.bf16.msra.mxu0 0
        %380 = vmatprep.subr.bf16.mxu0 0
        %381 = vmatpush1.bf16.msra.mxu0 0
        %382 = vmatprep.subr.bf16.mxu0 0
        %383 = vmatpush1.bf16.msra.mxu0 0
        %384 = vmatprep.subr.bf16.mxu0 0
        %385 = vmatpush1.bf16.msra.mxu0 0
        %386 = vmatprep.subr.bf16.mxu0 0
        %387 = vmatpush1.bf16.msra.mxu0 0
        %388 = vmatprep.subr.bf16.mxu0 0
        %389 = vmatpush1.bf16.msra.mxu0 0
        %390 = vmatprep.subr.bf16.mxu0 0
        %391 = vmatpush1.bf16.msra.mxu0 0
        %392 = vmatprep.subr.bf16.mxu0 0
        %393 = vmatpush1.bf16.msra.mxu0 0
        %394 = vmatprep.subr.bf16.mxu0 0
        %395 = vmatpush1.bf16.msra.mxu0 0
        %396 = vmatprep.subr.bf16.mxu0 0
        %397 = vmatpush1.bf16.msra.mxu0 0
        %398 = vmatprep.subr.bf16.mxu0 0
        %399 = vmatpush1.bf16.msra.mxu0 0
        %400 = vmatprep.subr.bf16.mxu0 0
        %401 = vmatpush1.bf16.msra.mxu0 0
        %402 = vmatprep.mubr.bf16.mxu0 0
        %403 = vmatmul.mubr.bf16.gmra.mrb[0].mxu0 %v364
        %v404 = vpop.f32.mrb[0].mxu0
        %v405 = vadd.f32 0.0, %v404
        %v406 = vpop.f32.mrb[0].mxu0
        %v407 = vpop.f32.mrb[0].mxu0
        %v408 = vpop.f32.mrb[0].mxu0
        %409 = vdwg.mxu0
        %v414 = vcombine.low %v324, %v325
        %v415 = vcombine.low %v326, %v327
        %v417 = vunpack.c.l.s4 1966171168
        %v418 = vunpack.c.0.s8 %v417
        %v419 = vlaneseq
        %v420 = vshrl.u32 %v419, 7
        %v421 = vsub.s32 %v418, %v420
        %v422 = vrot.slane %v414, %v421
        %v424 = vunpack.c.l.s4 1966171168
        %v425 = vunpack.c.0.s8 %v424
        %v426 = vlaneseq
        %v427 = vshrl.u32 %v426, 7
        %v428 = vsub.s32 %v425, %v427
        %v429 = vrot.slane %v415, %v428
        %v430 = vcombine.low %v422, %v429
        %v432 = vunpack.c.l.s4 1966171168
        %v433 = vunpack.c.0.s8 %v432
        %v434 = vlaneseq
        %v435 = vshrl.u32 %v434, 7
        %v436 = vsub.s32 %v433, %v435
        %v437 = vrot.slane %v430, %v436
        %v439 = vsel %vm362, %v437, 0
        %v442 = vsel %vm366, %v328, 0
        %444 = vmatprep.subr.bf16.mxu0 0
        %445 = vmatpush1.bf16.msra.mxu0 %v442
        %446 = vmatprep.subr.bf16.mxu0 0
        %447 = vmatpush1.bf16.msra.mxu0 0
        %448 = vmatprep.subr.bf16.mxu0 0
        %449 = vmatpush1.bf16.msra.mxu0 0
        %450 = vmatprep.subr.bf16.mxu0 0
        %451 = vmatpush1.bf16.msra.mxu0 0
        %452 = vmatprep.subr.bf16.mxu0 0
        %453 = vmatpush1.bf16.msra.mxu0 0
        %454 = vmatprep.subr.bf16.mxu0 0
        %455 = vmatpush1.bf16.msra.mxu0 0
        %456 = vmatprep.subr.bf16.mxu0 0
        %457 = vmatpush1.bf16.msra.mxu0 0
        %458 = vmatprep.subr.bf16.mxu0 0
        %459 = vmatpush1.bf16.msra.mxu0 0
        %460 = vmatprep.subr.bf16.mxu0 0
        %461 = vmatpush1.bf16.msra.mxu0 0
        %462 = vmatprep.subr.bf16.mxu0 0
        %463 = vmatpush1.bf16.msra.mxu0 0
        %464 = vmatprep.subr.bf16.mxu0 0
        %465 = vmatpush1.bf16.msra.mxu0 0
        %466 = vmatprep.subr.bf16.mxu0 0
        %467 = vmatpush1.bf16.msra.mxu0 0
        %468 = vmatprep.subr.bf16.mxu0 0
        %469 = vmatpush1.bf16.msra.mxu0 0
        %470 = vmatprep.subr.bf16.mxu0 0
        %471 = vmatpush1.bf16.msra.mxu0 0
        %472 = vmatprep.subr.bf16.mxu0 0
        %473 = vmatpush1.bf16.msra.mxu0 0
        %474 = vmatprep.subr.bf16.mxu0 0
        %475 = vmatpush1.bf16.msra.mxu0 0
        %476 = vmatprep.mubr.bf16.mxu0 0
        %477 = vmatmul.mubr.bf16.gmra.mrb[0].mxu0 %v439
        %v478 = vpop.f32.mrb[0].mxu0
        %v479 = vadd.f32 %v405, %v478
        %v480 = vpop.f32.mrb[0].mxu0
        %v481 = vpop.f32.mrb[0].mxu0
        %v482 = vpop.f32.mrb[0].mxu0
        %483 = vdwg.mxu0
        %484 = vst [vmem:[%s284] sm:$0xff] %v479
        %s485 = sand.u32 %s156, 1
        %s486 = sand.u32 %s156, 1
        %s487 = smul.addr %s486, 8
        %s488 = scalar_lea.vmem [#allocation2], %s487
        // Predicated region
        $region37: #{_lambda_.13} parent=35 // pred_check
          %p489 = pneg %p166
        $region38: #{_lambda_.13} parent=35 // pred_check_branch
          %491 = sbr.rel (%p489) target = $region40
        $region39: #{_lambda_.13} parent=35 // pred_region
          %s492 = smul.u32 4, %s21
          %s493 = ssub.s32 1, %s492
          %s494 = smul.u32 32, %s493
          %p495 = scmp.ne.s32.totalorder 0, %s494
          %s496 = sadd.s32 %s22, %s492
          %s497 = sadd.s32 %s496, %s20
          %s498 = smul.addr %s497, 2
          %s499 = scalar_lea.vmem %s4, %s498
          // Predicated region
          $region41: #{_lambda_.13} parent=39 // pred_check
            %p500 = pneg %p495
          $region42: #{_lambda_.13} parent=39 // pred_check_branch
            %502 = sbr.rel (%p500) target = $region44
          $region43: #{_lambda_.13} parent=39 // pred_region
            // Predicated region
            $region45: #{_lambda_.13} parent=43 // pred_check
              _
            $region46: #{_lambda_.13} parent=43 // pred_check_branch
              %504 = sbr.rel target = $region48
            $region47: #{_lambda_.13} parent=43 // pred_region
              // Predicated region
              $region60: #{_lambda_.13} parent=47 // pred_check
                _
              $region61: #{_lambda_.13} parent=47 // pred_check_branch
                %527 = sbr.rel (0) target = $region63
              $region62: #{_lambda_.13} parent=47 // pred_region
                // While loop
                $region64: #{_lambda_.13} parent=62 // loop_pre_header
                  _
                $region65: #{_lambda_.13} parent=62 // loop_header
                  %s530 = sphi 0, %s532
                  %p531 = scmp.ge.s32.totalorder %s530, %s493
                  %s535 = sphi 0, %s542
                  %s536 = sphi %s488, %s545
                  %s537 = sphi %s499, %s546
                $region66: #{_lambda_.13} parent=62 // loop_header_branch
                  %534 = sbr.rel (%p531) target = $region70
                $region67: #{_lambda_.13} parent=62 // loop_body
                  %v538 = vld [vmem:[%s536] sm:$0x3]
                  %539 = vst [vmem:[%s537] sm:$0x3] %v538
                  %s540 = sadd.s32 1, %s535
                  %p541 = scmp.ge.s32.totalorder %s540, %s493
                  %s542 = scalar_select %p541, 0, %s540
                  %s543 = smul.u32 %s542, 2
                  %s544 = smul.u32 %s542, 2
                  %s545 = scalar_lea.vmem %s488, %s543 [#allocation2]
                  %s546 = scalar_lea.vmem %s499, %s544
                $region68: #{_lambda_.13} parent=62 // loop_footer
                  %s532 = sadd.s32 %s530, 1
                $region69: #{_lambda_.13} parent=62 // loop_footer_branch
                  %529 = sbr.rel target = $region65
                $region70: #{_lambda_.13} parent=62 // loop_exit
                  _
              $region63: #{_lambda_.13} parent=47 // pred_fallthru
                _
            $region48: #{_lambda_.13} parent=43 // pred_fallthru
              _
            // Predicated region
            $region49: #{_lambda_.13} parent=43 // pred_check
              _
            $region50: #{_lambda_.13} parent=43 // pred_check_branch
              %506 = sbr.rel (0) target = $region52
            $region51: #{_lambda_.13} parent=43 // pred_region
              // While loop
              $region53: #{_lambda_.13} parent=51 // loop_pre_header
                _
              $region54: #{_lambda_.13} parent=51 // loop_header
                %s509 = sphi 0, %s511
                %p510 = scmp.ge.s32.totalorder %s509, %s493
                %s514 = sphi 0, %s521
                %s515 = sphi %s488, %s524
                %s516 = sphi %s499, %s525
              $region55: #{_lambda_.13} parent=51 // loop_header_branch
                %513 = sbr.rel (%p510) target = $region59
              $region56: #{_lambda_.13} parent=51 // loop_body
                %v517 = vld [vmem:[%s515] sm:$0x3]
                %518 = vst [vmem:[%s516] sm:$0x3] %v517
                %s519 = sadd.s32 1, %s514
                %p520 = scmp.ge.s32.totalorder %s519, %s493
                %s521 = scalar_select %p520, 0, %s519
                %s522 = smul.u32 %s521, 2
                %s523 = smul.u32 %s521, 2
                %s524 = scalar_lea.vmem %s488, %s522 [#allocation2]
                %s525 = scalar_lea.vmem %s499, %s523
              $region57: #{_lambda_.13} parent=51 // loop_footer
                %s511 = sadd.s32 %s509, 1
              $region58: #{_lambda_.13} parent=51 // loop_footer_branch
                %508 = sbr.rel target = $region54
              $region59: #{_lambda_.13} parent=51 // loop_exit
                _
            $region52: #{_lambda_.13} parent=43 // pred_fallthru
              _
          $region44: #{_lambda_.13} parent=39 // pred_fallthru
            _
          %547 = vnop
        $region40: #{_lambda_.13} parent=35 // pred_fallthru
          _
      $region36: #{_lambda_.13} parent=5 // pred_fallthru
        _
      %p548 = scmp.le.s32.totalorder 2, %s10
      // Predicated region
      $region71: #{_lambda_.13} parent=5 // pred_check
        %p549 = pneg %p548
      $region72: #{_lambda_.13} parent=5 // pred_check_branch
        %551 = sbr.rel (%p549) target = $region74
      $region73: #{_lambda_.13} parent=5 // pred_region
        %s552 = ssub.s32 %s10, 2
        // Predicated region
        $region75: #{_lambda_.13} parent=73 // pred_check
          %p553 = pneg %p172
        $region76: #{_lambda_.13} parent=73 // pred_check_branch
          %555 = sbr.rel (%p553) target = $region78
        $region77: #{_lambda_.13} parent=73 // pred_region
          %s556 = sand.u32 %s157, 1
          %s557 = sand.u32 %s157, 1
          %s558 = smul.addr %s557, 8
          %s559 = scalar_lea.vmem [#allocation2], %s558
        $region78: #{_lambda_.13} parent=73 // pred_fallthru
          _
      $region74: #{_lambda_.13} parent=5 // pred_fallthru
        _
    $region6: #{_lambda_.13} parent=1 // loop_footer
      %s14 = sadd.s32 1, %s10
    $region7: #{_lambda_.13} parent=1 // loop_footer_branch
      %9 = sbr.rel target = $region3
    $region8: #{_lambda_.13} parent=1 // loop_exit
      _

// kernel: _lambda_.18
$region0: #{_lambda_.18}
  #allocation0 [shape = 'u32[]', space=smem, size = 0x4, offset = 0x4, fixed_abs, tag = 'smem constant byte address 0x4 - core index']
  #allocation1 [shape = 'u32[144,128]{1,0:T(1,128)}', space=vmem, size = 0x12000, scoped, tag = 'internal scratch']
  %s0 = inlined_call_operand.vmem [shape: f32[1,128,4], index: 0, kind: input, shape index: {}]
  %s1 = inlined_call_operand.vmem [shape: f32[1,1,4], index: 1, kind: input, shape index: {}]
  %s2 = inlined_call_operand.vmem [shape: f32[1,1,4], index: 2, kind: input, shape index: {}]
  %s3 = inlined_call_operand.vmem [shape: f32[1,128,4], index: 3, kind: output, shape index: {}]
  %s4 = sld [smem:[#allocation0]]
  $region22: #{_lambda_.18} parent=0
    _
  %s6 = ssub.s32 1, %s4
  %s7 = scalar_select 0, %s6, %s4
  // Predicated region
  $region2: #{_lambda_.18} parent=0 // pred_check
    _
  $region3: #{_lambda_.18} parent=0 // pred_check_branch
    %9 = sbr.rel (0) target = $region5
  $region4: #{_lambda_.18} parent=0 // pred_region
    _
  $region5: #{_lambda_.18} parent=0 // pred_fallthru
    _
  // Predicated region
  $region6: #{_lambda_.18} parent=0 // pred_check
    _
  $region7: #{_lambda_.18} parent=0 // pred_check_branch
    %11 = sbr.rel (0) target = $region9
  $region8: #{_lambda_.18} parent=0 // pred_region
    _
  $region9: #{_lambda_.18} parent=0 // pred_fallthru
    _
  // Predicated region
  $region10: #{_lambda_.18} parent=0 // pred_check
    _
  $region11: #{_lambda_.18} parent=0 // pred_check_branch
    %13 = sbr.rel (0) target = $region13
  $region12: #{_lambda_.18} parent=0 // pred_region
    _
  $region13: #{_lambda_.18} parent=0 // pred_fallthru
    _
  %v14 = vld [vmem:[%s0] sm:$0xff]
  %v15 = vld [vmem:[%s0 + $0x8] sm:$0xff]
  %v16 = vld [vmem:[%s0 + $0x10] sm:$0xff]
  %v17 = vld [vmem:[%s0 + $0x18] sm:$0xff]
  %v18 = vld [vmem:[%s0 + $0x20] sm:$0xff]
  %v19 = vld [vmem:[%s0 + $0x28] sm:$0xff]
  %v20 = vld [vmem:[%s0 + $0x30] sm:$0xff]
  %v21 = vld [vmem:[%s0 + $0x38] sm:$0xff]
  %v22 = vld [vmem:[%s0 + $0x40] sm:$0xff]
  %v23 = vld [vmem:[%s0 + $0x48] sm:$0xff]
  %v24 = vld [vmem:[%s0 + $0x50] sm:$0xff]
  %v25 = vld [vmem:[%s0 + $0x58] sm:$0xff]
  %v26 = vld [vmem:[%s0 + $0x60] sm:$0xff]
  %v27 = vld [vmem:[%s0 + $0x68] sm:$0xff]
  %v28 = vld [vmem:[%s0 + $0x70] sm:$0xff]
  %v29 = vld [vmem:[%s0 + $0x78] sm:$0xff]
  %vm30 = vcmask 31744
  %v31 = vsel %vm30, %v14, 0.0
  %v32 = vsel %vm30, %v15, 0.0
  %v33 = vadd.f32 %v31, %v32
  %v34 = vsel %vm30, %v16, 0.0
  %v35 = vadd.f32 %v33, %v34
  %v36 = vsel %vm30, %v17, 0.0
  %v37 = vadd.f32 %v35, %v36
  %v38 = vsel %vm30, %v18, 0.0
  %v39 = vadd.f32 %v37, %v38
  %v40 = vsel %vm30, %v19, 0.0
  %v41 = vadd.f32 %v39, %v40
  %v42 = vsel %vm30, %v20, 0.0
  %v43 = vadd.f32 %v41, %v42
  %v44 = vsel %vm30, %v21, 0.0
  %v45 = vadd.f32 %v43, %v44
  %v46 = vsel %vm30, %v22, 0.0
  %v47 = vadd.f32 %v45, %v46
  %v48 = vsel %vm30, %v23, 0.0
  %v49 = vadd.f32 %v47, %v48
  %v50 = vsel %vm30, %v24, 0.0
  %v51 = vadd.f32 %v49, %v50
  %v52 = vsel %vm30, %v25, 0.0
  %v53 = vadd.f32 %v51, %v52
  %v54 = vsel %vm30, %v26, 0.0
  %v55 = vadd.f32 %v53, %v54
  %v56 = vsel %vm30, %v27, 0.0
  %v57 = vadd.f32 %v55, %v56
  %v58 = vsel %vm30, %v28, 0.0
  %v59 = vadd.f32 %v57, %v58
  %v60 = vsel %vm30, %v29, 0.0
  %v61 = vadd.f32 %v59, %v60
  %v62 = vrot.slane %v61, 4
  %v63 = vadd.f32 %v61, %v62
  %v64 = vrot.slane %v63, 2
  %v65 = vadd.f32 %v63, %v64
  %v66 = vrot.slane %v65, 1
  %v67 = vadd.f32 %v65, %v66
  %v68 = vmul.f32 %v67, 0.0078125
  %v69 = vsub.f32 %v14, %v68
  %v70 = vsub.f32 %v15, %v68
  %v71 = vsub.f32 %v16, %v68
  %v72 = vsub.f32 %v17, %v68
  %v73 = vsub.f32 %v18, %v68
  %v74 = vsub.f32 %v19, %v68
  %v75 = vsub.f32 %v20, %v68
  %v76 = vsub.f32 %v21, %v68
  %v77 = vsub.f32 %v22, %v68
  %v78 = vsub.f32 %v23, %v68
  %v79 = vsub.f32 %v24, %v68
  %v80 = vsub.f32 %v25, %v68
  %v81 = vsub.f32 %v26, %v68
  %v82 = vsub.f32 %v27, %v68
  %v83 = vsub.f32 %v28, %v68
  %v84 = vsub.f32 %v29, %v68
  %v85 = vmul.f32 %v69, %v69
  %v86 = vmul.f32 %v70, %v70
  %v87 = vmul.f32 %v71, %v71
  %v88 = vmul.f32 %v72, %v72
  %v89 = vmul.f32 %v73, %v73
  %v90 = vmul.f32 %v74, %v74
  %v91 = vmul.f32 %v75, %v75
  %v92 = vmul.f32 %v76, %v76
  %v93 = vmul.f32 %v77, %v77
  %v94 = vmul.f32 %v78, %v78
  %v95 = vmul.f32 %v79, %v79
  %v96 = vmul.f32 %v80, %v80
  %v97 = vmul.f32 %v81, %v81
  %v98 = vmul.f32 %v82, %v82
  %v99 = vmul.f32 %v83, %v83
  %v100 = vmul.f32 %v84, %v84
  %v101 = vsel %vm30, %v85, 0.0
  %v102 = vsel %vm30, %v86, 0.0
  %v103 = vadd.f32 %v101, %v102
  %v104 = vsel %vm30, %v87, 0.0
  %v105 = vadd.f32 %v103, %v104
  %v106 = vsel %vm30, %v88, 0.0
  %v107 = vadd.f32 %v105, %v106
  %v108 = vsel %vm30, %v89, 0.0
  %v109 = vadd.f32 %v107, %v108
  %v110 = vsel %vm30, %v90, 0.0
  %v111 = vadd.f32 %v109, %v110
  %v112 = vsel %vm30, %v91, 0.0
  %v113 = vadd.f32 %v111, %v112
  %v114 = vsel %vm30, %v92, 0.0
  %v115 = vadd.f32 %v113, %v114
  %v116 = vsel %vm30, %v93, 0.0
  %v117 = vadd.f32 %v115, %v116
  %v118 = vsel %vm30, %v94, 0.0
  %v119 = vadd.f32 %v117, %v118
  %v120 = vsel %vm30, %v95, 0.0
  %v121 = vadd.f32 %v119, %v120
  %v122 = vsel %vm30, %v96, 0.0
  %v123 = vadd.f32 %v121, %v122
  %v124 = vsel %vm30, %v97, 0.0
  %v125 = vadd.f32 %v123, %v124
  %v126 = vsel %vm30, %v98, 0.0
  %v127 = vadd.f32 %v125, %v126
  %v128 = vsel %vm30, %v99, 0.0
  %v129 = vadd.f32 %v127, %v128
  %v130 = vsel %vm30, %v100, 0.0
  %v131 = vadd.f32 %v129, %v130
  %v132 = vrot.slane %v131, 4
  %v133 = vadd.f32 %v131, %v132
  %v134 = vrot.slane %v133, 2
  %v135 = vadd.f32 %v133, %v134
  %v136 = vrot.slane %v135, 1
  %v137 = vadd.f32 %v135, %v136
  %v138 = vmul.f32 %v137, 0.0078125
  %v139 = vadd.f32 %v138, 1e-05
  %v140 = vrsqrt.pop %v139
  %v141 = vmul.f32 %v69, %v140
  %v142 = vmul.f32 %v70, %v140
  %v143 = vmul.f32 %v71, %v140
  %v144 = vmul.f32 %v72, %v140
  %v145 = vmul.f32 %v73, %v140
  %v146 = vmul.f32 %v74, %v140
  %v147 = vmul.f32 %v75, %v140
  %v148 = vmul.f32 %v76, %v140
  %v149 = vmul.f32 %v77, %v140
  %v150 = vmul.f32 %v78, %v140
  %v151 = vmul.f32 %v79, %v140
  %v152 = vmul.f32 %v80, %v140
  %v153 = vmul.f32 %v81, %v140
  %v154 = vmul.f32 %v82, %v140
  %v155 = vmul.f32 %v83, %v140
  %v156 = vmul.f32 %v84, %v140
  %v157 = vld [vmem:[%s1] sm:$0x1]
  %v159 = vlaneseq
  %v160 = vshrl.u32 %v159, 7
  %v161 = vsub.s32 0, %v160
  %v162 = vrot.slane %v157, %v161
  %v164 = vmul.f32 %v141, %v162
  %v165 = vmul.f32 %v142, %v162
  %v166 = vmul.f32 %v143, %v162
  %v167 = vmul.f32 %v144, %v162
  %v168 = vmul.f32 %v145, %v162
  %v169 = vmul.f32 %v146, %v162
  %v170 = vmul.f32 %v147, %v162
  %v171 = vmul.f32 %v148, %v162
  %v172 = vmul.f32 %v149, %v162
  %v173 = vmul.f32 %v150, %v162
  %v174 = vmul.f32 %v151, %v162
  %v175 = vmul.f32 %v152, %v162
  %v176 = vmul.f32 %v153, %v162
  %v177 = vmul.f32 %v154, %v162
  %v178 = vmul.f32 %v155, %v162
  %v179 = vmul.f32 %v156, %v162
  %v180 = vld [vmem:[%s2] sm:$0x1]
  %v182 = vlaneseq
  %v183 = vshrl.u32 %v182, 7
  %v184 = vsub.s32 0, %v183
  %v185 = vrot.slane %v180, %v184
  %v187 = vadd.f32 %v164, %v185
  %v188 = vadd.f32 %v165, %v185
  %v189 = vadd.f32 %v166, %v185
  %v190 = vadd.f32 %v167, %v185
  %v191 = vadd.f32 %v168, %v185
  %v192 = vadd.f32 %v169, %v185
  %v193 = vadd.f32 %v170, %v185
  %v194 = vadd.f32 %v171, %v185
  %v195 = vadd.f32 %v172, %v185
  %v196 = vadd.f32 %v173, %v185
  %v197 = vadd.f32 %v174, %v185
  %v198 = vadd.f32 %v175, %v185
  %v199 = vadd.f32 %v176, %v185
  %v200 = vadd.f32 %v177, %v185
  %v201 = vadd.f32 %v178, %v185
  %v202 = vadd.f32 %v179, %v185
  %v203 = vmax.f32 %v187, 0.0
  %v204 = vmax.f32 %v188, 0.0
  %v205 = vmax.f32 %v189, 0.0
  %v206 = vmax.f32 %v190, 0.0
  %v207 = vmax.f32 %v191, 0.0
  %v208 = vmax.f32 %v192, 0.0
  %v209 = vmax.f32 %v193, 0.0
  %v210 = vmax.f32 %v194, 0.0
  %v211 = vmax.f32 %v195, 0.0
  %v212 = vmax.f32 %v196, 0.0
  %v213 = vmax.f32 %v197, 0.0
  %v214 = vmax.f32 %v198, 0.0
  %v215 = vmax.f32 %v199, 0.0
  %v216 = vmax.f32 %v200, 0.0
  %v217 = vmax.f32 %v201, 0.0
  %v218 = vmax.f32 %v202, 0.0
  %219 = vst.msk [vmem:[%s3] sm:$0xff] %vm30, %v203
  %220 = vst.msk [vmem:[%s3 + $0x8] sm:$0xff] %vm30, %v204
  %221 = vst.msk [vmem:[%s3 + $0x10] sm:$0xff] %vm30, %v205
  %222 = vst.msk [vmem:[%s3 + $0x18] sm:$0xff] %vm30, %v206
  %223 = vst.msk [vmem:[%s3 + $0x20] sm:$0xff] %vm30, %v207
  %224 = vst.msk [vmem:[%s3 + $0x28] sm:$0xff] %vm30, %v208
  %225 = vst.msk [vmem:[%s3 + $0x30] sm:$0xff] %vm30, %v209
  %226 = vst.msk [vmem:[%s3 + $0x38] sm:$0xff] %vm30, %v210
  %227 = vst.msk [vmem:[%s3 + $0x40] sm:$0xff] %vm30, %v211
  %228 = vst.msk [vmem:[%s3 + $0x48] sm:$0xff] %vm30, %v212
  %229 = vst.msk [vmem:[%s3 + $0x50] sm:$0xff] %vm30, %v213
  %230 = vst.msk [vmem:[%s3 + $0x58] sm:$0xff] %vm30, %v214
  %231 = vst.msk [vmem:[%s3 + $0x60] sm:$0xff] %vm30, %v215
  %232 = vst.msk [vmem:[%s3 + $0x68] sm:$0xff] %vm30, %v216
  %233 = vst.msk [vmem:[%s3 + $0x70] sm:$0xff] %vm30, %v217
  %234 = vst.msk [vmem:[%s3 + $0x78] sm:$0xff] %vm30, %v218
  // Predicated region
  $region14: #{_lambda_.18} parent=0 // pred_check
    _
  $region15: #{_lambda_.18} parent=0 // pred_check_branch
    %236 = sbr.rel (0) target = $region17
  $region16: #{_lambda_.18} parent=0 // pred_region
    _
  $region17: #{_lambda_.18} parent=0 // pred_fallthru
    _
  // Predicated region
  $region18: #{_lambda_.18} parent=0 // pred_check
    _
  $region19: #{_lambda_.18} parent=0 // pred_check_branch
    %238 = sbr.rel (0) target = $region21
  $region20: #{_lambda_.18} parent=0 // pred_region
    _
  $region21: #{_lambda_.18} parent=0 // pred_fallthru
    _

// kernel: _lambda_.15
$region0: #{_lambda_.15}
  #allocation0 [shape = 'u32[]', space=smem, size = 0x4, offset = 0x4, fixed_abs, tag = 'smem constant byte address 0x4 - core index']
  #allocation1 [shape = 'u32[144,128]{1,0:T(1,128)}', space=vmem, size = 0x12000, scoped, tag = 'internal scratch']
  %s0 = inlined_call_operand.vmem [shape: f32[2,32,8], index: 0, kind: input, shape index: {}]
  %s1 = inlined_call_operand.vmem [shape: f32[2,1,8], index: 1, kind: input, shape index: {}]
  %s2 = inlined_call_operand.vmem [shape: f32[2,1,8], index: 2, kind: input, shape index: {}]
  %s3 = inlined_call_operand.vmem [shape: f32[2,32,8], index: 3, kind: output, shape index: {}]
  %s4 = sld [smem:[#allocation0]]
  $region45: #{_lambda_.15} parent=0
    _
  %s6 = ssub.s32 1, %s4
  %s7 = scalar_select 0, %s6, %s4
  loop: start=0, step=1, limit=4
  $region2: #{_lambda_.15} parent=0 // loop_pre_header
    _
  $region3: #{_lambda_.15} parent=0 // loop_header
    %s9 = sphi 0, %s13
    %p10 = scmp.ge.s32.totalorder %s9, 4
    %s16 = sphi 0, %s28
    %s17 = sphi 0, %s24
    %s18 = sphi 0, %s16
    %s19 = sphi 0, %s17
    %s20 = sphi 0, %s18
    %s21 = sphi 0, %s19
    %s33 = sphi 0, %s35
    %s36 = sphi 0, %s33
    %s37 = sphi 0, %s36
    %s53 = sphi 0, %s37
    %s61 = sphi 0, %s63
    %s64 = sphi 0, %s61
    %s65 = sphi 0, %s64
    %s81 = sphi 0, %s65
    %s89 = sphi 0, %s91
    %s92 = sphi 0, %s89
    %s93 = sphi 0, %s92
    %s109 = sphi 0, %s93
    %s117 = sphi 0, %s119
    %s120 = sphi 0, %s117
    %s121 = sphi 0, %s120
    %s137 = sphi 0, %s121
  $region4: #{_lambda_.15} parent=0 // loop_header_branch
    %12 = sbr.rel (%p10) target = $region8
  $region5: #{_lambda_.15} parent=0 // loop_body
    %s14 = ssub.s32 %s9, 1
    %s15 = ssub.s32 %s9, 2
    %s22 = sadd.s32 1, %s17
    %p23 = scmp.ge.s32.totalorder %s22, 1
    %s24 = scalar_select %p23, 0, %s22
    %s25 = sadd.s32 1, %s16
    %s26 = scalar_select %p23, %s25, %s16
    %p27 = scmp.ge.s32.totalorder %s26, 2
    %s28 = scalar_select %p27, 0, %s26
    %s29 = ssub.s32 %s16, %s28
    %s30 = ssub.s32 %s17, %s24
    %s31 = sor.u32 %s29, %s30
    %p32 = scmp.eq.s32.totalorder %s31, 0
    %s34 = sadd.s32 %s33, 1
    %s35 = scalar_select %p32, %s33, %s34
    %p38 = pneg %p32
    %p39 = scmp.eq.s32.totalorder %s9, 1
    %p40 = por %p38, %p39
    %p41 = scmp.ne.s32.totalorder %s33, %s36
    %p42 = scmp.eq.s32.totalorder %s9, 0
    %p43 = por %p41, %p42
    %p44 = scmp.ne.s32.totalorder %s33, %s36
    %p45 = scmp.eq.s32.totalorder %s14, 1
    %p46 = por %p44, %p45
    %p47 = scmp.ne.s32.totalorder %s36, %s37
    %p48 = scmp.eq.s32.totalorder %s14, 0
    %p49 = por %p47, %p48
    %p50 = scmp.ne.s32.totalorder %s36, %s37
    %p51 = scmp.eq.s32.totalorder %s15, 1
    %p52 = por %p50, %p51
    %p54 = scmp.ne.s32.totalorder %s37, %s53
    %p55 = scmp.eq.s32.totalorder %s15, 0
    %p56 = por %p54, %p55
    %s57 = ssub.s32 %s16, %s28
    %s58 = ssub.s32 %s17, %s24
    %s59 = sor.u32 %s57, %s58
    %p60 = scmp.eq.s32.totalorder %s59, 0
    %s62 = sadd.s32 %s61, 1
    %s63 = scalar_select %p60, %s61, %s62
    %p66 = pneg %p60
    %p67 = scmp.eq.s32.totalorder %s9, 1
    %p68 = por %p66, %p67
    %p69 = scmp.ne.s32.totalorder %s61, %s64
    %p70 = scmp.eq.s32.totalorder %s9, 0
    %p71 = por %p69, %p70
    %p72 = scmp.ne.s32.totalorder %s61, %s64
    %p73 = scmp.eq.s32.totalorder %s14, 1
    %p74 = por %p72, %p73
    %p75 = scmp.ne.s32.totalorder %s64, %s65
    %p76 = scmp.eq.s32.totalorder %s14, 0
    %p77 = por %p75, %p76
    %p78 = scmp.ne.s32.totalorder %s64, %s65
    %p79 = scmp.eq.s32.totalorder %s15, 1
    %p80 = por %p78, %p79
    %p82 = scmp.ne.s32.totalorder %s65, %s81
    %p83 = scmp.eq.s32.totalorder %s15, 0
    %p84 = por %p82, %p83
    %s85 = ssub.s32 %s16, %s28
    %s86 = ssub.s32 %s17, %s24
    %s87 = sor.u32 %s85, %s86
    %p88 = scmp.eq.s32.totalorder %s87, 0
    %s90 = sadd.s32 %s89, 1
    %s91 = scalar_select %p88, %s89, %s90
    %p94 = pneg %p88
    %p95 = scmp.eq.s32.totalorder %s9, 1
    %p96 = por %p94, %p95
    %p97 = scmp.ne.s32.totalorder %s89, %s92
    %p98 = scmp.eq.s32.totalorder %s9, 0
    %p99 = por %p97, %p98
    %p100 = scmp.ne.s32.totalorder %s89, %s92
    %p101 = scmp.eq.s32.totalorder %s14, 1
    %p102 = por %p100, %p101
    %p103 = scmp.ne.s32.totalorder %s92, %s93
    %p104 = scmp.eq.s32.totalorder %s14, 0
    %p105 = por %p103, %p104
    %p106 = scmp.ne.s32.totalorder %s92, %s93
    %p107 = scmp.eq.s32.totalorder %s15, 1
    %p108 = por %p106, %p107
    %p110 = scmp.ne.s32.totalorder %s93, %s109
    %p111 = scmp.eq.s32.totalorder %s15, 0
    %p112 = por %p110, %p111
    %s113 = ssub.s32 %s16, %s28
    %s114 = ssub.s32 %s17, %s24
    %s115 = sor.u32 %s113, %s114
    %p116 = scmp.eq.s32.totalorder %s115, 0
    %s118 = sadd.s32 %s117, 1
    %s119 = scalar_select %p116, %s117, %s118
    %p122 = pneg %p116
    %p123 = scmp.eq.s32.totalorder %s9, 1
    %p124 = por %p122, %p123
    %p125 = scmp.ne.s32.totalorder %s117, %s120
    %p126 = scmp.eq.s32.totalorder %s9, 0
    %p127 = por %p125, %p126
    %p128 = scmp.ne.s32.totalorder %s117, %s120
    %p129 = scmp.eq.s32.totalorder %s14, 1
    %p130 = por %p128, %p129
    %p131 = scmp.ne.s32.totalorder %s120, %s121
    %p132 = scmp.eq.s32.totalorder %s14, 0
    %p133 = por %p131, %p132
    %p134 = scmp.ne.s32.totalorder %s120, %s121
    %p135 = scmp.eq.s32.totalorder %s15, 1
    %p136 = por %p134, %p135
    %p138 = scmp.ne.s32.totalorder %s121, %s137
    %p139 = scmp.eq.s32.totalorder %s15, 0
    %p140 = por %p138, %p139
    %p141 = scmp.le.s32.totalorder 1, %s9
    %p142 = scmp.lt.s32.totalorder %s9, 3
    %p143 = pnand %p141, %p142
    %p144 = pneg %p143
    // Predicated region
    $region9: #{_lambda_.15} parent=5 // pred_check
      _
    $region10: #{_lambda_.15} parent=5 // pred_check_branch
      %146 = sbr.rel (%p143) target = $region12
    $region11: #{_lambda_.15} parent=5 // pred_region
      %s147 = ssub.s32 %s9, 1
    $region12: #{_lambda_.15} parent=5 // pred_fallthru
      _
    %p148 = scmp.lt.s32.totalorder %s9, 2
    // Predicated region
    $region13: #{_lambda_.15} parent=5 // pred_check
      %p149 = pneg %p148
    $region14: #{_lambda_.15} parent=5 // pred_check_branch
      %151 = sbr.rel (%p149) target = $region16
    $region15: #{_lambda_.15} parent=5 // pred_region
      // Predicated region
      $region17: #{_lambda_.15} parent=15 // pred_check
        %p152 = pneg %p43
      $region18: #{_lambda_.15} parent=15 // pred_check_branch
        %154 = sbr.rel (%p152) target = $region20
      $region19: #{_lambda_.15} parent=15 // pred_region
        %p155 = scmp.lt.s32.totalorder %s16, 1
        %s156 = scalar_select %p155, %s16, 1
        %p157 = scmp.lt.s32.totalorder %s17, 0
        %s158 = scalar_select %p157, %s17, 0
        %s159 = smul.addr %s156, 4
        %s160 = sadd.s32 %s158, %s159
        %s161 = smul.addr %s160, 8
        %s162 = scalar_lea.vmem %s0, %s161
      $region20: #{_lambda_.15} parent=15 // pred_fallthru
        _
      // Predicated region
      $region21: #{_lambda_.15} parent=15 // pred_check
        %p163 = pneg %p71
      $region22: #{_lambda_.15} parent=15 // pred_check_branch
        %165 = sbr.rel (%p163) target = $region24
      $region23: #{_lambda_.15} parent=15 // pred_region
        %p166 = scmp.lt.s32.totalorder %s16, 1
        %s167 = scalar_select %p166, %s16, 1
        %p168 = scmp.lt.s32.totalorder %s17, 0
        %s169 = scalar_select %p168, %s17, 0
        %s170 = sadd.s32 %s169, %s167
        %s171 = scalar_lea.vmem %s1, %s170
      $region24: #{_lambda_.15} parent=15 // pred_fallthru
        _
      // Predicated region
      $region25: #{_lambda_.15} parent=15 // pred_check
        %p172 = pneg %p99
      $region26: #{_lambda_.15} parent=15 // pred_check_branch
        %174 = sbr.rel (%p172) target = $region28
      $region27: #{_lambda_.15} parent=15 // pred_region
        %p175 = scmp.lt.s32.totalorder %s16, 1
        %s176 = scalar_select %p175, %s16, 1
        %p177 = scmp.lt.s32.totalorder %s17, 0
        %s178 = scalar_select %p177, %s17, 0
        %s179 = sadd.s32 %s178, %s176
        %s180 = scalar_lea.vmem %s2, %s179
      $region28: #{_lambda_.15} parent=15 // pred_fallthru
        _
    $region16: #{_lambda_.15} parent=5 // pred_fallthru
      _
    %p181 = scmp.le.s32.totalorder 1, %s9
    %p182 = scmp.lt.s32.totalorder %s9, 3
    %p183 = pnand %p181, %p182
    %p184 = pneg %p183
    // Predicated region
    $region29: #{_lambda_.15} parent=5 // pred_check
      _
    $region30: #{_lambda_.15} parent=5 // pred_check_branch
      %186 = sbr.rel (%p183) target = $region32
    $region31: #{_lambda_.15} parent=5 // pred_region
      %s187 = ssub.s32 %s9, 1
      %p188 = scmp.lt.s32.totalorder %s18, 1
      %s189 = scalar_select %p188, %s18, 1
      %p190 = scmp.lt.s32.totalorder %s19, 0
      %s191 = scalar_select %p190, %s19, 0
      %s192 = smul.addr %s189, 4
      %s193 = sadd.s32 %s191, %s192
      %s194 = smul.addr %s193, 8
      %s195 = scalar_lea.vmem %s0, %s194
      %p196 = pneg %p49
      %p197 = pneg %p46
      %p198 = scmp.lt.s32.totalorder %s18, 1
      %s199 = scalar_select %p198, %s18, 1
      %p200 = scmp.lt.s32.totalorder %s19, 0
      %s201 = scalar_select %p200, %s19, 0
      %s202 = sadd.s32 %s201, %s199
      %s203 = scalar_lea.vmem %s1, %s202
      %p204 = pneg %p77
      %p205 = pneg %p74
      %p206 = scmp.lt.s32.totalorder %s18, 1
      %s207 = scalar_select %p206, %s18, 1
      %p208 = scmp.lt.s32.totalorder %s19, 0
      %s209 = scalar_select %p208, %s19, 0
      %s210 = sadd.s32 %s209, %s207
      %s211 = scalar_lea.vmem %s2, %s210
      %p212 = pneg %p105
      %p213 = pneg %p102
      %p214 = pneg %p133
      %p215 = pneg %p130
      %p216 = scmp.lt.s32.totalorder %s18, 1
      %s217 = scalar_select %p216, %s18, 1
      %p218 = scmp.lt.s32.totalorder %s19, 0
      %s219 = scalar_select %p218, %s19, 0
      %s220 = smul.addr %s217, 4
      %s221 = sadd.s32 %s219, %s220
      %s222 = smul.addr %s221, 8
      %s223 = scalar_lea.vmem %s3, %s222
      %p224 = scmp.lt.s32.totalorder %s18, 1
      %s225 = scalar_select %p224, %s18, 1
      %p226 = scmp.lt.s32.totalorder %s19, 0
      %s227 = scalar_select %p226, %s19, 0
      %s228 = smul.addr %s225, 4
      %s229 = sadd.s32 %s227, %s228
      %s230 = smul.addr %s229, 8
      %s231 = scalar_lea.vmem %s0, %s230
      %p232 = scmp.lt.s32.totalorder %s18, 1
      %s233 = scalar_select %p232, %s18, 1
      %p234 = scmp.lt.s32.totalorder %s19, 0
      %s235 = scalar_select %p234, %s19, 0
      %s236 = sadd.s32 %s235, %s233
      %s237 = scalar_lea.vmem %s1, %s236
      %p238 = scmp.lt.s32.totalorder %s18, 1
      %s239 = scalar_select %p238, %s18, 1
      %p240 = scmp.lt.s32.totalorder %s19, 0
      %s241 = scalar_select %p240, %s19, 0
      %s242 = sadd.s32 %s241, %s239
      %s243 = scalar_lea.vmem %s2, %s242
      %p244 = scmp.lt.s32.totalorder %s18, 1
      %s245 = scalar_select %p244, %s18, 1
      %p246 = scmp.lt.s32.totalorder %s19, 0
      %s247 = scalar_select %p246, %s19, 0
      %s248 = smul.addr %s245, 4
      %s249 = sadd.s32 %s247, %s248
      %s250 = smul.addr %s249, 8
      %s251 = scalar_lea.vmem %s3, %s250
      %v252 = vld [vmem:[%s231] sm:$0xff]
      %v253 = vld [vmem:[%s231 + $0x8] sm:$0xff]
      %v254 = vld [vmem:[%s231 + $0x10] sm:$0xff]
      %v255 = vld [vmem:[%s231 + $0x18] sm:$0xff]
      %vm256 = vcmask 64512
      %v257 = vsel %vm256, %v252, 0.0
      %v258 = vsel %vm256, %v253, 0.0
      %v259 = vadd.f32 %v257, %v258
      %v260 = vsel %vm256, %v254, 0.0
      %v261 = vadd.f32 %v259, %v260
      %v262 = vsel %vm256, %v255, 0.0
      %v263 = vadd.f32 %v261, %v262
      %v264 = vrot.slane %v263, 4
      %v265 = vadd.f32 %v263, %v264
      %v266 = vrot.slane %v265, 2
      %v267 = vadd.f32 %v265, %v266
      %v268 = vrot.slane %v267, 1
      %v269 = vadd.f32 %v267, %v268
      %v270 = vmul.f32 %v269, 0.03125
      %v271 = vsub.f32 %v252, %v270
      %v272 = vsub.f32 %v253, %v270
      %v273 = vsub.f32 %v254, %v270
      %v274 = vsub.f32 %v255, %v270
      %v275 = vmul.f32 %v271, %v271
      %v276 = vmul.f32 %v272, %v272
      %v277 = vmul.f32 %v273, %v273
      %v278 = vmul.f32 %v274, %v274
      %v279 = vsel %vm256, %v275, 0.0
      %v280 = vsel %vm256, %v276, 0.0
      %v281 = vadd.f32 %v279, %v280
      %v282 = vsel %vm256, %v277, 0.0
      %v283 = vadd.f32 %v281, %v282
      %v284 = vsel %vm256, %v278, 0.0
      %v285 = vadd.f32 %v283, %v284
      %v286 = vrot.slane %v285, 4
      %v287 = vadd.f32 %v285, %v286
      %v288 = vrot.slane %v287, 2
      %v289 = vadd.f32 %v287, %v288
      %v290 = vrot.slane %v289, 1
      %v291 = vadd.f32 %v289, %v290
      %v292 = vmul.f32 %v291, 0.03125
      %v293 = vadd.f32 %v292, 1e-05
      %v294 = vrsqrt.pop %v293
      %v295 = vmul.f32 %v271, %v294
      %v296 = vmul.f32 %v272, %v294
      %v297 = vmul.f32 %v273, %v294
      %v298 = vmul.f32 %v274, %v294
      %v299 = vld [vmem:[%s237] sm:$0x1]
      %v301 = vlaneseq
      %v302 = vshrl.u32 %v301, 7
      %v303 = vsub.s32 0, %v302
      %v304 = vrot.slane %v299, %v303
      %v306 = vmul.f32 %v295, %v304
      %v307 = vmul.f32 %v296, %v304
      %v308 = vmul.f32 %v297, %v304
      %v309 = vmul.f32 %v298, %v304
      %v310 = vld [vmem:[%s243] sm:$0x1]
      %v312 = vlaneseq
      %v313 = vshrl.u32 %v312, 7
      %v314 = vsub.s32 0, %v313
      %v315 = vrot.slane %v310, %v314
      %v317 = vadd.f32 %v306, %v315
      %v318 = vadd.f32 %v307, %v315
      %v319 = vadd.f32 %v308, %v315
      %v320 = vadd.f32 %v309, %v315
      %v321 = vmax.f32 %v317, 0.0
      %v322 = vmax.f32 %v318, 0.0
      %v323 = vmax.f32 %v319, 0.0
      %v324 = vmax.f32 %v320, 0.0
      %325 = vst.msk [vmem:[%s251] sm:$0xff] %vm256, %v321
      %326 = vst.msk [vmem:[%s251 + $0x8] sm:$0xff] %vm256, %v322
      %327 = vst.msk [vmem:[%s251 + $0x10] sm:$0xff] %vm256, %v323
      %328 = vst.msk [vmem:[%s251 + $0x18] sm:$0xff] %vm256, %v324
      %p329 = scmp.lt.s32.totalorder %s18, 1
      %s330 = scalar_select %p329, %s18, 1
      %p331 = scmp.lt.s32.totalorder %s19, 0
      %s332 = scalar_select %p331, %s19, 0
      %s333 = smul.addr %s330, 4
      %s334 = sadd.s32 %s332, %s333
      %s335 = smul.addr %s334, 8
      %s336 = scalar_lea.vmem %s3, %s335
      // Predicated region
      $region33: #{_lambda_.15} parent=31 // pred_check
        %p337 = pneg %p130
      $region34: #{_lambda_.15} parent=31 // pred_check_branch
        %339 = sbr.rel (%p337) target = $region36
      $region35: #{_lambda_.15} parent=31 // pred_region
        _
      $region36: #{_lambda_.15} parent=31 // pred_fallthru
        _
    $region32: #{_lambda_.15} parent=5 // pred_fallthru
      _
    %p340 = scmp.le.s32.totalorder 2, %s9
    // Predicated region
    $region37: #{_lambda_.15} parent=5 // pred_check
      %p341 = pneg %p340
    $region38: #{_lambda_.15} parent=5 // pred_check_branch
      %343 = sbr.rel (%p341) target = $region40
    $region39: #{_lambda_.15} parent=5 // pred_region
      %s344 = ssub.s32 %s9, 2
      // Predicated region
      $region41: #{_lambda_.15} parent=39 // pred_check
        %p345 = pneg %p136
      $region42: #{_lambda_.15} parent=39 // pred_check_branch
        %347 = sbr.rel (%p345) target = $region44
      $region43: #{_lambda_.15} parent=39 // pred_region
        %p348 = scmp.lt.s32.totalorder %s20, 1
        %s349 = scalar_select %p348, %s20, 1
        %p350 = scmp.lt.s32.totalorder %s21, 0
        %s351 = scalar_select %p350, %s21, 0
        %s352 = smul.addr %s349, 4
        %s353 = sadd.s32 %s351, %s352
        %s354 = smul.addr %s353, 8
        %s355 = scalar_lea.vmem %s3, %s354
      $region44: #{_lambda_.15} parent=39 // pred_fallthru
        _
    $region40: #{_lambda_.15} parent=5 // pred_fallthru
      _
  $region6: #{_lambda_.15} parent=0 // loop_footer
    %s13 = sadd.s32 1, %s9
  $region7: #{_lambda_.15} parent=0 // loop_footer_branch
    %8 = sbr.rel target = $region3
  $region8: #{_lambda_.15} parent=0 // loop_exit
    _

// kernel: _lambda_.17
$region0: #{_lambda_.17}
  #allocation0 [shape = 'u32[]', space=smem, size = 0x4, offset = 0x4, fixed_abs, tag = 'smem constant byte address 0x4 - core index']
  #allocation1 [shape = 'u32[144,128]{1,0:T(1,128)}', space=vmem, size = 0x12000, scoped, tag = 'internal scratch']
  %s0 = inlined_call_operand.vmem [shape: bf16[32,8], index: 0, kind: input, shape index: {}]
  %s1 = inlined_call_operand.vmem [shape: bf16[2,32,8], index: 1, kind: input, shape index: {}]
  %s2 = inlined_call_operand.vmem [shape: bf16[2,8,64], index: 2, kind: input, shape index: {}]
  %s3 = inlined_call_operand.vmem [shape: bf16[2,8,64], index: 3, kind: input, shape index: {}]
  %s4 = inlined_call_operand.vmem [shape: f32[2,32,64], index: 4, kind: output, shape index: {}]
  %s5 = sld [smem:[#allocation0]]
  $region49: #{_lambda_.17} parent=0
    _
  %s7 = ssub.s32 1, %s5
  %s8 = scalar_select 0, %s7, %s5
  loop: start=0, step=1, limit=4
  $region2: #{_lambda_.17} parent=0 // loop_pre_header
    _
  $region3: #{_lambda_.17} parent=0 // loop_header
    %s10 = sphi 0, %s14
    %p11 = scmp.ge.s32.totalorder %s10, 4
    %s17 = sphi 0, %s36
    %s18 = sphi 0, %s32
    %s19 = sphi 0, %s28
    %s20 = sphi 0, %s17
    %s21 = sphi 0, %s18
    %s22 = sphi 0, %s19
    %s23 = sphi 0, %s20
    %s24 = sphi 0, %s21
    %s25 = sphi 0, %s22
    %s39 = sphi 0, %s41
    %s42 = sphi 0, %s39
    %s43 = sphi 0, %s42
    %s59 = sphi 0, %s43
    %s67 = sphi 0, %s69
    %s70 = sphi 0, %s67
    %s71 = sphi 0, %s70
    %s87 = sphi 0, %s71
    %s95 = sphi 0, %s97
    %s98 = sphi 0, %s95
    %s99 = sphi 0, %s98
    %s115 = sphi 0, %s99
    %s123 = sphi 0, %s125
    %s126 = sphi 0, %s123
    %s127 = sphi 0, %s126
    %s143 = sphi 0, %s127
    %s153 = sphi 0, %s155
    %s156 = sphi 0, %s153
    %s157 = sphi 0, %s156
    %s173 = sphi 0, %s157
  $region4: #{_lambda_.17} parent=0 // loop_header_branch
    %13 = sbr.rel (%p11) target = $region8
  $region5: #{_lambda_.17} parent=0 // loop_body
    %s15 = ssub.s32 %s10, 1
    %s16 = ssub.s32 %s10, 2
    %s26 = sadd.s32 1, %s19
    %p27 = scmp.ge.s32.totalorder %s26, 1
    %s28 = scalar_select %p27, 0, %s26
    %s29 = sadd.s32 1, %s18
    %s30 = scalar_select %p27, %s29, %s18
    %p31 = scmp.ge.s32.totalorder %s30, 1
    %s32 = scalar_select %p31, 0, %s30
    %s33 = sadd.s32 1, %s17
    %s34 = scalar_select %p31, %s33, %s17
    %p35 = scmp.ge.s32.totalorder %s34, 2
    %s36 = scalar_select %p35, 0, %s34
    %s37 = ssub.s32 %s18, %s32
    %p38 = scmp.eq.s32.totalorder %s37, 0
    %s40 = sadd.s32 %s39, 1
    %s41 = scalar_select %p38, %s39, %s40
    %p44 = pneg %p38
    %p45 = scmp.eq.s32.totalorder %s10, 1
    %p46 = por %p44, %p45
    %p47 = scmp.ne.s32.totalorder %s39, %s42
    %p48 = scmp.eq.s32.totalorder %s10, 0
    %p49 = por %p47, %p48
    %p50 = scmp.ne.s32.totalorder %s39, %s42
    %p51 = scmp.eq.s32.totalorder %s15, 1
    %p52 = por %p50, %p51
    %p53 = scmp.ne.s32.totalorder %s42, %s43
    %p54 = scmp.eq.s32.totalorder %s15, 0
    %p55 = por %p53, %p54
    %p56 = scmp.ne.s32.totalorder %s42, %s43
    %p57 = scmp.eq.s32.totalorder %s16, 1
    %p58 = por %p56, %p57
    %p60 = scmp.ne.s32.totalorder %s43, %s59
    %p61 = scmp.eq.s32.totalorder %s16, 0
    %p62 = por %p60, %p61
    %s63 = ssub.s32 %s17, %s36
    %s64 = ssub.s32 %s18, %s32
    %s65 = sor.u32 %s63, %s64
    %p66 = scmp.eq.s32.totalorder %s65, 0
    %s68 = sadd.s32 %s67, 1
    %s69 = scalar_select %p66, %s67, %s68
    %p72 = pneg %p66
    %p73 = scmp.eq.s32.totalorder %s10, 1
    %p74 = por %p72, %p73
    %p75 = scmp.ne.s32.totalorder %s67, %s70
    %p76 = scmp.eq.s32.totalorder %s10, 0
    %p77 = por %p75, %p76
    %p78 = scmp.ne.s32.totalorder %s67, %s70
    %p79 = scmp.eq.s32.totalorder %s15, 1
    %p80 = por %p78, %p79
    %p81 = scmp.ne.s32.totalorder %s70, %s71
    %p82 = scmp.eq.s32.totalorder %s15, 0
    %p83 = por %p81, %p82
    %p84 = scmp.ne.s32.totalorder %s70, %s71
    %p85 = scmp.eq.s32.totalorder %s16, 1
    %p86 = por %p84, %p85
    %p88 = scmp.ne.s32.totalorder %s71, %s87
    %p89 = scmp.eq.s32.totalorder %s16, 0
    %p90 = por %p88, %p89
    %s91 = ssub.s32 %s17, %s36
    %s92 = ssub.s32 %s19, %s28
    %s93 = sor.u32 %s91, %s92
    %p94 = scmp.eq.s32.totalorder %s93, 0
    %s96 = sadd.s32 %s95, 1
    %s97 = scalar_select %p94, %s95, %s96
    %p100 = pneg %p94
    %p101 = scmp.eq.s32.totalorder %s10, 1
    %p102 = por %p100, %p101
    %p103 = scmp.ne.s32.totalorder %s95, %s98
    %p104 = scmp.eq.s32.totalorder %s10, 0
    %p105 = por %p103, %p104
    %p106 = scmp.ne.s32.totalorder %s95, %s98
    %p107 = scmp.eq.s32.totalorder %s15, 1
    %p108 = por %p106, %p107
    %p109 = scmp.ne.s32.totalorder %s98, %s99
    %p110 = scmp.eq.s32.totalorder %s15, 0
    %p111 = por %p109, %p110
    %p112 = scmp.ne.s32.totalorder %s98, %s99
    %p113 = scmp.eq.s32.totalorder %s16, 1
    %p114 = por %p112, %p113
    %p116 = scmp.ne.s32.totalorder %s99, %s115
    %p117 = scmp.eq.s32.totalorder %s16, 0
    %p118 = por %p116, %p117
    %s119 = ssub.s32 %s17, %s36
    %s120 = ssub.s32 %s19, %s28
    %s121 = sor.u32 %s119, %s120
    %p122 = scmp.eq.s32.totalorder %s121, 0
    %s124 = sadd.s32 %s123, 1
    %s125 = scalar_select %p122, %s123, %s124
    %p128 = pneg %p122
    %p129 = scmp.eq.s32.totalorder %s10, 1
    %p130 = por %p128, %p129
    %p131 = scmp.ne.s32.totalorder %s123, %s126
    %p132 = scmp.eq.s32.totalorder %s10, 0
    %p133 = por %p131, %p132
    %p134 = scmp.ne.s32.totalorder %s123, %s126
    %p135 = scmp.eq.s32.totalorder %s15, 1
    %p136 = por %p134, %p135
    %p137 = scmp.ne.s32.totalorder %s126, %s127
    %p138 = scmp.eq.s32.totalorder %s15, 0
    %p139 = por %p137, %p138
    %p140 = scmp.ne.s32.totalorder %s126, %s127
    %p141 = scmp.eq.s32.totalorder %s16, 1
    %p142 = por %p140, %p141
    %p144 = scmp.ne.s32.totalorder %s127, %s143
    %p145 = scmp.eq.s32.totalorder %s16, 0
    %p146 = por %p144, %p145
    %s147 = ssub.s32 %s17, %s36
    %s148 = ssub.s32 %s18, %s32
    %s149 = sor.u32 %s147, %s148
    %s150 = ssub.s32 %s19, %s28
    %s151 = sor.u32 %s149, %s150
    %p152 = scmp.eq.s32.totalorder %s151, 0
    %s154 = sadd.s32 %s153, 1
    %s155 = scalar_select %p152, %s153, %s154
    %p158 = pneg %p152
    %p159 = scmp.eq.s32.totalorder %s10, 1
    %p160 = por %p158, %p159
    %p161 = scmp.ne.s32.totalorder %s153, %s156
    %p162 = scmp.eq.s32.totalorder %s10, 0
    %p163 = por %p161, %p162
    %p164 = scmp.ne.s32.totalorder %s153, %s156
    %p165 = scmp.eq.s32.totalorder %s15, 1
    %p166 = por %p164, %p165
    %p167 = scmp.ne.s32.totalorder %s156, %s157
    %p168 = scmp.eq.s32.totalorder %s15, 0
    %p169 = por %p167, %p168
    %p170 = scmp.ne.s32.totalorder %s156, %s157
    %p171 = scmp.eq.s32.totalorder %s16, 1
    %p172 = por %p170, %p171
    %p174 = scmp.ne.s32.totalorder %s157, %s173
    %p175 = scmp.eq.s32.totalorder %s16, 0
    %p176 = por %p174, %p175
    %p177 = scmp.le.s32.totalorder 1, %s10
    %p178 = scmp.lt.s32.totalorder %s10, 3
    %p179 = pnand %p177, %p178
    %p180 = pneg %p179
    // Predicated region
    $region9: #{_lambda_.17} parent=5 // pred_check
      _
    $region10: #{_lambda_.17} parent=5 // pred_check_branch
      %182 = sbr.rel (%p179) target = $region12
    $region11: #{_lambda_.17} parent=5 // pred_region
      %s183 = ssub.s32 %s10, 1
      // Predicated region
      $region13: #{_lambda_.17} parent=11 // pred_check
        %p184 = pneg %p55
      $region14: #{_lambda_.17} parent=11 // pred_check_branch
        %186 = sbr.rel (%p184) target = $region16
      $region15: #{_lambda_.17} parent=11 // pred_region
        %s187 = smul.u32 4, %s21
        %p188 = scmp.lt.s32.totalorder %s187, 3
        %s189 = scalar_select %p188, %s187, 3
        %s190 = smul.addr %s189, 4
        %s191 = scalar_lea.vmem %s0, %s190
        %s192 = smul.u32 4, %s21
      $region16: #{_lambda_.17} parent=11 // pred_fallthru
        _
    $region12: #{_lambda_.17} parent=5 // pred_fallthru
      _
    %p193 = scmp.lt.s32.totalorder %s10, 2
    // Predicated region
    $region17: #{_lambda_.17} parent=5 // pred_check
      %p194 = pneg %p193
    $region18: #{_lambda_.17} parent=5 // pred_check_branch
      %196 = sbr.rel (%p194) target = $region20
    $region19: #{_lambda_.17} parent=5 // pred_region
      // Predicated region
      $region21: #{_lambda_.17} parent=19 // pred_check
        %p197 = pneg %p77
      $region22: #{_lambda_.17} parent=19 // pred_check_branch
        %199 = sbr.rel (%p197) target = $region24
      $region23: #{_lambda_.17} parent=19 // pred_region
        %s200 = smul.u32 4, %s18
        %p201 = scmp.lt.s32.totalorder %s17, 1
        %s202 = scalar_select %p201, %s17, 1
        %p203 = scmp.lt.s32.totalorder %s200, 3
        %s204 = scalar_select %p203, %s200, 3
        %s205 = smul.addr %s202, 4
        %s206 = sadd.s32 %s204, %s205
        %s207 = smul.addr %s206, 4
        %s208 = scalar_lea.vmem %s1, %s207
        %s209 = smul.u32 4, %s18
      $region24: #{_lambda_.17} parent=19 // pred_fallthru
        _
      // Predicated region
      $region25: #{_lambda_.17} parent=19 // pred_check
        %p210 = pneg %p105
      $region26: #{_lambda_.17} parent=19 // pred_check_branch
        %212 = sbr.rel (%p210) target = $region28
      $region27: #{_lambda_.17} parent=19 // pred_region
        %p213 = scmp.lt.s32.totalorder %s17, 1
        %s214 = scalar_select %p213, %s17, 1
        %p215 = scmp.lt.s32.totalorder %s19, 0
        %s216 = scalar_select %p215, %s19, 0
        %s217 = sadd.s32 %s216, %s214
        %s218 = smul.addr %s217, 4
        %s219 = scalar_lea.vmem %s2, %s218
      $region28: #{_lambda_.17} parent=19 // pred_fallthru
        _
      // Predicated region
      $region29: #{_lambda_.17} parent=19 // pred_check
        %p220 = pneg %p133
      $region30: #{_lambda_.17} parent=19 // pred_check_branch
        %222 = sbr.rel (%p220) target = $region32
      $region31: #{_lambda_.17} parent=19 // pred_region
        %p223 = scmp.lt.s32.totalorder %s17, 1
        %s224 = scalar_select %p223, %s17, 1
        %p225 = scmp.lt.s32.totalorder %s19, 0
        %s226 = scalar_select %p225, %s19, 0
        %s227 = sadd.s32 %s226, %s224
        %s228 = smul.addr %s227, 4
        %s229 = scalar_lea.vmem %s3, %s228
      $region32: #{_lambda_.17} parent=19 // pred_fallthru
        _
    $region20: #{_lambda_.17} parent=5 // pred_fallthru
      _
    %p230 = scmp.le.s32.totalorder 1, %s10
    %p231 = scmp.lt.s32.totalorder %s10, 3
    %p232 = pnand %p230, %p231
    %p233 = pneg %p232
    // Predicated region
    $region33: #{_lambda_.17} parent=5 // pred_check
      _
    $region34: #{_lambda_.17} parent=5 // pred_check_branch
      %235 = sbr.rel (%p232) target = $region36
    $region35: #{_lambda_.17} parent=5 // pred_region
      %s236 = ssub.s32 %s10, 1
      %s237 = smul.u32 4, %s21
      %p238 = scmp.lt.s32.totalorder %s237, 3
      %s239 = scalar_select %p238, %s237, 3
      %s240 = smul.addr %s239, 4
      %s241 = scalar_lea.vmem %s0, %s240
      %p242 = pneg %p55
      %p243 = pneg %p52
      %s244 = smul.u32 4, %s21
      %p245 = scmp.lt.s32.totalorder %s20, 1
      %s246 = scalar_select %p245, %s20, 1
      %p247 = scmp.lt.s32.totalorder %s244, 3
      %s248 = scalar_select %p247, %s244, 3
      %s249 = smul.addr %s246, 4
      %s250 = sadd.s32 %s248, %s249
      %s251 = smul.addr %s250, 4
      %s252 = scalar_lea.vmem %s1, %s251
      %p253 = pneg %p83
      %p254 = pneg %p80
      %p255 = scmp.lt.s32.totalorder %s20, 1
      %s256 = scalar_select %p255, %s20, 1
      %p257 = scmp.lt.s32.totalorder %s22, 0
      %s258 = scalar_select %p257, %s22, 0
      %s259 = sadd.s32 %s258, %s256
      %s260 = smul.addr %s259, 4
      %s261 = scalar_lea.vmem %s2, %s260
      %p262 = pneg %p111
      %p263 = pneg %p108
      %p264 = scmp.lt.s32.totalorder %s20, 1
      %s265 = scalar_select %p264, %s20, 1
      %p266 = scmp.lt.s32.totalorder %s22, 0
      %s267 = scalar_select %p266, %s22, 0
      %s268 = sadd.s32 %s267, %s265
      %s269 = smul.addr %s268, 4
      %s270 = scalar_lea.vmem %s3, %s269
      %p271 = pneg %p139
      %p272 = pneg %p136
      %p273 = pneg %p169
      %p274 = pneg %p166
      %s275 = smul.u32 4, %s21
      %p276 = scmp.lt.s32.totalorder %s20, 1
      %s277 = scalar_select %p276, %s20, 1
      %p278 = scmp.lt.s32.totalorder %s275, 3
      %s279 = scalar_select %p278, %s275, 3
      %p280 = scmp.lt.s32.totalorder %s22, 0
      %s281 = scalar_select %p280, %s22, 0
      %s282 = sadd.s32 %s281, %s279
      %s283 = smul.addr %s277, 4
      %s284 = sadd.s32 %s282, %s283
      %s285 = smul.addr %s284, 8
      %s286 = scalar_lea.vmem %s4, %s285
      %s287 = smul.u32 4, %s21
      %p288 = scmp.lt.s32.totalorder %s287, 3
      %s289 = scalar_select %p288, %s287, 3
      %s290 = smul.addr %s289, 4
      %s291 = scalar_lea.vmem %s0, %s290
      %s292 = smul.u32 4, %s21
      %s293 = smul.u32 4, %s21
      %p294 = scmp.lt.s32.totalorder %s20, 1
      %s295 = scalar_select %p294, %s20, 1
      %p296 = scmp.lt.s32.totalorder %s293, 3
      %s297 = scalar_select %p296, %s293, 3
      %s298 = smul.addr %s295, 4
      %s299 = sadd.s32 %s297, %s298
      %s300 = smul.addr %s299, 4
      %s301 = scalar_lea.vmem %s1, %s300
      %s302 = smul.u32 4, %s21
      %p303 = scmp.lt.s32.totalorder %s20, 1
      %s304 = scalar_select %p303, %s20, 1
      %p305 = scmp.lt.s32.totalorder %s22, 0
      %s306 = scalar_select %p305, %s22, 0
      %s307 = sadd.s32 %s306, %s304
      %s308 = smul.addr %s307, 4
      %s309 = scalar_lea.vmem %s2, %s308
      %p310 = scmp.lt.s32.totalorder %s20, 1
      %s311 = scalar_select %p310, %s20, 1
      %p312 = scmp.lt.s32.totalorder %s22, 0
      %s313 = scalar_select %p312, %s22, 0
      %s314 = sadd.s32 %s313, %s311
      %s315 = smul.addr %s314, 4
      %s316 = scalar_lea.vmem %s3, %s315
      %s317 = smul.u32 4, %s21
      %p318 = scmp.lt.s32.totalorder %s20, 1
      %s319 = scalar_select %p318, %s20, 1
      %p320 = scmp.lt.s32.totalorder %s317, 3
      %s321 = scalar_select %p320, %s317, 3
      %p322 = scmp.lt.s32.totalorder %s22, 0
      %s323 = scalar_select %p322, %s22, 0
      %s324 = sadd.s32 %s323, %s321
      %s325 = smul.addr %s319, 4
      %s326 = sadd.s32 %s324, %s325
      %s327 = smul.addr %s326, 8
      %s328 = scalar_lea.vmem %s4, %s327
      %s329 = smul.u32 4, %s21
      %v331 = vld [vmem:[%s291] sm:$0xf]
      %v332 = vld [vmem:[%s291 + $0x4] sm:$0xf]
      %v333 = vld [vmem:[%s291 + $0x8] sm:$0xf]
      %v334 = vld [vmem:[%s291 + $0xc] sm:$0xf]
      %v335 = vld [vmem:[%s309] sm:$0xf]
      %v336 = vld [vmem:[%s301] sm:$0xf]
      %v337 = vld [vmem:[%s301 + $0x4] sm:$0xf]
      %v338 = vld [vmem:[%s301 + $0x8] sm:$0xf]
      %v339 = vld [vmem:[%s301 + $0xc] sm:$0xf]
      %v340 = vld [vmem:[%s316] sm:$0xf]
      %v345 = vunpack.c.l.b16 %v336
      %v346 = vunpack.c.l.b16 %v337
      %v347 = vunpack.c.l.b16 %v338
      %v348 = vunpack.c.l.b16 %v339
      %v349 = vpack.c.b16 %v346, %v345
      %v350 = vpack.c.b16 %v348, %v347
      %vm351 = vcmask 64512
      %v353 = vsel %vm351, %v349, 0
      %v356 = vsel %vm351, %v350, 0
      %vm358 = vcmask 1043456
      %v360 = vsel %vm358, %v340, 0
      %362 = vmatprep.subr.bf16.mxu0 0
      %363 = vmatpush1.bf16.msra.mxu0 %v360
      %364 = vmatprep.subr.bf16.mxu0 0
      %365 = vmatpush1.bf16.msra.mxu0 0
      %366 = vmatprep.subr.bf16.mxu0 0
      %367 = vmatpush1.bf16.msra.mxu0 0
      %368 = vmatprep.subr.bf16.mxu0 0
      %369 = vmatpush1.bf16.msra.mxu0 0
      %370 = vmatprep.subr.bf16.mxu0 0
      %371 = vmatpush1.bf16.msra.mxu0 0
      %372 = vmatprep.subr.bf16.mxu0 0
      %373 = vmatpush1.bf16.msra.mxu0 0
      %374 = vmatprep.subr.bf16.mxu0 0
      %375 = vmatpush1.bf16.msra.mxu0 0
      %376 = vmatprep.subr.bf16.mxu0 0
      %377 = vmatpush1.bf16.msra.mxu0 0
      %378 = vmatprep.subr.bf16.mxu0 0
      %379 = vmatpush1.bf16.msra.mxu0 0
      %380 = vmatprep.subr.bf16.mxu0 0
      %381 = vmatpush1.bf16.msra.mxu0 0
      %382 = vmatprep.subr.bf16.mxu0 0
      %383 = vmatpush1.bf16.msra.mxu0 0
      %384 = vmatprep.subr.bf16.mxu0 0
      %385 = vmatpush1.bf16.msra.mxu0 0
      %386 = vmatprep.subr.bf16.mxu0 0
      %387 = vmatpush1.bf16.msra.mxu0 0
      %388 = vmatprep.subr.bf16.mxu0 0
      %389 = vmatpush1.bf16.msra.mxu0 0
      %390 = vmatprep.subr.bf16.mxu0 0
      %391 = vmatpush1.bf16.msra.mxu0 0
      %392 = vmatprep.subr.bf16.mxu0 0
      %393 = vmatpush1.bf16.msra.mxu0 0
      %394 = vmatprep.mubr.bf16.mxu0 0
      %395 = vmatmul.mubr.bf16.gmra.mrb[0].mxu0 %v353
      %v396 = vpop.f32.mrb[0].mxu0
      %v397 = vadd.f32 0.0, %v396
      %v398 = vpop.f32.mrb[0].mxu0
      %v399 = vpop.f32.mrb[0].mxu0
      %v400 = vadd.f32 0.0, %v399
      %v401 = vpop.f32.mrb[0].mxu0
      %402 = vmatprep.mubr.bf16.mxu0 0
      %403 = vmatmul.mubr.bf16.gmra.mrb[0].mxu0 %v356
      %v404 = vpop.f32.mrb[0].mxu0
      %v405 = vadd.f32 0.0, %v404
      %v406 = vpop.f32.mrb[0].mxu0
      %v407 = vpop.f32.mrb[0].mxu0
      %v408 = vadd.f32 0.0, %v407
      %v409 = vpop.f32.mrb[0].mxu0
      %410 = vdwg.mxu0
      %v415 = vunpack.c.l.b16 %v331
      %v416 = vunpack.c.l.b16 %v332
      %v417 = vunpack.c.l.b16 %v333
      %v418 = vunpack.c.l.b16 %v334
      %v419 = vpack.c.b16 %v416, %v415
      %v420 = vpack.c.b16 %v418, %v417
      %v422 = vsel %vm351, %v419, 0
      %v425 = vsel %vm351, %v420, 0
      %v428 = vsel %vm358, %v335, 0
      %430 = vmatprep.subr.bf16.mxu0 0
      %431 = vmatpush1.bf16.msra.mxu0 %v428
      %432 = vmatprep.subr.bf16.mxu0 0
      %433 = vmatpush1.bf16.msra.mxu0 0
      %434 = vmatprep.subr.bf16.mxu0 0
      %435 = vmatpush1.bf16.msra.mxu0 0
      %436 = vmatprep.subr.bf16.mxu0 0
      %437 = vmatpush1.bf16.msra.mxu0 0
      %438 = vmatprep.subr.bf16.mxu0 0
      %439 = vmatpush1.bf16.msra.mxu0 0
      %440 = vmatprep.subr.bf16.mxu0 0
      %441 = vmatpush1.bf16.msra.mxu0 0
      %442 = vmatprep.subr.bf16.mxu0 0
      %443 = vmatpush1.bf16.msra.mxu0 0
      %444 = vmatprep.subr.bf16.mxu0 0
      %445 = vmatpush1.bf16.msra.mxu0 0
      %446 = vmatprep.subr.bf16.mxu0 0
      %447 = vmatpush1.bf16.msra.mxu0 0
      %448 = vmatprep.subr.bf16.mxu0 0
      %449 = vmatpush1.bf16.msra.mxu0 0
      %450 = vmatprep.subr.bf16.mxu0 0
      %451 = vmatpush1.bf16.msra.mxu0 0
      %452 = vmatprep.subr.bf16.mxu0 0
      %453 = vmatpush1.bf16.msra.mxu0 0
      %454 = vmatprep.subr.bf16.mxu0 0
      %455 = vmatpush1.bf16.msra.mxu0 0
      %456 = vmatprep.subr.bf16.mxu0 0
      %457 = vmatpush1.bf16.msra.mxu0 0
      %458 = vmatprep.subr.bf16.mxu0 0
      %459 = vmatpush1.bf16.msra.mxu0 0
      %460 = vmatprep.subr.bf16.mxu0 0
      %461 = vmatpush1.bf16.msra.mxu0 0
      %462 = vmatprep.mubr.bf16.mxu0 0
      %463 = vmatmul.mubr.bf16.gmra.mrb[0].mxu0 %v422
      %v464 = vpop.f32.mrb[0].mxu0
      %v465 = vadd.f32 %v397, %v464
      %v466 = vpop.f32.mrb[0].mxu0
      %v467 = vpop.f32.mrb[0].mxu0
      %v468 = vadd.f32 %v400, %v467
      %v469 = vpop.f32.mrb[0].mxu0
      %470 = vmatprep.mubr.bf16.mxu0 0
      %471 = vmatmul.mubr.bf16.gmra.mrb[0].mxu0 %v425
      %v472 = vpop.f32.mrb[0].mxu0
      %v473 = vadd.f32 %v405, %v472
      %v474 = vpop.f32.mrb[0].mxu0
      %v475 = vpop.f32.mrb[0].mxu0
      %v476 = vadd.f32 %v408, %v475
      %v477 = vpop.f32.mrb[0].mxu0
      %478 = vdwg.mxu0
      %vm479 = vcmask 523264
      %480 = vst.msk [vmem:[%s328] sm:$0xff] %vm479, %v465
      %481 = vst.msk [vmem:[%s328 + $0x8] sm:$0xff] %vm479, %v468
      %482 = vst.msk [vmem:[%s328 + $0x10] sm:$0xff] %vm479, %v473
      %483 = vst.msk [vmem:[%s328 + $0x18] sm:$0xff] %vm479, %v476
      %s484 = smul.u32 4, %s21
      %p485 = scmp.lt.s32.totalorder %s20, 1
      %s486 = scalar_select %p485, %s20, 1
      %p487 = scmp.lt.s32.totalorder %s484, 3
      %s488 = scalar_select %p487, %s484, 3
      %p489 = scmp.lt.s32.totalorder %s22, 0
      %s490 = scalar_select %p489, %s22, 0
      %s491 = sadd.s32 %s490, %s488
      %s492 = smul.addr %s486, 4
      %s493 = sadd.s32 %s491, %s492
      %s494 = smul.addr %s493, 8
      %s495 = scalar_lea.vmem %s4, %s494
      // Predicated region
      $region37: #{_lambda_.17} parent=35 // pred_check
        %p496 = pneg %p166
      $region38: #{_lambda_.17} parent=35 // pred_check_branch
        %498 = sbr.rel (%p496) target = $region40
      $region39: #{_lambda_.17} parent=35 // pred_region
        %s499 = smul.u32 4, %s21
      $region40: #{_lambda_.17} parent=35 // pred_fallthru
        _
    $region36: #{_lambda_.17} parent=5 // pred_fallthru
      _
    %p500 = scmp.le.s32.totalorder 2, %s10
    // Predicated region
    $region41: #{_lambda_.17} parent=5 // pred_check
      %p501 = pneg %p500
    $region42: #{_lambda_.17} parent=5 // pred_check_branch
      %503 = sbr.rel (%p501) target = $region44
    $region43: #{_lambda_.17} parent=5 // pred_region
      %s504 = ssub.s32 %s10, 2
      // Predicated region
      $region45: #{_lambda_.17} parent=43 // pred_check
        %p505 = pneg %p172
      $region46: #{_lambda_.17} parent=43 // pred_check_branch
        %507 = sbr.rel (%p505) target = $region48
      $region47: #{_lambda_.17} parent=43 // pred_region
        %s508 = smul.u32 4, %s24
        %p509 = scmp.lt.s32.totalorder %s23, 1
        %s510 = scalar_select %p509, %s23, 1
        %p511 = scmp.lt.s32.totalorder %s508, 3
        %s512 = scalar_select %p511, %s508, 3
        %p513 = scmp.lt.s32.totalorder %s25, 0
        %s514 = scalar_select %p513, %s25, 0
        %s515 = sadd.s32 %s514, %s512
        %s516 = smul.addr %s510, 4
        %s517 = sadd.s32 %s515, %s516
        %s518 = smul.addr %s517, 8
        %s519 = scalar_lea.vmem %s4, %s518
      $region48: #{_lambda_.17} parent=43 // pred_fallthru
        _
    $region44: #{_lambda_.17} parent=5 // pred_fallthru
      _
  $region6: #{_lambda_.17} parent=0 // loop_footer
    %s14 = sadd.s32 1, %s10
  $region7: #{_lambda_.17} parent=0 // loop_footer_branch
    %9 = sbr.rel target = $region3
  $region8: #{_lambda_.17} parent=0 // loop_exit
    _

// kernel: _lambda_.19
$region0: #{_lambda_.19}
  #allocation0 [shape = 'u32[]', space=smem, size = 0x4, offset = 0x4, fixed_abs, tag = 'smem constant byte address 0x4 - core index']
  #allocation1 [shape = 'u32[144,128]{1,0:T(1,128)}', space=vmem, size = 0x12000, scoped, tag = 'internal scratch']
  %s0 = inlined_call_operand.vmem [shape: f32[2,128,4], index: 0, kind: input, shape index: {}]
  %s1 = inlined_call_operand.vmem [shape: f32[2,1,4], index: 1, kind: input, shape index: {}]
  %s2 = inlined_call_operand.vmem [shape: f32[2,1,4], index: 2, kind: input, shape index: {}]
  %s3 = inlined_call_operand.vmem [shape: f32[2,128,4], index: 3, kind: output, shape index: {}]
  %s4 = sld [smem:[#allocation0]]
  $region45: #{_lambda_.19} parent=0
    _
  %s6 = ssub.s32 1, %s4
  %s7 = scalar_select 0, %s6, %s4
  loop: start=0, step=1, limit=4
  $region2: #{_lambda_.19} parent=0 // loop_pre_header
    _
  $region3: #{_lambda_.19} parent=0 // loop_header
    %s9 = sphi 0, %s13
    %p10 = scmp.ge.s32.totalorder %s9, 4
    %s16 = sphi 0, %s28
    %s17 = sphi 0, %s24
    %s18 = sphi 0, %s16
    %s19 = sphi 0, %s17
    %s20 = sphi 0, %s18
    %s21 = sphi 0, %s19
    %s33 = sphi 0, %s35
    %s36 = sphi 0, %s33
    %s37 = sphi 0, %s36
    %s53 = sphi 0, %s37
    %s61 = sphi 0, %s63
    %s64 = sphi 0, %s61
    %s65 = sphi 0, %s64
    %s81 = sphi 0, %s65
    %s89 = sphi 0, %s91
    %s92 = sphi 0, %s89
    %s93 = sphi 0, %s92
    %s109 = sphi 0, %s93
    %s117 = sphi 0, %s119
    %s120 = sphi 0, %s117
    %s121 = sphi 0, %s120
    %s137 = sphi 0, %s121
  $region4: #{_lambda_.19} parent=0 // loop_header_branch
    %12 = sbr.rel (%p10) target = $region8
  $region5: #{_lambda_.19} parent=0 // loop_body
    %s14 = ssub.s32 %s9, 1
    %s15 = ssub.s32 %s9, 2
    %s22 = sadd.s32 1, %s17
    %p23 = scmp.ge.s32.totalorder %s22, 1
    %s24 = scalar_select %p23, 0, %s22
    %s25 = sadd.s32 1, %s16
    %s26 = scalar_select %p23, %s25, %s16
    %p27 = scmp.ge.s32.totalorder %s26, 2
    %s28 = scalar_select %p27, 0, %s26
    %s29 = ssub.s32 %s16, %s28
    %s30 = ssub.s32 %s17, %s24
    %s31 = sor.u32 %s29, %s30
    %p32 = scmp.eq.s32.totalorder %s31, 0
    %s34 = sadd.s32 %s33, 1
    %s35 = scalar_select %p32, %s33, %s34
    %p38 = pneg %p32
    %p39 = scmp.eq.s32.totalorder %s9, 1
    %p40 = por %p38, %p39
    %p41 = scmp.ne.s32.totalorder %s33, %s36
    %p42 = scmp.eq.s32.totalorder %s9, 0
    %p43 = por %p41, %p42
    %p44 = scmp.ne.s32.totalorder %s33, %s36
    %p45 = scmp.eq.s32.totalorder %s14, 1
    %p46 = por %p44, %p45
    %p47 = scmp.ne.s32.totalorder %s36, %s37
    %p48 = scmp.eq.s32.totalorder %s14, 0
    %p49 = por %p47, %p48
    %p50 = scmp.ne.s32.totalorder %s36, %s37
    %p51 = scmp.eq.s32.totalorder %s15, 1
    %p52 = por %p50, %p51
    %p54 = scmp.ne.s32.totalorder %s37, %s53
    %p55 = scmp.eq.s32.totalorder %s15, 0
    %p56 = por %p54, %p55
    %s57 = ssub.s32 %s16, %s28
    %s58 = ssub.s32 %s17, %s24
    %s59 = sor.u32 %s57, %s58
    %p60 = scmp.eq.s32.totalorder %s59, 0
    %s62 = sadd.s32 %s61, 1
    %s63 = scalar_select %p60, %s61, %s62
    %p66 = pneg %p60
    %p67 = scmp.eq.s32.totalorder %s9, 1
    %p68 = por %p66, %p67
    %p69 = scmp.ne.s32.totalorder %s61, %s64
    %p70 = scmp.eq.s32.totalorder %s9, 0
    %p71 = por %p69, %p70
    %p72 = scmp.ne.s32.totalorder %s61, %s64
    %p73 = scmp.eq.s32.totalorder %s14, 1
    %p74 = por %p72, %p73
    %p75 = scmp.ne.s32.totalorder %s64, %s65
    %p76 = scmp.eq.s32.totalorder %s14, 0
    %p77 = por %p75, %p76
    %p78 = scmp.ne.s32.totalorder %s64, %s65
    %p79 = scmp.eq.s32.totalorder %s15, 1
    %p80 = por %p78, %p79
    %p82 = scmp.ne.s32.totalorder %s65, %s81
    %p83 = scmp.eq.s32.totalorder %s15, 0
    %p84 = por %p82, %p83
    %s85 = ssub.s32 %s16, %s28
    %s86 = ssub.s32 %s17, %s24
    %s87 = sor.u32 %s85, %s86
    %p88 = scmp.eq.s32.totalorder %s87, 0
    %s90 = sadd.s32 %s89, 1
    %s91 = scalar_select %p88, %s89, %s90
    %p94 = pneg %p88
    %p95 = scmp.eq.s32.totalorder %s9, 1
    %p96 = por %p94, %p95
    %p97 = scmp.ne.s32.totalorder %s89, %s92
    %p98 = scmp.eq.s32.totalorder %s9, 0
    %p99 = por %p97, %p98
    %p100 = scmp.ne.s32.totalorder %s89, %s92
    %p101 = scmp.eq.s32.totalorder %s14, 1
    %p102 = por %p100, %p101
    %p103 = scmp.ne.s32.totalorder %s92, %s93
    %p104 = scmp.eq.s32.totalorder %s14, 0
    %p105 = por %p103, %p104
    %p106 = scmp.ne.s32.totalorder %s92, %s93
    %p107 = scmp.eq.s32.totalorder %s15, 1
    %p108 = por %p106, %p107
    %p110 = scmp.ne.s32.totalorder %s93, %s109
    %p111 = scmp.eq.s32.totalorder %s15, 0
    %p112 = por %p110, %p111
    %s113 = ssub.s32 %s16, %s28
    %s114 = ssub.s32 %s17, %s24
    %s115 = sor.u32 %s113, %s114
    %p116 = scmp.eq.s32.totalorder %s115, 0
    %s118 = sadd.s32 %s117, 1
    %s119 = scalar_select %p116, %s117, %s118
    %p122 = pneg %p116
    %p123 = scmp.eq.s32.totalorder %s9, 1
    %p124 = por %p122, %p123
    %p125 = scmp.ne.s32.totalorder %s117, %s120
    %p126 = scmp.eq.s32.totalorder %s9, 0
    %p127 = por %p125, %p126
    %p128 = scmp.ne.s32.totalorder %s117, %s120
    %p129 = scmp.eq.s32.totalorder %s14, 1
    %p130 = por %p128, %p129
    %p131 = scmp.ne.s32.totalorder %s120, %s121
    %p132 = scmp.eq.s32.totalorder %s14, 0
    %p133 = por %p131, %p132
    %p134 = scmp.ne.s32.totalorder %s120, %s121
    %p135 = scmp.eq.s32.totalorder %s15, 1
    %p136 = por %p134, %p135
    %p138 = scmp.ne.s32.totalorder %s121, %s137
    %p139 = scmp.eq.s32.totalorder %s15, 0
    %p140 = por %p138, %p139
    %p141 = scmp.le.s32.totalorder 1, %s9
    %p142 = scmp.lt.s32.totalorder %s9, 3
    %p143 = pnand %p141, %p142
    %p144 = pneg %p143
    // Predicated region
    $region9: #{_lambda_.19} parent=5 // pred_check
      _
    $region10: #{_lambda_.19} parent=5 // pred_check_branch
      %146 = sbr.rel (%p143) target = $region12
    $region11: #{_lambda_.19} parent=5 // pred_region
      %s147 = ssub.s32 %s9, 1
    $region12: #{_lambda_.19} parent=5 // pred_fallthru
      _
    %p148 = scmp.lt.s32.totalorder %s9, 2
    // Predicated region
    $region13: #{_lambda_.19} parent=5 // pred_check
      %p149 = pneg %p148
    $region14: #{_lambda_.19} parent=5 // pred_check_branch
      %151 = sbr.rel (%p149) target = $region16
    $region15: #{_lambda_.19} parent=5 // pred_region
      // Predicated region
      $region17: #{_lambda_.19} parent=15 // pred_check
        %p152 = pneg %p43
      $region18: #{_lambda_.19} parent=15 // pred_check_branch
        %154 = sbr.rel (%p152) target = $region20
      $region19: #{_lambda_.19} parent=15 // pred_region
        %p155 = scmp.lt.s32.totalorder %s16, 1
        %s156 = scalar_select %p155, %s16, 1
        %p157 = scmp.lt.s32.totalorder %s17, 0
        %s158 = scalar_select %p157, %s17, 0
        %s159 = smul.addr %s156, 16
        %s160 = sadd.s32 %s158, %s159
        %s161 = smul.addr %s160, 8
        %s162 = scalar_lea.vmem %s0, %s161
      $region20: #{_lambda_.19} parent=15 // pred_fallthru
        _
      // Predicated region
      $region21: #{_lambda_.19} parent=15 // pred_check
        %p163 = pneg %p71
      $region22: #{_lambda_.19} parent=15 // pred_check_branch
        %165 = sbr.rel (%p163) target = $region24
      $region23: #{_lambda_.19} parent=15 // pred_region
        %p166 = scmp.lt.s32.totalorder %s16, 1
        %s167 = scalar_select %p166, %s16, 1
        %p168 = scmp.lt.s32.totalorder %s17, 0
        %s169 = scalar_select %p168, %s17, 0
        %s170 = sadd.s32 %s169, %s167
        %s171 = scalar_lea.vmem %s1, %s170
      $region24: #{_lambda_.19} parent=15 // pred_fallthru
        _
      // Predicated region
      $region25: #{_lambda_.19} parent=15 // pred_check
        %p172 = pneg %p99
      $region26: #{_lambda_.19} parent=15 // pred_check_branch
        %174 = sbr.rel (%p172) target = $region28
      $region27: #{_lambda_.19} parent=15 // pred_region
        %p175 = scmp.lt.s32.totalorder %s16, 1
        %s176 = scalar_select %p175, %s16, 1
        %p177 = scmp.lt.s32.totalorder %s17, 0
        %s178 = scalar_select %p177, %s17, 0
        %s179 = sadd.s32 %s178, %s176
        %s180 = scalar_lea.vmem %s2, %s179
      $region28: #{_lambda_.19} parent=15 // pred_fallthru
        _
    $region16: #{_lambda_.19} parent=5 // pred_fallthru
      _
    %p181 = scmp.le.s32.totalorder 1, %s9
    %p182 = scmp.lt.s32.totalorder %s9, 3
    %p183 = pnand %p181, %p182
    %p184 = pneg %p183
    // Predicated region
    $region29: #{_lambda_.19} parent=5 // pred_check
      _
    $region30: #{_lambda_.19} parent=5 // pred_check_branch
      %186 = sbr.rel (%p183) target = $region32
    $region31: #{_lambda_.19} parent=5 // pred_region
      %s187 = ssub.s32 %s9, 1
      %p188 = scmp.lt.s32.totalorder %s18, 1
      %s189 = scalar_select %p188, %s18, 1
      %p190 = scmp.lt.s32.totalorder %s19, 0
      %s191 = scalar_select %p190, %s19, 0
      %s192 = smul.addr %s189, 16
      %s193 = sadd.s32 %s191, %s192
      %s194 = smul.addr %s193, 8
      %s195 = scalar_lea.vmem %s0, %s194
      %p196 = pneg %p49
      %p197 = pneg %p46
      %p198 = scmp.lt.s32.totalorder %s18, 1
      %s199 = scalar_select %p198, %s18, 1
      %p200 = scmp.lt.s32.totalorder %s19, 0
      %s201 = scalar_select %p200, %s19, 0
      %s202 = sadd.s32 %s201, %s199
      %s203 = scalar_lea.vmem %s1, %s202
      %p204 = pneg %p77
      %p205 = pneg %p74
      %p206 = scmp.lt.s32.totalorder %s18, 1
      %s207 = scalar_select %p206, %s18, 1
      %p208 = scmp.lt.s32.totalorder %s19, 0
      %s209 = scalar_select %p208, %s19, 0
      %s210 = sadd.s32 %s209, %s207
      %s211 = scalar_lea.vmem %s2, %s210
      %p212 = pneg %p105
      %p213 = pneg %p102
      %p214 = pneg %p133
      %p215 = pneg %p130
      %p216 = scmp.lt.s32.totalorder %s18, 1
      %s217 = scalar_select %p216, %s18, 1
      %p218 = scmp.lt.s32.totalorder %s19, 0
      %s219 = scalar_select %p218, %s19, 0
      %s220 = smul.addr %s217, 16
      %s221 = sadd.s32 %s219, %s220
      %s222 = smul.addr %s221, 8
      %s223 = scalar_lea.vmem %s3, %s222
      %p224 = scmp.lt.s32.totalorder %s18, 1
      %s225 = scalar_select %p224, %s18, 1
      %p226 = scmp.lt.s32.totalorder %s19, 0
      %s227 = scalar_select %p226, %s19, 0
      %s228 = smul.addr %s225, 16
      %s229 = sadd.s32 %s227, %s228
      %s230 = smul.addr %s229, 8
      %s231 = scalar_lea.vmem %s0, %s230
      %p232 = scmp.lt.s32.totalorder %s18, 1
      %s233 = scalar_select %p232, %s18, 1
      %p234 = scmp.lt.s32.totalorder %s19, 0
      %s235 = scalar_select %p234, %s19, 0
      %s236 = sadd.s32 %s235, %s233
      %s237 = scalar_lea.vmem %s1, %s236
      %p238 = scmp.lt.s32.totalorder %s18, 1
      %s239 = scalar_select %p238, %s18, 1
      %p240 = scmp.lt.s32.totalorder %s19, 0
      %s241 = scalar_select %p240, %s19, 0
      %s242 = sadd.s32 %s241, %s239
      %s243 = scalar_lea.vmem %s2, %s242
      %p244 = scmp.lt.s32.totalorder %s18, 1
      %s245 = scalar_select %p244, %s18, 1
      %p246 = scmp.lt.s32.totalorder %s19, 0
      %s247 = scalar_select %p246, %s19, 0
      %s248 = smul.addr %s245, 16
      %s249 = sadd.s32 %s247, %s248
      %s250 = smul.addr %s249, 8
      %s251 = scalar_lea.vmem %s3, %s250
      %v252 = vld [vmem:[%s231] sm:$0xff]
      %v253 = vld [vmem:[%s231 + $0x8] sm:$0xff]
      %v254 = vld [vmem:[%s231 + $0x10] sm:$0xff]
      %v255 = vld [vmem:[%s231 + $0x18] sm:$0xff]
      %v256 = vld [vmem:[%s231 + $0x20] sm:$0xff]
      %v257 = vld [vmem:[%s231 + $0x28] sm:$0xff]
      %v258 = vld [vmem:[%s231 + $0x30] sm:$0xff]
      %v259 = vld [vmem:[%s231 + $0x38] sm:$0xff]
      %v260 = vld [vmem:[%s231 + $0x40] sm:$0xff]
      %v261 = vld [vmem:[%s231 + $0x48] sm:$0xff]
      %v262 = vld [vmem:[%s231 + $0x50] sm:$0xff]
      %v263 = vld [vmem:[%s231 + $0x58] sm:$0xff]
      %v264 = vld [vmem:[%s231 + $0x60] sm:$0xff]
      %v265 = vld [vmem:[%s231 + $0x68] sm:$0xff]
      %v266 = vld [vmem:[%s231 + $0x70] sm:$0xff]
      %v267 = vld [vmem:[%s231 + $0x78] sm:$0xff]
      %vm268 = vcmask 31744
      %v269 = vsel %vm268, %v252, 0.0
      %v270 = vsel %vm268, %v253, 0.0
      %v271 = vadd.f32 %v269, %v270
      %v272 = vsel %vm268, %v254, 0.0
      %v273 = vadd.f32 %v271, %v272
      %v274 = vsel %vm268, %v255, 0.0
      %v275 = vadd.f32 %v273, %v274
      %v276 = vsel %vm268, %v256, 0.0
      %v277 = vadd.f32 %v275, %v276
      %v278 = vsel %vm268, %v257, 0.0
      %v279 = vadd.f32 %v277, %v278
      %v280 = vsel %vm268, %v258, 0.0
      %v281 = vadd.f32 %v279, %v280
      %v282 = vsel %vm268, %v259, 0.0
      %v283 = vadd.f32 %v281, %v282
      %v284 = vsel %vm268, %v260, 0.0
      %v285 = vadd.f32 %v283, %v284
      %v286 = vsel %vm268, %v261, 0.0
      %v287 = vadd.f32 %v285, %v286
      %v288 = vsel %vm268, %v262, 0.0
      %v289 = vadd.f32 %v287, %v288
      %v290 = vsel %vm268, %v263, 0.0
      %v291 = vadd.f32 %v289, %v290
      %v292 = vsel %vm268, %v264, 0.0
      %v293 = vadd.f32 %v291, %v292
      %v294 = vsel %vm268, %v265, 0.0
      %v295 = vadd.f32 %v293, %v294
      %v296 = vsel %vm268, %v266, 0.0
      %v297 = vadd.f32 %v295, %v296
      %v298 = vsel %vm268, %v267, 0.0
      %v299 = vadd.f32 %v297, %v298
      %v300 = vrot.slane %v299, 4
      %v301 = vadd.f32 %v299, %v300
      %v302 = vrot.slane %v301, 2
      %v303 = vadd.f32 %v301, %v302
      %v304 = vrot.slane %v303, 1
      %v305 = vadd.f32 %v303, %v304
      %v306 = vmul.f32 %v305, 0.0078125
      %v307 = vsub.f32 %v252, %v306
      %v308 = vsub.f32 %v253, %v306
      %v309 = vsub.f32 %v254, %v306
      %v310 = vsub.f32 %v255, %v306
      %v311 = vsub.f32 %v256, %v306
      %v312 = vsub.f32 %v257, %v306
      %v313 = vsub.f32 %v258, %v306
      %v314 = vsub.f32 %v259, %v306
      %v315 = vsub.f32 %v260, %v306
      %v316 = vsub.f32 %v261, %v306
      %v317 = vsub.f32 %v262, %v306
      %v318 = vsub.f32 %v263, %v306
      %v319 = vsub.f32 %v264, %v306
      %v320 = vsub.f32 %v265, %v306
      %v321 = vsub.f32 %v266, %v306
      %v322 = vsub.f32 %v267, %v306
      %v323 = vmul.f32 %v307, %v307
      %v324 = vmul.f32 %v308, %v308
      %v325 = vmul.f32 %v309, %v309
      %v326 = vmul.f32 %v310, %v310
      %v327 = vmul.f32 %v311, %v311
      %v328 = vmul.f32 %v312, %v312
      %v329 = vmul.f32 %v313, %v313
      %v330 = vmul.f32 %v314, %v314
      %v331 = vmul.f32 %v315, %v315
      %v332 = vmul.f32 %v316, %v316
      %v333 = vmul.f32 %v317, %v317
      %v334 = vmul.f32 %v318, %v318
      %v335 = vmul.f32 %v319, %v319
      %v336 = vmul.f32 %v320, %v320
      %v337 = vmul.f32 %v321, %v321
      %v338 = vmul.f32 %v322, %v322
      %v339 = vsel %vm268, %v323, 0.0
      %v340 = vsel %vm268, %v324, 0.0
      %v341 = vadd.f32 %v339, %v340
      %v342 = vsel %vm268, %v325, 0.0
      %v343 = vadd.f32 %v341, %v342
      %v344 = vsel %vm268, %v326, 0.0
      %v345 = vadd.f32 %v343, %v344
      %v346 = vsel %vm268, %v327, 0.0
      %v347 = vadd.f32 %v345, %v346
      %v348 = vsel %vm268, %v328, 0.0
      %v349 = vadd.f32 %v347, %v348
      %v350 = vsel %vm268, %v329, 0.0
      %v351 = vadd.f32 %v349, %v350
      %v352 = vsel %vm268, %v330, 0.0
      %v353 = vadd.f32 %v351, %v352
      %v354 = vsel %vm268, %v331, 0.0
      %v355 = vadd.f32 %v353, %v354
      %v356 = vsel %vm268, %v332, 0.0
      %v357 = vadd.f32 %v355, %v356
      %v358 = vsel %vm268, %v333, 0.0
      %v359 = vadd.f32 %v357, %v358
      %v360 = vsel %vm268, %v334, 0.0
      %v361 = vadd.f32 %v359, %v360
      %v362 = vsel %vm268, %v335, 0.0
      %v363 = vadd.f32 %v361, %v362
      %v364 = vsel %vm268, %v336, 0.0
      %v365 = vadd.f32 %v363, %v364
      %v366 = vsel %vm268, %v337, 0.0
      %v367 = vadd.f32 %v365, %v366
      %v368 = vsel %vm268, %v338, 0.0
      %v369 = vadd.f32 %v367, %v368
      %v370 = vrot.slane %v369, 4
      %v371 = vadd.f32 %v369, %v370
      %v372 = vrot.slane %v371, 2
      %v373 = vadd.f32 %v371, %v372
      %v374 = vrot.slane %v373, 1
      %v375 = vadd.f32 %v373, %v374
      %v376 = vmul.f32 %v375, 0.0078125
      %v377 = vadd.f32 %v376, 1e-05
      %v378 = vrsqrt.pop %v377
      %v379 = vmul.f32 %v307, %v378
      %v380 = vmul.f32 %v308, %v378
      %v381 = vmul.f32 %v309, %v378
      %v382 = vmul.f32 %v310, %v378
      %v383 = vmul.f32 %v311, %v378
      %v384 = vmul.f32 %v312, %v378
      %v385 = vmul.f32 %v313, %v378
      %v386 = vmul.f32 %v314, %v378
      %v387 = vmul.f32 %v315, %v378
      %v388 = vmul.f32 %v316, %v378
      %v389 = vmul.f32 %v317, %v378
      %v390 = vmul.f32 %v318, %v378
      %v391 = vmul.f32 %v319, %v378
      %v392 = vmul.f32 %v320, %v378
      %v393 = vmul.f32 %v321, %v378
      %v394 = vmul.f32 %v322, %v378
      %v395 = vld [vmem:[%s237] sm:$0x1]
      %v397 = vlaneseq
      %v398 = vshrl.u32 %v397, 7
      %v399 = vsub.s32 0, %v398
      %v400 = vrot.slane %v395, %v399
      %v402 = vmul.f32 %v379, %v400
      %v403 = vmul.f32 %v380, %v400
      %v404 = vmul.f32 %v381, %v400
      %v405 = vmul.f32 %v382, %v400
      %v406 = vmul.f32 %v383, %v400
      %v407 = vmul.f32 %v384, %v400
      %v408 = vmul.f32 %v385, %v400
      %v409 = vmul.f32 %v386, %v400
      %v410 = vmul.f32 %v387, %v400
      %v411 = vmul.f32 %v388, %v400
      %v412 = vmul.f32 %v389, %v400
      %v413 = vmul.f32 %v390, %v400
      %v414 = vmul.f32 %v391, %v400
      %v415 = vmul.f32 %v392, %v400
      %v416 = vmul.f32 %v393, %v400
      %v417 = vmul.f32 %v394, %v400
      %v418 = vld [vmem:[%s243] sm:$0x1]
      %v420 = vlaneseq
      %v421 = vshrl.u32 %v420, 7
      %v422 = vsub.s32 0, %v421
      %v423 = vrot.slane %v418, %v422
      %v425 = vadd.f32 %v402, %v423
      %v426 = vadd.f32 %v403, %v423
      %v427 = vadd.f32 %v404, %v423
      %v428 = vadd.f32 %v405, %v423
      %v429 = vadd.f32 %v406, %v423
      %v430 = vadd.f32 %v407, %v423
      %v431 = vadd.f32 %v408, %v423
      %v432 = vadd.f32 %v409, %v423
      %v433 = vadd.f32 %v410, %v423
      %v434 = vadd.f32 %v411, %v423
      %v435 = vadd.f32 %v412, %v423
      %v436 = vadd.f32 %v413, %v423
      %v437 = vadd.f32 %v414, %v423
      %v438 = vadd.f32 %v415, %v423
      %v439 = vadd.f32 %v416, %v423
      %v440 = vadd.f32 %v417, %v423
      %v441 = vmax.f32 %v425, 0.0
      %v442 = vmax.f32 %v426, 0.0
      %v443 = vmax.f32 %v427, 0.0
      %v444 = vmax.f32 %v428, 0.0
      %v445 = vmax.f32 %v429, 0.0
      %v446 = vmax.f32 %v430, 0.0
      %v447 = vmax.f32 %v431, 0.0
      %v448 = vmax.f32 %v432, 0.0
      %v449 = vmax.f32 %v433, 0.0
      %v450 = vmax.f32 %v434, 0.0
      %v451 = vmax.f32 %v435, 0.0
      %v452 = vmax.f32 %v436, 0.0
      %v453 = vmax.f32 %v437, 0.0
      %v454 = vmax.f32 %v438, 0.0
      %v455 = vmax.f32 %v439, 0.0
      %v456 = vmax.f32 %v440, 0.0
      %457 = vst.msk [vmem:[%s251] sm:$0xff] %vm268, %v441
      %458 = vst.msk [vmem:[%s251 + $0x8] sm:$0xff] %vm268, %v442
      %459 = vst.msk [vmem:[%s251 + $0x10] sm:$0xff] %vm268, %v443
      %460 = vst.msk [vmem:[%s251 + $0x18] sm:$0xff] %vm268, %v444
      %461 = vst.msk [vmem:[%s251 + $0x20] sm:$0xff] %vm268, %v445
      %462 = vst.msk [vmem:[%s251 + $0x28] sm:$0xff] %vm268, %v446
      %463 = vst.msk [vmem:[%s251 + $0x30] sm:$0xff] %vm268, %v447
      %464 = vst.msk [vmem:[%s251 + $0x38] sm:$0xff] %vm268, %v448
      %465 = vst.msk [vmem:[%s251 + $0x40] sm:$0xff] %vm268, %v449
      %466 = vst.msk [vmem:[%s251 + $0x48] sm:$0xff] %vm268, %v450
      %467 = vst.msk [vmem:[%s251 + $0x50] sm:$0xff] %vm268, %v451
      %468 = vst.msk [vmem:[%s251 + $0x58] sm:$0xff] %vm268, %v452
      %469 = vst.msk [vmem:[%s251 + $0x60] sm:$0xff] %vm268, %v453
      %470 = vst.msk [vmem:[%s251 + $0x68] sm:$0xff] %vm268, %v454
      %471 = vst.msk [vmem:[%s251 + $0x70] sm:$0xff] %vm268, %v455
      %472 = vst.msk [vmem:[%s251 + $0x78] sm:$0xff] %vm268, %v456
      %p473 = scmp.lt.s32.totalorder %s18, 1
      %s474 = scalar_select %p473, %s18, 1
      %p475 = scmp.lt.s32.totalorder %s19, 0
      %s476 = scalar_select %p475, %s19, 0
      %s477 = smul.addr %s474, 16
      %s478 = sadd.s32 %s476, %s477
      %s479 = smul.addr %s478, 8
      %s480 = scalar_lea.vmem %s3, %s479
      // Predicated region
      $region33: #{_lambda_.19} parent=31 // pred_check
        %p481 = pneg %p130
      $region34: #{_lambda_.19} parent=31 // pred_check_branch
        %483 = sbr.rel (%p481) target = $region36
      $region35: #{_lambda_.19} parent=31 // pred_region
        _
      $region36: #{_lambda_.19} parent=31 // pred_fallthru
        _
    $region32: #{_lambda_.19} parent=5 // pred_fallthru
      _
    %p484 = scmp.le.s32.totalorder 2, %s9
    // Predicated region
    $region37: #{_lambda_.19} parent=5 // pred_check
      %p485 = pneg %p484
    $region38: #{_lambda_.19} parent=5 // pred_check_branch
      %487 = sbr.rel (%p485) target = $region40
    $region39: #{_lambda_.19} parent=5 // pred_region
      %s488 = ssub.s32 %s9, 2
      // Predicated region
      $region41: #{_lambda_.19} parent=39 // pred_check
        %p489 = pneg %p136
      $region42: #{_lambda_.19} parent=39 // pred_check_branch
        %491 = sbr.rel (%p489) target = $region44
      $region43: #{_lambda_.19} parent=39 // pred_region
        %p492 = scmp.lt.s32.totalorder %s20, 1
        %s493 = scalar_select %p492, %s20, 1
        %p494 = scmp.lt.s32.totalorder %s21, 0
        %s495 = scalar_select %p494, %s21, 0
        %s496 = smul.addr %s493, 16
        %s497 = sadd.s32 %s495, %s496
        %s498 = smul.addr %s497, 8
        %s499 = scalar_lea.vmem %s3, %s498
      $region44: #{_lambda_.19} parent=39 // pred_fallthru
        _
    $region40: #{_lambda_.19} parent=5 // pred_fallthru
      _
  $region6: #{_lambda_.19} parent=0 // loop_footer
    %s13 = sadd.s32 1, %s9
  $region7: #{_lambda_.19} parent=0 // loop_footer_branch
    %8 = sbr.rel target = $region3
  $region8: #{_lambda_.19} parent=0 // loop_exit
    _

// kernel: _lambda_.21
$region0: #{_lambda_.21}
  #allocation0 [shape = 'u32[]', space=smem, size = 0x4, offset = 0x4, fixed_abs, tag = 'smem constant byte address 0x4 - core index']
  #allocation1 [shape = 'u32[144,128]{1,0:T(1,128)}', space=vmem, size = 0x12000, scoped, tag = 'internal scratch']
  %s0 = inlined_call_operand.vmem [shape: bf16[128,4], index: 0, kind: input, shape index: {}]
  %s1 = inlined_call_operand.vmem [shape: bf16[2,128,4], index: 1, kind: input, shape index: {}]
  %s2 = inlined_call_operand.vmem [shape: bf16[2,4,32], index: 2, kind: input, shape index: {}]
  %s3 = inlined_call_operand.vmem [shape: bf16[2,4,32], index: 3, kind: input, shape index: {}]
  %s4 = inlined_call_operand.vmem [shape: f32[2,128,32], index: 4, kind: output, shape index: {}]
  %s5 = sld [smem:[#allocation0]]
  $region49: #{_lambda_.21} parent=0
    _
  %s7 = ssub.s32 1, %s5
  %s8 = scalar_select 0, %s7, %s5
  loop: start=0, step=1, limit=4
  $region2: #{_lambda_.21} parent=0 // loop_pre_header
    _
  $region3: #{_lambda_.21} parent=0 // loop_header
    %s10 = sphi 0, %s14
    %p11 = scmp.ge.s32.totalorder %s10, 4
    %s17 = sphi 0, %s36
    %s18 = sphi 0, %s32
    %s19 = sphi 0, %s28
    %s20 = sphi 0, %s17
    %s21 = sphi 0, %s18
    %s22 = sphi 0, %s19
    %s23 = sphi 0, %s20
    %s24 = sphi 0, %s21
    %s25 = sphi 0, %s22
    %s39 = sphi 0, %s41
    %s42 = sphi 0, %s39
    %s43 = sphi 0, %s42
    %s59 = sphi 0, %s43
    %s67 = sphi 0, %s69
    %s70 = sphi 0, %s67
    %s71 = sphi 0, %s70
    %s87 = sphi 0, %s71
    %s95 = sphi 0, %s97
    %s98 = sphi 0, %s95
    %s99 = sphi 0, %s98
    %s115 = sphi 0, %s99
    %s123 = sphi 0, %s125
    %s126 = sphi 0, %s123
    %s127 = sphi 0, %s126
    %s143 = sphi 0, %s127
    %s153 = sphi 0, %s155
    %s156 = sphi 0, %s153
    %s157 = sphi 0, %s156
    %s173 = sphi 0, %s157
  $region4: #{_lambda_.21} parent=0 // loop_header_branch
    %13 = sbr.rel (%p11) target = $region8
  $region5: #{_lambda_.21} parent=0 // loop_body
    %s15 = ssub.s32 %s10, 1
    %s16 = ssub.s32 %s10, 2
    %s26 = sadd.s32 1, %s19
    %p27 = scmp.ge.s32.totalorder %s26, 1
    %s28 = scalar_select %p27, 0, %s26
    %s29 = sadd.s32 1, %s18
    %s30 = scalar_select %p27, %s29, %s18
    %p31 = scmp.ge.s32.totalorder %s30, 1
    %s32 = scalar_select %p31, 0, %s30
    %s33 = sadd.s32 1, %s17
    %s34 = scalar_select %p31, %s33, %s17
    %p35 = scmp.ge.s32.totalorder %s34, 2
    %s36 = scalar_select %p35, 0, %s34
    %s37 = ssub.s32 %s18, %s32
    %p38 = scmp.eq.s32.totalorder %s37, 0
    %s40 = sadd.s32 %s39, 1
    %s41 = scalar_select %p38, %s39, %s40
    %p44 = pneg %p38
    %p45 = scmp.eq.s32.totalorder %s10, 1
    %p46 = por %p44, %p45
    %p47 = scmp.ne.s32.totalorder %s39, %s42
    %p48 = scmp.eq.s32.totalorder %s10, 0
    %p49 = por %p47, %p48
    %p50 = scmp.ne.s32.totalorder %s39, %s42
    %p51 = scmp.eq.s32.totalorder %s15, 1
    %p52 = por %p50, %p51
    %p53 = scmp.ne.s32.totalorder %s42, %s43
    %p54 = scmp.eq.s32.totalorder %s15, 0
    %p55 = por %p53, %p54
    %p56 = scmp.ne.s32.totalorder %s42, %s43
    %p57 = scmp.eq.s32.totalorder %s16, 1
    %p58 = por %p56, %p57
    %p60 = scmp.ne.s32.totalorder %s43, %s59
    %p61 = scmp.eq.s32.totalorder %s16, 0
    %p62 = por %p60, %p61
    %s63 = ssub.s32 %s17, %s36
    %s64 = ssub.s32 %s18, %s32
    %s65 = sor.u32 %s63, %s64
    %p66 = scmp.eq.s32.totalorder %s65, 0
    %s68 = sadd.s32 %s67, 1
    %s69 = scalar_select %p66, %s67, %s68
    %p72 = pneg %p66
    %p73 = scmp.eq.s32.totalorder %s10, 1
    %p74 = por %p72, %p73
    %p75 = scmp.ne.s32.totalorder %s67, %s70
    %p76 = scmp.eq.s32.totalorder %s10, 0
    %p77 = por %p75, %p76
    %p78 = scmp.ne.s32.totalorder %s67, %s70
    %p79 = scmp.eq.s32.totalorder %s15, 1
    %p80 = por %p78, %p79
    %p81 = scmp.ne.s32.totalorder %s70, %s71
    %p82 = scmp.eq.s32.totalorder %s15, 0
    %p83 = por %p81, %p82
    %p84 = scmp.ne.s32.totalorder %s70, %s71
    %p85 = scmp.eq.s32.totalorder %s16, 1
    %p86 = por %p84, %p85
    %p88 = scmp.ne.s32.totalorder %s71, %s87
    %p89 = scmp.eq.s32.totalorder %s16, 0
    %p90 = por %p88, %p89
    %s91 = ssub.s32 %s17, %s36
    %s92 = ssub.s32 %s19, %s28
    %s93 = sor.u32 %s91, %s92
    %p94 = scmp.eq.s32.totalorder %s93, 0
    %s96 = sadd.s32 %s95, 1
    %s97 = scalar_select %p94, %s95, %s96
    %p100 = pneg %p94
    %p101 = scmp.eq.s32.totalorder %s10, 1
    %p102 = por %p100, %p101
    %p103 = scmp.ne.s32.totalorder %s95, %s98
    %p104 = scmp.eq.s32.totalorder %s10, 0
    %p105 = por %p103, %p104
    %p106 = scmp.ne.s32.totalorder %s95, %s98
    %p107 = scmp.eq.s32.totalorder %s15, 1
    %p108 = por %p106, %p107
    %p109 = scmp.ne.s32.totalorder %s98, %s99
    %p110 = scmp.eq.s32.totalorder %s15, 0
    %p111 = por %p109, %p110
    %p112 = scmp.ne.s32.totalorder %s98, %s99
    %p113 = scmp.eq.s32.totalorder %s16, 1
    %p114 = por %p112, %p113
    %p116 = scmp.ne.s32.totalorder %s99, %s115
    %p117 = scmp.eq.s32.totalorder %s16, 0
    %p118 = por %p116, %p117
    %s119 = ssub.s32 %s17, %s36
    %s120 = ssub.s32 %s19, %s28
    %s121 = sor.u32 %s119, %s120
    %p122 = scmp.eq.s32.totalorder %s121, 0
    %s124 = sadd.s32 %s123, 1
    %s125 = scalar_select %p122, %s123, %s124
    %p128 = pneg %p122
    %p129 = scmp.eq.s32.totalorder %s10, 1
    %p130 = por %p128, %p129
    %p131 = scmp.ne.s32.totalorder %s123, %s126
    %p132 = scmp.eq.s32.totalorder %s10, 0
    %p133 = por %p131, %p132
    %p134 = scmp.ne.s32.totalorder %s123, %s126
    %p135 = scmp.eq.s32.totalorder %s15, 1
    %p136 = por %p134, %p135
    %p137 = scmp.ne.s32.totalorder %s126, %s127
    %p138 = scmp.eq.s32.totalorder %s15, 0
    %p139 = por %p137, %p138
    %p140 = scmp.ne.s32.totalorder %s126, %s127
    %p141 = scmp.eq.s32.totalorder %s16, 1
    %p142 = por %p140, %p141
    %p144 = scmp.ne.s32.totalorder %s127, %s143
    %p145 = scmp.eq.s32.totalorder %s16, 0
    %p146 = por %p144, %p145
    %s147 = ssub.s32 %s17, %s36
    %s148 = ssub.s32 %s18, %s32
    %s149 = sor.u32 %s147, %s148
    %s150 = ssub.s32 %s19, %s28
    %s151 = sor.u32 %s149, %s150
    %p152 = scmp.eq.s32.totalorder %s151, 0
    %s154 = sadd.s32 %s153, 1
    %s155 = scalar_select %p152, %s153, %s154
    %p158 = pneg %p152
    %p159 = scmp.eq.s32.totalorder %s10, 1
    %p160 = por %p158, %p159
    %p161 = scmp.ne.s32.totalorder %s153, %s156
    %p162 = scmp.eq.s32.totalorder %s10, 0
    %p163 = por %p161, %p162
    %p164 = scmp.ne.s32.totalorder %s153, %s156
    %p165 = scmp.eq.s32.totalorder %s15, 1
    %p166 = por %p164, %p165
    %p167 = scmp.ne.s32.totalorder %s156, %s157
    %p168 = scmp.eq.s32.totalorder %s15, 0
    %p169 = por %p167, %p168
    %p170 = scmp.ne.s32.totalorder %s156, %s157
    %p171 = scmp.eq.s32.totalorder %s16, 1
    %p172 = por %p170, %p171
    %p174 = scmp.ne.s32.totalorder %s157, %s173
    %p175 = scmp.eq.s32.totalorder %s16, 0
    %p176 = por %p174, %p175
    %p177 = scmp.le.s32.totalorder 1, %s10
    %p178 = scmp.lt.s32.totalorder %s10, 3
    %p179 = pnand %p177, %p178
    %p180 = pneg %p179
    // Predicated region
    $region9: #{_lambda_.21} parent=5 // pred_check
      _
    $region10: #{_lambda_.21} parent=5 // pred_check_branch
      %182 = sbr.rel (%p179) target = $region12
    $region11: #{_lambda_.21} parent=5 // pred_region
      %s183 = ssub.s32 %s10, 1
      // Predicated region
      $region13: #{_lambda_.21} parent=11 // pred_check
        %p184 = pneg %p55
      $region14: #{_lambda_.21} parent=11 // pred_check_branch
        %186 = sbr.rel (%p184) target = $region16
      $region15: #{_lambda_.21} parent=11 // pred_region
        %s187 = smul.u32 16, %s21
        %p188 = scmp.lt.s32.totalorder %s187, 15
        %s189 = scalar_select %p188, %s187, 15
        %s190 = smul.addr %s189, 4
        %s191 = scalar_lea.vmem %s0, %s190
        %s192 = smul.u32 16, %s21
      $region16: #{_lambda_.21} parent=11 // pred_fallthru
        _
    $region12: #{_lambda_.21} parent=5 // pred_fallthru
      _
    %p193 = scmp.lt.s32.totalorder %s10, 2
    // Predicated region
    $region17: #{_lambda_.21} parent=5 // pred_check
      %p194 = pneg %p193
    $region18: #{_lambda_.21} parent=5 // pred_check_branch
      %196 = sbr.rel (%p194) target = $region20
    $region19: #{_lambda_.21} parent=5 // pred_region
      // Predicated region
      $region21: #{_lambda_.21} parent=19 // pred_check
        %p197 = pneg %p77
      $region22: #{_lambda_.21} parent=19 // pred_check_branch
        %199 = sbr.rel (%p197) target = $region24
      $region23: #{_lambda_.21} parent=19 // pred_region
        %s200 = smul.u32 16, %s18
        %p201 = scmp.lt.s32.totalorder %s17, 1
        %s202 = scalar_select %p201, %s17, 1
        %p203 = scmp.lt.s32.totalorder %s200, 15
        %s204 = scalar_select %p203, %s200, 15
        %s205 = smul.addr %s202, 16
        %s206 = sadd.s32 %s204, %s205
        %s207 = smul.addr %s206, 4
        %s208 = scalar_lea.vmem %s1, %s207
        %s209 = smul.u32 16, %s18
      $region24: #{_lambda_.21} parent=19 // pred_fallthru
        _
      // Predicated region
      $region25: #{_lambda_.21} parent=19 // pred_check
        %p210 = pneg %p105
      $region26: #{_lambda_.21} parent=19 // pred_check_branch
        %212 = sbr.rel (%p210) target = $region28
      $region27: #{_lambda_.21} parent=19 // pred_region
        %p213 = scmp.lt.s32.totalorder %s17, 1
        %s214 = scalar_select %p213, %s17, 1
        %p215 = scmp.lt.s32.totalorder %s19, 0
        %s216 = scalar_select %p215, %s19, 0
        %s217 = sadd.s32 %s216, %s214
        %s218 = smul.addr %s217, 2
        %s219 = scalar_lea.vmem %s2, %s218
      $region28: #{_lambda_.21} parent=19 // pred_fallthru
        _
      // Predicated region
      $region29: #{_lambda_.21} parent=19 // pred_check
        %p220 = pneg %p133
      $region30: #{_lambda_.21} parent=19 // pred_check_branch
        %222 = sbr.rel (%p220) target = $region32
      $region31: #{_lambda_.21} parent=19 // pred_region
        %p223 = scmp.lt.s32.totalorder %s17, 1
        %s224 = scalar_select %p223, %s17, 1
        %p225 = scmp.lt.s32.totalorder %s19, 0
        %s226 = scalar_select %p225, %s19, 0
        %s227 = sadd.s32 %s226, %s224
        %s228 = smul.addr %s227, 2
        %s229 = scalar_lea.vmem %s3, %s228
      $region32: #{_lambda_.21} parent=19 // pred_fallthru
        _
    $region20: #{_lambda_.21} parent=5 // pred_fallthru
      _
    %p230 = scmp.le.s32.totalorder 1, %s10
    %p231 = scmp.lt.s32.totalorder %s10, 3
    %p232 = pnand %p230, %p231
    %p233 = pneg %p232
    // Predicated region
    $region33: #{_lambda_.21} parent=5 // pred_check
      _
    $region34: #{_lambda_.21} parent=5 // pred_check_branch
      %235 = sbr.rel (%p232) target = $region36
    $region35: #{_lambda_.21} parent=5 // pred_region
      %s236 = ssub.s32 %s10, 1
      %s237 = smul.u32 16, %s21
      %p238 = scmp.lt.s32.totalorder %s237, 15
      %s239 = scalar_select %p238, %s237, 15
      %s240 = smul.addr %s239, 4
      %s241 = scalar_lea.vmem %s0, %s240
      %p242 = pneg %p55
      %p243 = pneg %p52
      %s244 = smul.u32 16, %s21
      %p245 = scmp.lt.s32.totalorder %s20, 1
      %s246 = scalar_select %p245, %s20, 1
      %p247 = scmp.lt.s32.totalorder %s244, 15
      %s248 = scalar_select %p247, %s244, 15
      %s249 = smul.addr %s246, 16
      %s250 = sadd.s32 %s248, %s249
      %s251 = smul.addr %s250, 4
      %s252 = scalar_lea.vmem %s1, %s251
      %p253 = pneg %p83
      %p254 = pneg %p80
      %p255 = scmp.lt.s32.totalorder %s20, 1
      %s256 = scalar_select %p255, %s20, 1
      %p257 = scmp.lt.s32.totalorder %s22, 0
      %s258 = scalar_select %p257, %s22, 0
      %s259 = sadd.s32 %s258, %s256
      %s260 = smul.addr %s259, 2
      %s261 = scalar_lea.vmem %s2, %s260
      %p262 = pneg %p111
      %p263 = pneg %p108
      %p264 = scmp.lt.s32.totalorder %s20, 1
      %s265 = scalar_select %p264, %s20, 1
      %p266 = scmp.lt.s32.totalorder %s22, 0
      %s267 = scalar_select %p266, %s22, 0
      %s268 = sadd.s32 %s267, %s265
      %s269 = smul.addr %s268, 2
      %s270 = scalar_lea.vmem %s3, %s269
      %p271 = pneg %p139
      %p272 = pneg %p136
      %p273 = pneg %p169
      %p274 = pneg %p166
      %s275 = smul.u32 16, %s21
      %p276 = scmp.lt.s32.totalorder %s20, 1
      %s277 = scalar_select %p276, %s20, 1
      %p278 = scmp.lt.s32.totalorder %s275, 15
      %s279 = scalar_select %p278, %s275, 15
      %p280 = scmp.lt.s32.totalorder %s22, 0
      %s281 = scalar_select %p280, %s22, 0
      %s282 = sadd.s32 %s281, %s279
      %s283 = smul.addr %s277, 16
      %s284 = sadd.s32 %s282, %s283
      %s285 = smul.addr %s284, 8
      %s286 = scalar_lea.vmem %s4, %s285
      %s287 = smul.u32 16, %s21
      %p288 = scmp.lt.s32.totalorder %s287, 15
      %s289 = scalar_select %p288, %s287, 15
      %s290 = smul.addr %s289, 4
      %s291 = scalar_lea.vmem %s0, %s290
      %s292 = smul.u32 16, %s21
      %s293 = smul.u32 16, %s21
      %p294 = scmp.lt.s32.totalorder %s20, 1
      %s295 = scalar_select %p294, %s20, 1
      %p296 = scmp.lt.s32.totalorder %s293, 15
      %s297 = scalar_select %p296, %s293, 15
      %s298 = smul.addr %s295, 16
      %s299 = sadd.s32 %s297, %s298
      %s300 = smul.addr %s299, 4
      %s301 = scalar_lea.vmem %s1, %s300
      %s302 = smul.u32 16, %s21
      %p303 = scmp.lt.s32.totalorder %s20, 1
      %s304 = scalar_select %p303, %s20, 1
      %p305 = scmp.lt.s32.totalorder %s22, 0
      %s306 = scalar_select %p305, %s22, 0
      %s307 = sadd.s32 %s306, %s304
      %s308 = smul.addr %s307, 2
      %s309 = scalar_lea.vmem %s2, %s308
      %p310 = scmp.lt.s32.totalorder %s20, 1
      %s311 = scalar_select %p310, %s20, 1
      %p312 = scmp.lt.s32.totalorder %s22, 0
      %s313 = scalar_select %p312, %s22, 0
      %s314 = sadd.s32 %s313, %s311
      %s315 = smul.addr %s314, 2
      %s316 = scalar_lea.vmem %s3, %s315
      %s317 = smul.u32 16, %s21
      %p318 = scmp.lt.s32.totalorder %s20, 1
      %s319 = scalar_select %p318, %s20, 1
      %p320 = scmp.lt.s32.totalorder %s317, 15
      %s321 = scalar_select %p320, %s317, 15
      %p322 = scmp.lt.s32.totalorder %s22, 0
      %s323 = scalar_select %p322, %s22, 0
      %s324 = sadd.s32 %s323, %s321
      %s325 = smul.addr %s319, 16
      %s326 = sadd.s32 %s324, %s325
      %s327 = smul.addr %s326, 8
      %s328 = scalar_lea.vmem %s4, %s327
      %s329 = smul.u32 16, %s21
      %v331 = vld [vmem:[%s291] sm:$0xf]
      %v332 = vld [vmem:[%s291 + $0x4] sm:$0xf]
      %v333 = vld [vmem:[%s291 + $0x8] sm:$0xf]
      %v334 = vld [vmem:[%s291 + $0xc] sm:$0xf]
      %v335 = vld [vmem:[%s291 + $0x10] sm:$0xf]
      %v336 = vld [vmem:[%s291 + $0x14] sm:$0xf]
      %v337 = vld [vmem:[%s291 + $0x18] sm:$0xf]
      %v338 = vld [vmem:[%s291 + $0x1c] sm:$0xf]
      %v339 = vld [vmem:[%s291 + $0x20] sm:$0xf]
      %v340 = vld [vmem:[%s291 + $0x24] sm:$0xf]
      %v341 = vld [vmem:[%s291 + $0x28] sm:$0xf]
      %v342 = vld [vmem:[%s291 + $0x2c] sm:$0xf]
      %v343 = vld [vmem:[%s291 + $0x30] sm:$0xf]
      %v344 = vld [vmem:[%s291 + $0x34] sm:$0xf]
      %v345 = vld [vmem:[%s291 + $0x38] sm:$0xf]
      %v346 = vld [vmem:[%s291 + $0x3c] sm:$0xf]
      %v347 = vld [vmem:[%s309] sm:$0x3]
      %v348 = vld [vmem:[%s301] sm:$0xf]
      %v349 = vld [vmem:[%s301 + $0x4] sm:$0xf]
      %v350 = vld [vmem:[%s301 + $0x8] sm:$0xf]
      %v351 = vld [vmem:[%s301 + $0xc] sm:$0xf]
      %v352 = vld [vmem:[%s301 + $0x10] sm:$0xf]
      %v353 = vld [vmem:[%s301 + $0x14] sm:$0xf]
      %v354 = vld [vmem:[%s301 + $0x18] sm:$0xf]
      %v355 = vld [vmem:[%s301 + $0x1c] sm:$0xf]
      %v356 = vld [vmem:[%s301 + $0x20] sm:$0xf]
      %v357 = vld [vmem:[%s301 + $0x24] sm:$0xf]
      %v358 = vld [vmem:[%s301 + $0x28] sm:$0xf]
      %v359 = vld [vmem:[%s301 + $0x2c] sm:$0xf]
      %v360 = vld [vmem:[%s301 + $0x30] sm:$0xf]
      %v361 = vld [vmem:[%s301 + $0x34] sm:$0xf]
      %v362 = vld [vmem:[%s301 + $0x38] sm:$0xf]
      %v363 = vld [vmem:[%s301 + $0x3c] sm:$0xf]
      %v364 = vld [vmem:[%s316] sm:$0x3]
      %v381 = vunpack.c.l.b16 %v348
      %v382 = vunpack.c.l.b16 %v349
      %v383 = vunpack.c.l.b16 %v350
      %v384 = vunpack.c.l.b16 %v351
      %v385 = vunpack.c.l.b16 %v352
      %v386 = vunpack.c.l.b16 %v353
      %v387 = vunpack.c.l.b16 %v354
      %v388 = vunpack.c.l.b16 %v355
      %v389 = vunpack.c.l.b16 %v356
      %v390 = vunpack.c.l.b16 %v357
      %v391 = vunpack.c.l.b16 %v358
      %v392 = vunpack.c.l.b16 %v359
      %v393 = vunpack.c.l.b16 %v360
      %v394 = vunpack.c.l.b16 %v361
      %v395 = vunpack.c.l.b16 %v362
      %v396 = vunpack.c.l.b16 %v363
      %v397 = vpack.c.b16 %v382, %v381
      %v398 = vpack.c.b16 %v384, %v383
      %v399 = vpack.c.b16 %v386, %v385
      %v400 = vpack.c.b16 %v388, %v387
      %v401 = vpack.c.b16 %v390, %v389
      %v402 = vpack.c.b16 %v392, %v391
      %v403 = vpack.c.b16 %v394, %v393
      %v404 = vpack.c.b16 %v396, %v395
      %vm405 = vcmask 31744
      %v407 = vsel %vm405, %v397, 0
      %v410 = vsel %vm405, %v398, 0
      %v413 = vsel %vm405, %v399, 0
      %v416 = vsel %vm405, %v400, 0
      %v419 = vsel %vm405, %v401, 0
      %v422 = vsel %vm405, %v402, 0
      %v425 = vsel %vm405, %v403, 0
      %v428 = vsel %vm405, %v404, 0
      %vm430 = vcmask 1041408
      %v432 = vsel %vm430, %v364, 0
      %434 = vmatprep.subr.bf16.mxu0 0
      %435 = vmatpush1.bf16.msra.mxu0 %v432
      %436 = vmatprep.subr.bf16.mxu0 0
      %437 = vmatpush1.bf16.msra.mxu0 0
      %438 = vmatprep.subr.bf16.mxu0 0
      %439 = vmatpush1.bf16.msra.mxu0 0
      %440 = vmatprep.subr.bf16.mxu0 0
      %441 = vmatpush1.bf16.msra.mxu0 0
      %442 = vmatprep.subr.bf16.mxu0 0
      %443 = vmatpush1.bf16.msra.mxu0 0
      %444 = vmatprep.subr.bf16.mxu0 0
      %445 = vmatpush1.bf16.msra.mxu0 0
      %446 = vmatprep.subr.bf16.mxu0 0
      %447 = vmatpush1.bf16.msra.mxu0 0
      %448 = vmatprep.subr.bf16.mxu0 0
      %449 = vmatpush1.bf16.msra.mxu0 0
      %450 = vmatprep.subr.bf16.mxu0 0
      %451 = vmatpush1.bf16.msra.mxu0 0
      %452 = vmatprep.subr.bf16.mxu0 0
      %453 = vmatpush1.bf16.msra.mxu0 0
      %454 = vmatprep.subr.bf16.mxu0 0
      %455 = vmatpush1.bf16.msra.mxu0 0
      %456 = vmatprep.subr.bf16.mxu0 0
      %457 = vmatpush1.bf16.msra.mxu0 0
      %458 = vmatprep.subr.bf16.mxu0 0
      %459 = vmatpush1.bf16.msra.mxu0 0
      %460 = vmatprep.subr.bf16.mxu0 0
      %461 = vmatpush1.bf16.msra.mxu0 0
      %462 = vmatprep.subr.bf16.mxu0 0
      %463 = vmatpush1.bf16.msra.mxu0 0
      %464 = vmatprep.subr.bf16.mxu0 0
      %465 = vmatpush1.bf16.msra.mxu0 0
      %466 = vmatprep.mubr.bf16.mxu0 0
      %467 = vmatmul.mubr.bf16.gmra.mrb[0].mxu0 %v407
      %v468 = vpop.f32.mrb[0].mxu0
      %v469 = vadd.f32 0.0, %v468
      %v470 = vpop.f32.mrb[0].mxu0
      %v471 = vpop.f32.mrb[0].mxu0
      %v472 = vadd.f32 0.0, %v471
      %v473 = vpop.f32.mrb[0].mxu0
      %474 = vmatprep.mubr.bf16.mxu0 0
      %475 = vmatmul.mubr.bf16.gmra.mrb[0].mxu0 %v410
      %v476 = vpop.f32.mrb[0].mxu0
      %v477 = vadd.f32 0.0, %v476
      %v478 = vpop.f32.mrb[0].mxu0
      %v479 = vpop.f32.mrb[0].mxu0
      %v480 = vadd.f32 0.0, %v479
      %v481 = vpop.f32.mrb[0].mxu0
      %482 = vmatprep.mubr.bf16.mxu0 0
      %483 = vmatmul.mubr.bf16.gmra.mrb[0].mxu0 %v413
      %v484 = vpop.f32.mrb[0].mxu0
      %v485 = vadd.f32 0.0, %v484
      %v486 = vpop.f32.mrb[0].mxu0
      %v487 = vpop.f32.mrb[0].mxu0
      %v488 = vadd.f32 0.0, %v487
      %v489 = vpop.f32.mrb[0].mxu0
      %490 = vmatprep.mubr.bf16.mxu0 0
      %491 = vmatmul.mubr.bf16.gmra.mrb[0].mxu0 %v416
      %v492 = vpop.f32.mrb[0].mxu0
      %v493 = vadd.f32 0.0, %v492
      %v494 = vpop.f32.mrb[0].mxu0
      %v495 = vpop.f32.mrb[0].mxu0
      %v496 = vadd.f32 0.0, %v495
      %v497 = vpop.f32.mrb[0].mxu0
      %498 = vmatprep.mubr.bf16.mxu0 0
      %499 = vmatmul.mubr.bf16.gmra.mrb[0].mxu0 %v419
      %v500 = vpop.f32.mrb[0].mxu0
      %v501 = vadd.f32 0.0, %v500
      %v502 = vpop.f32.mrb[0].mxu0
      %v503 = vpop.f32.mrb[0].mxu0
      %v504 = vadd.f32 0.0, %v503
      %v505 = vpop.f32.mrb[0].mxu0
      %506 = vmatprep.mubr.bf16.mxu0 0
      %507 = vmatmul.mubr.bf16.gmra.mrb[0].mxu0 %v422
      %v508 = vpop.f32.mrb[0].mxu0
      %v509 = vadd.f32 0.0, %v508
      %v510 = vpop.f32.mrb[0].mxu0
      %v511 = vpop.f32.mrb[0].mxu0
      %v512 = vadd.f32 0.0, %v511
      %v513 = vpop.f32.mrb[0].mxu0
      %514 = vmatprep.mubr.bf16.mxu0 0
      %515 = vmatmul.mubr.bf16.gmra.mrb[0].mxu0 %v425
      %v516 = vpop.f32.mrb[0].mxu0
      %v517 = vadd.f32 0.0, %v516
      %v518 = vpop.f32.mrb[0].mxu0
      %v519 = vpop.f32.mrb[0].mxu0
      %v520 = vadd.f32 0.0, %v519
      %v521 = vpop.f32.mrb[0].mxu0
      %522 = vmatprep.mubr.bf16.mxu0 0
      %523 = vmatmul.mubr.bf16.gmra.mrb[0].mxu0 %v428
      %v524 = vpop.f32.mrb[0].mxu0
      %v525 = vadd.f32 0.0, %v524
      %v526 = vpop.f32.mrb[0].mxu0
      %v527 = vpop.f32.mrb[0].mxu0
      %v528 = vadd.f32 0.0, %v527
      %v529 = vpop.f32.mrb[0].mxu0
      %530 = vdwg.mxu0
      %v547 = vunpack.c.l.b16 %v331
      %v548 = vunpack.c.l.b16 %v332
      %v549 = vunpack.c.l.b16 %v333
      %v550 = vunpack.c.l.b16 %v334
      %v551 = vunpack.c.l.b16 %v335
      %v552 = vunpack.c.l.b16 %v336
      %v553 = vunpack.c.l.b16 %v337
      %v554 = vunpack.c.l.b16 %v338
      %v555 = vunpack.c.l.b16 %v339
      %v556 = vunpack.c.l.b16 %v340
      %v557 = vunpack.c.l.b16 %v341
      %v558 = vunpack.c.l.b16 %v342
      %v559 = vunpack.c.l.b16 %v343
      %v560 = vunpack.c.l.b16 %v344
      %v561 = vunpack.c.l.b16 %v345
      %v562 = vunpack.c.l.b16 %v346
      %v563 = vpack.c.b16 %v548, %v547
      %v564 = vpack.c.b16 %v550, %v549
      %v565 = vpack.c.b16 %v552, %v551
      %v566 = vpack.c.b16 %v554, %v553
      %v567 = vpack.c.b16 %v556, %v555
      %v568 = vpack.c.b16 %v558, %v557
      %v569 = vpack.c.b16 %v560, %v559
      %v570 = vpack.c.b16 %v562, %v561
      %v572 = vsel %vm405, %v563, 0
      %v575 = vsel %vm405, %v564, 0
      %v578 = vsel %vm405, %v565, 0
      %v581 = vsel %vm405, %v566, 0
      %v584 = vsel %vm405, %v567, 0
      %v587 = vsel %vm405, %v568, 0
      %v590 = vsel %vm405, %v569, 0
      %v593 = vsel %vm405, %v570, 0
      %v596 = vsel %vm430, %v347, 0
      %598 = vmatprep.subr.bf16.mxu0 0
      %599 = vmatpush1.bf16.msra.mxu0 %v596
      %600 = vmatprep.subr.bf16.mxu0 0
      %601 = vmatpush1.bf16.msra.mxu0 0
      %602 = vmatprep.subr.bf16.mxu0 0
      %603 = vmatpush1.bf16.msra.mxu0 0
      %604 = vmatprep.subr.bf16.mxu0 0
      %605 = vmatpush1.bf16.msra.mxu0 0
      %606 = vmatprep.subr.bf16.mxu0 0
      %607 = vmatpush1.bf16.msra.mxu0 0
      %608 = vmatprep.subr.bf16.mxu0 0
      %609 = vmatpush1.bf16.msra.mxu0 0
      %610 = vmatprep.subr.bf16.mxu0 0
      %611 = vmatpush1.bf16.msra.mxu0 0
      %612 = vmatprep.subr.bf16.mxu0 0
      %613 = vmatpush1.bf16.msra.mxu0 0
      %614 = vmatprep.subr.bf16.mxu0 0
      %615 = vmatpush1.bf16.msra.mxu0 0
      %616 = vmatprep.subr.bf16.mxu0 0
      %617 = vmatpush1.bf16.msra.mxu0 0
      %618 = vmatprep.subr.bf16.mxu0 0
      %619 = vmatpush1.bf16.msra.mxu0 0
      %620 = vmatprep.subr.bf16.mxu0 0
      %621 = vmatpush1.bf16.msra.mxu0 0
      %622 = vmatprep.subr.bf16.mxu0 0
      %623 = vmatpush1.bf16.msra.mxu0 0
      %624 = vmatprep.subr.bf16.mxu0 0
      %625 = vmatpush1.bf16.msra.mxu0 0
      %626 = vmatprep.subr.bf16.mxu0 0
      %627 = vmatpush1.bf16.msra.mxu0 0
      %628 = vmatprep.subr.bf16.mxu0 0
      %629 = vmatpush1.bf16.msra.mxu0 0
      %630 = vmatprep.mubr.bf16.mxu0 0
      %631 = vmatmul.mubr.bf16.gmra.mrb[0].mxu0 %v572
      %v632 = vpop.f32.mrb[0].mxu0
      %v633 = vadd.f32 %v469, %v632
      %v634 = vpop.f32.mrb[0].mxu0
      %v635 = vpop.f32.mrb[0].mxu0
      %v636 = vadd.f32 %v472, %v635
      %v637 = vpop.f32.mrb[0].mxu0
      %638 = vmatprep.mubr.bf16.mxu0 0
      %639 = vmatmul.mubr.bf16.gmra.mrb[0].mxu0 %v575
      %v640 = vpop.f32.mrb[0].mxu0
      %v641 = vadd.f32 %v477, %v640
      %v642 = vpop.f32.mrb[0].mxu0
      %v643 = vpop.f32.mrb[0].mxu0
      %v644 = vadd.f32 %v480, %v643
      %v645 = vpop.f32.mrb[0].mxu0
      %646 = vmatprep.mubr.bf16.mxu0 0
      %647 = vmatmul.mubr.bf16.gmra.mrb[0].mxu0 %v578
      %v648 = vpop.f32.mrb[0].mxu0
      %v649 = vadd.f32 %v485, %v648
      %v650 = vpop.f32.mrb[0].mxu0
      %v651 = vpop.f32.mrb[0].mxu0
      %v652 = vadd.f32 %v488, %v651
      %v653 = vpop.f32.mrb[0].mxu0
      %654 = vmatprep.mubr.bf16.mxu0 0
      %655 = vmatmul.mubr.bf16.gmra.mrb[0].mxu0 %v581
      %v656 = vpop.f32.mrb[0].mxu0
      %v657 = vadd.f32 %v493, %v656
      %v658 = vpop.f32.mrb[0].mxu0
      %v659 = vpop.f32.mrb[0].mxu0
      %v660 = vadd.f32 %v496, %v659
      %v661 = vpop.f32.mrb[0].mxu0
      %662 = vmatprep.mubr.bf16.mxu0 0
      %663 = vmatmul.mubr.bf16.gmra.mrb[0].mxu0 %v584
      %v664 = vpop.f32.mrb[0].mxu0
      %v665 = vadd.f32 %v501, %v664
      %v666 = vpop.f32.mrb[0].mxu0
      %v667 = vpop.f32.mrb[0].mxu0
      %v668 = vadd.f32 %v504, %v667
      %v669 = vpop.f32.mrb[0].mxu0
      %670 = vmatprep.mubr.bf16.mxu0 0
      %671 = vmatmul.mubr.bf16.gmra.mrb[0].mxu0 %v587
      %v672 = vpop.f32.mrb[0].mxu0
      %v673 = vadd.f32 %v509, %v672
      %v674 = vpop.f32.mrb[0].mxu0
      %v675 = vpop.f32.mrb[0].mxu0
      %v676 = vadd.f32 %v512, %v675
      %v677 = vpop.f32.mrb[0].mxu0
      %678 = vmatprep.mubr.bf16.mxu0 0
      %679 = vmatmul.mubr.bf16.gmra.mrb[0].mxu0 %v590
      %v680 = vpop.f32.mrb[0].mxu0
      %v681 = vadd.f32 %v517, %v680
      %v682 = vpop.f32.mrb[0].mxu0
      %v683 = vpop.f32.mrb[0].mxu0
      %v684 = vadd.f32 %v520, %v683
      %v685 = vpop.f32.mrb[0].mxu0
      %686 = vmatprep.mubr.bf16.mxu0 0
      %687 = vmatmul.mubr.bf16.gmra.mrb[0].mxu0 %v593
      %v688 = vpop.f32.mrb[0].mxu0
      %v689 = vadd.f32 %v525, %v688
      %v690 = vpop.f32.mrb[0].mxu0
      %v691 = vpop.f32.mrb[0].mxu0
      %v692 = vadd.f32 %v528, %v691
      %v693 = vpop.f32.mrb[0].mxu0
      %694 = vdwg.mxu0
      %vm695 = vcmask 261120
      %696 = vst.msk [vmem:[%s328] sm:$0xff] %vm695, %v633
      %697 = vst.msk [vmem:[%s328 + $0x8] sm:$0xff] %vm695, %v636
      %698 = vst.msk [vmem:[%s328 + $0x10] sm:$0xff] %vm695, %v641
      %699 = vst.msk [vmem:[%s328 + $0x18] sm:$0xff] %vm695, %v644
      %700 = vst.msk [vmem:[%s328 + $0x20] sm:$0xff] %vm695, %v649
      %701 = vst.msk [vmem:[%s328 + $0x28] sm:$0xff] %vm695, %v652
      %702 = vst.msk [vmem:[%s328 + $0x30] sm:$0xff] %vm695, %v657
      %703 = vst.msk [vmem:[%s328 + $0x38] sm:$0xff] %vm695, %v660
      %704 = vst.msk [vmem:[%s328 + $0x40] sm:$0xff] %vm695, %v665
      %705 = vst.msk [vmem:[%s328 + $0x48] sm:$0xff] %vm695, %v668
      %706 = vst.msk [vmem:[%s328 + $0x50] sm:$0xff] %vm695, %v673
      %707 = vst.msk [vmem:[%s328 + $0x58] sm:$0xff] %vm695, %v676
      %708 = vst.msk [vmem:[%s328 + $0x60] sm:$0xff] %vm695, %v681
      %709 = vst.msk [vmem:[%s328 + $0x68] sm:$0xff] %vm695, %v684
      %710 = vst.msk [vmem:[%s328 + $0x70] sm:$0xff] %vm695, %v689
      %711 = vst.msk [vmem:[%s328 + $0x78] sm:$0xff] %vm695, %v692
      %s712 = smul.u32 16, %s21
      %p713 = scmp.lt.s32.totalorder %s20, 1
      %s714 = scalar_select %p713, %s20, 1
      %p715 = scmp.lt.s32.totalorder %s712, 15
      %s716 = scalar_select %p715, %s712, 15
      %p717 = scmp.lt.s32.totalorder %s22, 0
      %s718 = scalar_select %p717, %s22, 0
      %s719 = sadd.s32 %s718, %s716
      %s720 = smul.addr %s714, 16
      %s721 = sadd.s32 %s719, %s720
      %s722 = smul.addr %s721, 8
      %s723 = scalar_lea.vmem %s4, %s722
      // Predicated region
      $region37: #{_lambda_.21} parent=35 // pred_check
        %p724 = pneg %p166
      $region38: #{_lambda_.21} parent=35 // pred_check_branch
        %726 = sbr.rel (%p724) target = $region40
      $region39: #{_lambda_.21} parent=35 // pred_region
        %s727 = smul.u32 16, %s21
      $region40: #{_lambda_.21} parent=35 // pred_fallthru
        _
    $region36: #{_lambda_.21} parent=5 // pred_fallthru
      _
    %p728 = scmp.le.s32.totalorder 2, %s10
    // Predicated region
    $region41: #{_lambda_.21} parent=5 // pred_check
      %p729 = pneg %p728
    $region42: #{_lambda_.21} parent=5 // pred_check_branch
      %731 = sbr.rel (%p729) target = $region44
    $region43: #{_lambda_.21} parent=5 // pred_region
      %s732 = ssub.s32 %s10, 2
      // Predicated region
      $region45: #{_lambda_.21} parent=43 // pred_check
        %p733 = pneg %p172
      $region46: #{_lambda_.21} parent=43 // pred_check_branch
        %735 = sbr.rel (%p733) target = $region48
      $region47: #{_lambda_.21} parent=43 // pred_region
        %s736 = smul.u32 16, %s24
        %p737 = scmp.lt.s32.totalorder %s23, 1
        %s738 = scalar_select %p737, %s23, 1
        %p739 = scmp.lt.s32.totalorder %s736, 15
        %s740 = scalar_select %p739, %s736, 15
        %p741 = scmp.lt.s32.totalorder %s25, 0
        %s742 = scalar_select %p741, %s25, 0
        %s743 = sadd.s32 %s742, %s740
        %s744 = smul.addr %s738, 16
        %s745 = sadd.s32 %s743, %s744
        %s746 = smul.addr %s745, 8
        %s747 = scalar_lea.vmem %s4, %s746
      $region48: #{_lambda_.21} parent=43 // pred_fallthru
        _
    $region44: #{_lambda_.21} parent=5 // pred_fallthru
      _
  $region6: #{_lambda_.21} parent=0 // loop_footer
    %s14 = sadd.s32 1, %s10
  $region7: #{_lambda_.21} parent=0 // loop_footer_branch
    %9 = sbr.rel target = $region3
  $region8: #{_lambda_.21} parent=0 // loop_exit
    _

// kernel: _lambda_.23
$region0: #{_lambda_.23}
  #allocation0 [shape = 'u32[]', space=smem, size = 0x4, offset = 0x4, fixed_abs, tag = 'smem constant byte address 0x4 - core index']
  #allocation1 [shape = 'u32[144,128]{1,0:T(1,128)}', space=vmem, size = 0x12000, scoped, tag = 'internal scratch']
  %s0 = inlined_call_operand.vmem [shape: f32[2,512,2], index: 0, kind: input, shape index: {}]
  %s1 = inlined_call_operand.vmem [shape: f32[2,1,2], index: 1, kind: input, shape index: {}]
  %s2 = inlined_call_operand.vmem [shape: f32[2,1,2], index: 2, kind: input, shape index: {}]
  %s3 = inlined_call_operand.vmem [shape: f32[2,512,2], index: 3, kind: output, shape index: {}]
  %s4 = sld [smem:[#allocation0]]
  $region45: #{_lambda_.23} parent=0
    _
  %s6 = ssub.s32 1, %s4
  %s7 = scalar_select 0, %s6, %s4
  loop: start=0, step=1, limit=4
  $region2: #{_lambda_.23} parent=0 // loop_pre_header
    _
  $region3: #{_lambda_.23} parent=0 // loop_header
    %s9 = sphi 0, %s13
    %p10 = scmp.ge.s32.totalorder %s9, 4
    %s16 = sphi 0, %s28
    %s17 = sphi 0, %s24
    %s18 = sphi 0, %s16
    %s19 = sphi 0, %s17
    %s20 = sphi 0, %s18
    %s21 = sphi 0, %s19
    %s33 = sphi 0, %s35
    %s36 = sphi 0, %s33
    %s37 = sphi 0, %s36
    %s53 = sphi 0, %s37
    %s61 = sphi 0, %s63
    %s64 = sphi 0, %s61
    %s65 = sphi 0, %s64
    %s81 = sphi 0, %s65
    %s89 = sphi 0, %s91
    %s92 = sphi 0, %s89
    %s93 = sphi 0, %s92
    %s109 = sphi 0, %s93
    %s117 = sphi 0, %s119
    %s120 = sphi 0, %s117
    %s121 = sphi 0, %s120
    %s137 = sphi 0, %s121
  $region4: #{_lambda_.23} parent=0 // loop_header_branch
    %12 = sbr.rel (%p10) target = $region8
  $region5: #{_lambda_.23} parent=0 // loop_body
    %s14 = ssub.s32 %s9, 1
    %s15 = ssub.s32 %s9, 2
    %s22 = sadd.s32 1, %s17
    %p23 = scmp.ge.s32.totalorder %s22, 1
    %s24 = scalar_select %p23, 0, %s22
    %s25 = sadd.s32 1, %s16
    %s26 = scalar_select %p23, %s25, %s16
    %p27 = scmp.ge.s32.totalorder %s26, 2
    %s28 = scalar_select %p27, 0, %s26
    %s29 = ssub.s32 %s16, %s28
    %s30 = ssub.s32 %s17, %s24
    %s31 = sor.u32 %s29, %s30
    %p32 = scmp.eq.s32.totalorder %s31, 0
    %s34 = sadd.s32 %s33, 1
    %s35 = scalar_select %p32, %s33, %s34
    %p38 = pneg %p32
    %p39 = scmp.eq.s32.totalorder %s9, 1
    %p40 = por %p38, %p39
    %p41 = scmp.ne.s32.totalorder %s33, %s36
    %p42 = scmp.eq.s32.totalorder %s9, 0
    %p43 = por %p41, %p42
    %p44 = scmp.ne.s32.totalorder %s33, %s36
    %p45 = scmp.eq.s32.totalorder %s14, 1
    %p46 = por %p44, %p45
    %p47 = scmp.ne.s32.totalorder %s36, %s37
    %p48 = scmp.eq.s32.totalorder %s14, 0
    %p49 = por %p47, %p48
    %p50 = scmp.ne.s32.totalorder %s36, %s37
    %p51 = scmp.eq.s32.totalorder %s15, 1
    %p52 = por %p50, %p51
    %p54 = scmp.ne.s32.totalorder %s37, %s53
    %p55 = scmp.eq.s32.totalorder %s15, 0
    %p56 = por %p54, %p55
    %s57 = ssub.s32 %s16, %s28
    %s58 = ssub.s32 %s17, %s24
    %s59 = sor.u32 %s57, %s58
    %p60 = scmp.eq.s32.totalorder %s59, 0
    %s62 = sadd.s32 %s61, 1
    %s63 = scalar_select %p60, %s61, %s62
    %p66 = pneg %p60
    %p67 = scmp.eq.s32.totalorder %s9, 1
    %p68 = por %p66, %p67
    %p69 = scmp.ne.s32.totalorder %s61, %s64
    %p70 = scmp.eq.s32.totalorder %s9, 0
    %p71 = por %p69, %p70
    %p72 = scmp.ne.s32.totalorder %s61, %s64
    %p73 = scmp.eq.s32.totalorder %s14, 1
    %p74 = por %p72, %p73
    %p75 = scmp.ne.s32.totalorder %s64, %s65
    %p76 = scmp.eq.s32.totalorder %s14, 0
    %p77 = por %p75, %p76
    %p78 = scmp.ne.s32.totalorder %s64, %s65
    %p79 = scmp.eq.s32.totalorder %s15, 1
    %p80 = por %p78, %p79
    %p82 = scmp.ne.s32.totalorder %s65, %s81
    %p83 = scmp.eq.s32.totalorder %s15, 0
    %p84 = por %p82, %p83
    %s85 = ssub.s32 %s16, %s28
    %s86 = ssub.s32 %s17, %s24
    %s87 = sor.u32 %s85, %s86
    %p88 = scmp.eq.s32.totalorder %s87, 0
    %s90 = sadd.s32 %s89, 1
    %s91 = scalar_select %p88, %s89, %s90
    %p94 = pneg %p88
    %p95 = scmp.eq.s32.totalorder %s9, 1
    %p96 = por %p94, %p95
    %p97 = scmp.ne.s32.totalorder %s89, %s92
    %p98 = scmp.eq.s32.totalorder %s9, 0
    %p99 = por %p97, %p98
    %p100 = scmp.ne.s32.totalorder %s89, %s92
    %p101 = scmp.eq.s32.totalorder %s14, 1
    %p102 = por %p100, %p101
    %p103 = scmp.ne.s32.totalorder %s92, %s93
    %p104 = scmp.eq.s32.totalorder %s14, 0
    %p105 = por %p103, %p104
    %p106 = scmp.ne.s32.totalorder %s92, %s93
    %p107 = scmp.eq.s32.totalorder %s15, 1
    %p108 = por %p106, %p107
    %p110 = scmp.ne.s32.totalorder %s93, %s109
    %p111 = scmp.eq.s32.totalorder %s15, 0
    %p112 = por %p110, %p111
    %s113 = ssub.s32 %s16, %s28
    %s114 = ssub.s32 %s17, %s24
    %s115 = sor.u32 %s113, %s114
    %p116 = scmp.eq.s32.totalorder %s115, 0
    %s118 = sadd.s32 %s117, 1
    %s119 = scalar_select %p116, %s117, %s118
    %p122 = pneg %p116
    %p123 = scmp.eq.s32.totalorder %s9, 1
    %p124 = por %p122, %p123
    %p125 = scmp.ne.s32.totalorder %s117, %s120
    %p126 = scmp.eq.s32.totalorder %s9, 0
    %p127 = por %p125, %p126
    %p128 = scmp.ne.s32.totalorder %s117, %s120
    %p129 = scmp.eq.s32.totalorder %s14, 1
    %p130 = por %p128, %p129
    %p131 = scmp.ne.s32.totalorder %s120, %s121
    %p132 = scmp.eq.s32.totalorder %s14, 0
    %p133 = por %p131, %p132
    %p134 = scmp.ne.s32.totalorder %s120, %s121
    %p135 = scmp.eq.s32.totalorder %s15, 1
    %p136 = por %p134, %p135
    %p138 = scmp.ne.s32.totalorder %s121, %s137
    %p139 = scmp.eq.s32.totalorder %s15, 0
    %p140 = por %p138, %p139
    %p141 = scmp.le.s32.totalorder 1, %s9
    %p142 = scmp.lt.s32.totalorder %s9, 3
    %p143 = pnand %p141, %p142
    %p144 = pneg %p143
    // Predicated region
    $region9: #{_lambda_.23} parent=5 // pred_check
      _
    $region10: #{_lambda_.23} parent=5 // pred_check_branch
      %146 = sbr.rel (%p143) target = $region12
    $region11: #{_lambda_.23} parent=5 // pred_region
      %s147 = ssub.s32 %s9, 1
    $region12: #{_lambda_.23} parent=5 // pred_fallthru
      _
    %p148 = scmp.lt.s32.totalorder %s9, 2
    // Predicated region
    $region13: #{_lambda_.23} parent=5 // pred_check
      %p149 = pneg %p148
    $region14: #{_lambda_.23} parent=5 // pred_check_branch
      %151 = sbr.rel (%p149) target = $region16
    $region15: #{_lambda_.23} parent=5 // pred_region
      // Predicated region
      $region17: #{_lambda_.23} parent=15 // pred_check
        %p152 = pneg %p43
      $region18: #{_lambda_.23} parent=15 // pred_check_branch
        %154 = sbr.rel (%p152) target = $region20
      $region19: #{_lambda_.23} parent=15 // pred_region
        %p155 = scmp.lt.s32.totalorder %s16, 1
        %s156 = scalar_select %p155, %s16, 1
        %p157 = scmp.lt.s32.totalorder %s17, 0
        %s158 = scalar_select %p157, %s17, 0
        %s159 = smul.addr %s156, 64
        %s160 = sadd.s32 %s158, %s159
        %s161 = smul.addr %s160, 8
        %s162 = scalar_lea.vmem %s0, %s161
      $region20: #{_lambda_.23} parent=15 // pred_fallthru
        _
      // Predicated region
      $region21: #{_lambda_.23} parent=15 // pred_check
        %p163 = pneg %p71
      $region22: #{_lambda_.23} parent=15 // pred_check_branch
        %165 = sbr.rel (%p163) target = $region24
      $region23: #{_lambda_.23} parent=15 // pred_region
        %p166 = scmp.lt.s32.totalorder %s16, 1
        %s167 = scalar_select %p166, %s16, 1
        %p168 = scmp.lt.s32.totalorder %s17, 0
        %s169 = scalar_select %p168, %s17, 0
        %s170 = sadd.s32 %s169, %s167
        %s171 = scalar_lea.vmem %s1, %s170
      $region24: #{_lambda_.23} parent=15 // pred_fallthru
        _
      // Predicated region
      $region25: #{_lambda_.23} parent=15 // pred_check
        %p172 = pneg %p99
      $region26: #{_lambda_.23} parent=15 // pred_check_branch
        %174 = sbr.rel (%p172) target = $region28
      $region27: #{_lambda_.23} parent=15 // pred_region
        %p175 = scmp.lt.s32.totalorder %s16, 1
        %s176 = scalar_select %p175, %s16, 1
        %p177 = scmp.lt.s32.totalorder %s17, 0
        %s178 = scalar_select %p177, %s17, 0
        %s179 = sadd.s32 %s178, %s176
        %s180 = scalar_lea.vmem %s2, %s179
      $region28: #{_lambda_.23} parent=15 // pred_fallthru
        _
    $region16: #{_lambda_.23} parent=5 // pred_fallthru
      _
    %p181 = scmp.le.s32.totalorder 1, %s9
    %p182 = scmp.lt.s32.totalorder %s9, 3
    %p183 = pnand %p181, %p182
    %p184 = pneg %p183
    // Predicated region
    $region29: #{_lambda_.23} parent=5 // pred_check
      _
    $region30: #{_lambda_.23} parent=5 // pred_check_branch
      %186 = sbr.rel (%p183) target = $region32
    $region31: #{_lambda_.23} parent=5 // pred_region
      %s187 = ssub.s32 %s9, 1
      %p188 = scmp.lt.s32.totalorder %s18, 1
      %s189 = scalar_select %p188, %s18, 1
      %p190 = scmp.lt.s32.totalorder %s19, 0
      %s191 = scalar_select %p190, %s19, 0
      %s192 = smul.addr %s189, 64
      %s193 = sadd.s32 %s191, %s192
      %s194 = smul.addr %s193, 8
      %s195 = scalar_lea.vmem %s0, %s194
      %p196 = pneg %p49
      %p197 = pneg %p46
      %p198 = scmp.lt.s32.totalorder %s18, 1
      %s199 = scalar_select %p198, %s18, 1
      %p200 = scmp.lt.s32.totalorder %s19, 0
      %s201 = scalar_select %p200, %s19, 0
      %s202 = sadd.s32 %s201, %s199
      %s203 = scalar_lea.vmem %s1, %s202
      %p204 = pneg %p77
      %p205 = pneg %p74
      %p206 = scmp.lt.s32.totalorder %s18, 1
      %s207 = scalar_select %p206, %s18, 1
      %p208 = scmp.lt.s32.totalorder %s19, 0
      %s209 = scalar_select %p208, %s19, 0
      %s210 = sadd.s32 %s209, %s207
      %s211 = scalar_lea.vmem %s2, %s210
      %p212 = pneg %p105
      %p213 = pneg %p102
      %p214 = pneg %p133
      %p215 = pneg %p130
      %p216 = scmp.lt.s32.totalorder %s18, 1
      %s217 = scalar_select %p216, %s18, 1
      %p218 = scmp.lt.s32.totalorder %s19, 0
      %s219 = scalar_select %p218, %s19, 0
      %s220 = smul.addr %s217, 64
      %s221 = sadd.s32 %s219, %s220
      %s222 = smul.addr %s221, 8
      %s223 = scalar_lea.vmem %s3, %s222
      %p224 = scmp.lt.s32.totalorder %s18, 1
      %s225 = scalar_select %p224, %s18, 1
      %p226 = scmp.lt.s32.totalorder %s19, 0
      %s227 = scalar_select %p226, %s19, 0
      %s228 = smul.addr %s225, 64
      %s229 = sadd.s32 %s227, %s228
      %s230 = smul.addr %s229, 8
      %s231 = scalar_lea.vmem %s0, %s230
      %p232 = scmp.lt.s32.totalorder %s18, 1
      %s233 = scalar_select %p232, %s18, 1
      %p234 = scmp.lt.s32.totalorder %s19, 0
      %s235 = scalar_select %p234, %s19, 0
      %s236 = sadd.s32 %s235, %s233
      %s237 = scalar_lea.vmem %s1, %s236
      %p238 = scmp.lt.s32.totalorder %s18, 1
      %s239 = scalar_select %p238, %s18, 1
      %p240 = scmp.lt.s32.totalorder %s19, 0
      %s241 = scalar_select %p240, %s19, 0
      %s242 = sadd.s32 %s241, %s239
      %s243 = scalar_lea.vmem %s2, %s242
      %p244 = scmp.lt.s32.totalorder %s18, 1
      %s245 = scalar_select %p244, %s18, 1
      %p246 = scmp.lt.s32.totalorder %s19, 0
      %s247 = scalar_select %p246, %s19, 0
      %s248 = smul.addr %s245, 64
      %s249 = sadd.s32 %s247, %s248
      %s250 = smul.addr %s249, 8
      %s251 = scalar_lea.vmem %s3, %s250
      %v252 = vld [vmem:[%s231] sm:$0xff]
      %v253 = vld [vmem:[%s231 + $0x8] sm:$0xff]
      %v254 = vld [vmem:[%s231 + $0x10] sm:$0xff]
      %v255 = vld [vmem:[%s231 + $0x18] sm:$0xff]
      %v256 = vld [vmem:[%s231 + $0x20] sm:$0xff]
      %v257 = vld [vmem:[%s231 + $0x28] sm:$0xff]
      %v258 = vld [vmem:[%s231 + $0x30] sm:$0xff]
      %v259 = vld [vmem:[%s231 + $0x38] sm:$0xff]
      %v260 = vld [vmem:[%s231 + $0x40] sm:$0xff]
      %v261 = vld [vmem:[%s231 + $0x48] sm:$0xff]
      %v262 = vld [vmem:[%s231 + $0x50] sm:$0xff]
      %v263 = vld [vmem:[%s231 + $0x58] sm:$0xff]
      %v264 = vld [vmem:[%s231 + $0x60] sm:$0xff]
      %v265 = vld [vmem:[%s231 + $0x68] sm:$0xff]
      %v266 = vld [vmem:[%s231 + $0x70] sm:$0xff]
      %v267 = vld [vmem:[%s231 + $0x78] sm:$0xff]
      %v268 = vld [vmem:[%s231 + $0x80] sm:$0xff]
      %v269 = vld [vmem:[%s231 + $0x88] sm:$0xff]
      %v270 = vld [vmem:[%s231 + $0x90] sm:$0xff]
      %v271 = vld [vmem:[%s231 + $0x98] sm:$0xff]
      %v272 = vld [vmem:[%s231 + $0xa0] sm:$0xff]
      %v273 = vld [vmem:[%s231 + $0xa8] sm:$0xff]
      %v274 = vld [vmem:[%s231 + $0xb0] sm:$0xff]
      %v275 = vld [vmem:[%s231 + $0xb8] sm:$0xff]
      %v276 = vld [vmem:[%s231 + $0xc0] sm:$0xff]
      %v277 = vld [vmem:[%s231 + $0xc8] sm:$0xff]
      %v278 = vld [vmem:[%s231 + $0xd0] sm:$0xff]
      %v279 = vld [vmem:[%s231 + $0xd8] sm:$0xff]
      %v280 = vld [vmem:[%s231 + $0xe0] sm:$0xff]
      %v281 = vld [vmem:[%s231 + $0xe8] sm:$0xff]
      %v282 = vld [vmem:[%s231 + $0xf0] sm:$0xff]
      %v283 = vld [vmem:[%s231 + $0xf8] sm:$0xff]
      %v284 = vld [vmem:[%s231 + $0x100] sm:$0xff]
      %v285 = vld [vmem:[%s231 + $0x108] sm:$0xff]
      %v286 = vld [vmem:[%s231 + $0x110] sm:$0xff]
      %v287 = vld [vmem:[%s231 + $0x118] sm:$0xff]
      %v288 = vld [vmem:[%s231 + $0x120] sm:$0xff]
      %v289 = vld [vmem:[%s231 + $0x128] sm:$0xff]
      %v290 = vld [vmem:[%s231 + $0x130] sm:$0xff]
      %v291 = vld [vmem:[%s231 + $0x138] sm:$0xff]
      %v292 = vld [vmem:[%s231 + $0x140] sm:$0xff]
      %v293 = vld [vmem:[%s231 + $0x148] sm:$0xff]
      %v294 = vld [vmem:[%s231 + $0x150] sm:$0xff]
      %v295 = vld [vmem:[%s231 + $0x158] sm:$0xff]
      %v296 = vld [vmem:[%s231 + $0x160] sm:$0xff]
      %v297 = vld [vmem:[%s231 + $0x168] sm:$0xff]
      %v298 = vld [vmem:[%s231 + $0x170] sm:$0xff]
      %v299 = vld [vmem:[%s231 + $0x178] sm:$0xff]
      %v300 = vld [vmem:[%s231 + $0x180] sm:$0xff]
      %v301 = vld [vmem:[%s231 + $0x188] sm:$0xff]
      %v302 = vld [vmem:[%s231 + $0x190] sm:$0xff]
      %v303 = vld [vmem:[%s231 + $0x198] sm:$0xff]
      %v304 = vld [vmem:[%s231 + $0x1a0] sm:$0xff]
      %v305 = vld [vmem:[%s231 + $0x1a8] sm:$0xff]
      %v306 = vld [vmem:[%s231 + $0x1b0] sm:$0xff]
      %v307 = vld [vmem:[%s231 + $0x1b8] sm:$0xff]
      %v308 = vld [vmem:[%s231 + $0x1c0] sm:$0xff]
      %v309 = vld [vmem:[%s231 + $0x1c8] sm:$0xff]
      %v310 = vld [vmem:[%s231 + $0x1d0] sm:$0xff]
      %v311 = vld [vmem:[%s231 + $0x1d8] sm:$0xff]
      %v312 = vld [vmem:[%s231 + $0x1e0] sm:$0xff]
      %v313 = vld [vmem:[%s231 + $0x1e8] sm:$0xff]
      %v314 = vld [vmem:[%s231 + $0x1f0] sm:$0xff]
      %v315 = vld [vmem:[%s231 + $0x1f8] sm:$0xff]
      %v316 = vtanh.pop %v252
      %v317 = vtanh.pop %v253
      %v318 = vtanh.pop %v254
      %v319 = vtanh.pop %v255
      %v320 = vtanh.pop %v256
      %v321 = vtanh.pop %v257
      %v322 = vtanh.pop %v258
      %v323 = vtanh.pop %v259
      %v324 = vtanh.pop %v260
      %v325 = vtanh.pop %v261
      %v326 = vtanh.pop %v262
      %v327 = vtanh.pop %v263
      %v328 = vtanh.pop %v264
      %v329 = vtanh.pop %v265
      %v330 = vtanh.pop %v266
      %v331 = vtanh.pop %v267
      %v332 = vtanh.pop %v268
      %v333 = vtanh.pop %v269
      %v334 = vtanh.pop %v270
      %v335 = vtanh.pop %v271
      %v336 = vtanh.pop %v272
      %v337 = vtanh.pop %v273
      %v338 = vtanh.pop %v274
      %v339 = vtanh.pop %v275
      %v340 = vtanh.pop %v276
      %v341 = vtanh.pop %v277
      %v342 = vtanh.pop %v278
      %v343 = vtanh.pop %v279
      %v344 = vtanh.pop %v280
      %v345 = vtanh.pop %v281
      %v346 = vtanh.pop %v282
      %v347 = vtanh.pop %v283
      %v348 = vtanh.pop %v284
      %v349 = vtanh.pop %v285
      %v350 = vtanh.pop %v286
      %v351 = vtanh.pop %v287
      %v352 = vtanh.pop %v288
      %v353 = vtanh.pop %v289
      %v354 = vtanh.pop %v290
      %v355 = vtanh.pop %v291
      %v356 = vtanh.pop %v292
      %v357 = vtanh.pop %v293
      %v358 = vtanh.pop %v294
      %v359 = vtanh.pop %v295
      %v360 = vtanh.pop %v296
      %v361 = vtanh.pop %v297
      %v362 = vtanh.pop %v298
      %v363 = vtanh.pop %v299
      %v364 = vtanh.pop %v300
      %v365 = vtanh.pop %v301
      %v366 = vtanh.pop %v302
      %v367 = vtanh.pop %v303
      %v368 = vtanh.pop %v304
      %v369 = vtanh.pop %v305
      %v370 = vtanh.pop %v306
      %v371 = vtanh.pop %v307
      %v372 = vtanh.pop %v308
      %v373 = vtanh.pop %v309
      %v374 = vtanh.pop %v310
      %v375 = vtanh.pop %v311
      %v376 = vtanh.pop %v312
      %v377 = vtanh.pop %v313
      %v378 = vtanh.pop %v314
      %v379 = vtanh.pop %v315
      %vm380 = vcmask 15360
      %381 = vst.msk [vmem:[%s251] sm:$0xff] %vm380, %v316
      %382 = vst.msk [vmem:[%s251 + $0x8] sm:$0xff] %vm380, %v317
      %383 = vst.msk [vmem:[%s251 + $0x10] sm:$0xff] %vm380, %v318
      %384 = vst.msk [vmem:[%s251 + $0x18] sm:$0xff] %vm380, %v319
      %385 = vst.msk [vmem:[%s251 + $0x20] sm:$0xff] %vm380, %v320
      %386 = vst.msk [vmem:[%s251 + $0x28] sm:$0xff] %vm380, %v321
      %387 = vst.msk [vmem:[%s251 + $0x30] sm:$0xff] %vm380, %v322
      %388 = vst.msk [vmem:[%s251 + $0x38] sm:$0xff] %vm380, %v323
      %389 = vst.msk [vmem:[%s251 + $0x40] sm:$0xff] %vm380, %v324
      %390 = vst.msk [vmem:[%s251 + $0x48] sm:$0xff] %vm380, %v325
      %391 = vst.msk [vmem:[%s251 + $0x50] sm:$0xff] %vm380, %v326
      %392 = vst.msk [vmem:[%s251 + $0x58] sm:$0xff] %vm380, %v327
      %393 = vst.msk [vmem:[%s251 + $0x60] sm:$0xff] %vm380, %v328
      %394 = vst.msk [vmem:[%s251 + $0x68] sm:$0xff] %vm380, %v329
      %395 = vst.msk [vmem:[%s251 + $0x70] sm:$0xff] %vm380, %v330
      %396 = vst.msk [vmem:[%s251 + $0x78] sm:$0xff] %vm380, %v331
      %397 = vst.msk [vmem:[%s251 + $0x80] sm:$0xff] %vm380, %v332
      %398 = vst.msk [vmem:[%s251 + $0x88] sm:$0xff] %vm380, %v333
      %399 = vst.msk [vmem:[%s251 + $0x90] sm:$0xff] %vm380, %v334
      %400 = vst.msk [vmem:[%s251 + $0x98] sm:$0xff] %vm380, %v335
      %401 = vst.msk [vmem:[%s251 + $0xa0] sm:$0xff] %vm380, %v336
      %402 = vst.msk [vmem:[%s251 + $0xa8] sm:$0xff] %vm380, %v337
      %403 = vst.msk [vmem:[%s251 + $0xb0] sm:$0xff] %vm380, %v338
      %404 = vst.msk [vmem:[%s251 + $0xb8] sm:$0xff] %vm380, %v339
      %405 = vst.msk [vmem:[%s251 + $0xc0] sm:$0xff] %vm380, %v340
      %406 = vst.msk [vmem:[%s251 + $0xc8] sm:$0xff] %vm380, %v341
      %407 = vst.msk [vmem:[%s251 + $0xd0] sm:$0xff] %vm380, %v342
      %408 = vst.msk [vmem:[%s251 + $0xd8] sm:$0xff] %vm380, %v343
      %409 = vst.msk [vmem:[%s251 + $0xe0] sm:$0xff] %vm380, %v344
      %410 = vst.msk [vmem:[%s251 + $0xe8] sm:$0xff] %vm380, %v345
      %411 = vst.msk [vmem:[%s251 + $0xf0] sm:$0xff] %vm380, %v346
      %412 = vst.msk [vmem:[%s251 + $0xf8] sm:$0xff] %vm380, %v347
      %413 = vst.msk [vmem:[%s251 + $0x100] sm:$0xff] %vm380, %v348
      %414 = vst.msk [vmem:[%s251 + $0x108] sm:$0xff] %vm380, %v349
      %415 = vst.msk [vmem:[%s251 + $0x110] sm:$0xff] %vm380, %v350
      %416 = vst.msk [vmem:[%s251 + $0x118] sm:$0xff] %vm380, %v351
      %417 = vst.msk [vmem:[%s251 + $0x120] sm:$0xff] %vm380, %v352
      %418 = vst.msk [vmem:[%s251 + $0x128] sm:$0xff] %vm380, %v353
      %419 = vst.msk [vmem:[%s251 + $0x130] sm:$0xff] %vm380, %v354
      %420 = vst.msk [vmem:[%s251 + $0x138] sm:$0xff] %vm380, %v355
      %421 = vst.msk [vmem:[%s251 + $0x140] sm:$0xff] %vm380, %v356
      %422 = vst.msk [vmem:[%s251 + $0x148] sm:$0xff] %vm380, %v357
      %423 = vst.msk [vmem:[%s251 + $0x150] sm:$0xff] %vm380, %v358
      %424 = vst.msk [vmem:[%s251 + $0x158] sm:$0xff] %vm380, %v359
      %425 = vst.msk [vmem:[%s251 + $0x160] sm:$0xff] %vm380, %v360
      %426 = vst.msk [vmem:[%s251 + $0x168] sm:$0xff] %vm380, %v361
      %427 = vst.msk [vmem:[%s251 + $0x170] sm:$0xff] %vm380, %v362
      %428 = vst.msk [vmem:[%s251 + $0x178] sm:$0xff] %vm380, %v363
      %429 = vst.msk [vmem:[%s251 + $0x180] sm:$0xff] %vm380, %v364
      %430 = vst.msk [vmem:[%s251 + $0x188] sm:$0xff] %vm380, %v365
      %431 = vst.msk [vmem:[%s251 + $0x190] sm:$0xff] %vm380, %v366
      %432 = vst.msk [vmem:[%s251 + $0x198] sm:$0xff] %vm380, %v367
      %433 = vst.msk [vmem:[%s251 + $0x1a0] sm:$0xff] %vm380, %v368
      %434 = vst.msk [vmem:[%s251 + $0x1a8] sm:$0xff] %vm380, %v369
      %435 = vst.msk [vmem:[%s251 + $0x1b0] sm:$0xff] %vm380, %v370
      %436 = vst.msk [vmem:[%s251 + $0x1b8] sm:$0xff] %vm380, %v371
      %437 = vst.msk [vmem:[%s251 + $0x1c0] sm:$0xff] %vm380, %v372
      %438 = vst.msk [vmem:[%s251 + $0x1c8] sm:$0xff] %vm380, %v373
      %439 = vst.msk [vmem:[%s251 + $0x1d0] sm:$0xff] %vm380, %v374
      %440 = vst.msk [vmem:[%s251 + $0x1d8] sm:$0xff] %vm380, %v375
      %441 = vst.msk [vmem:[%s251 + $0x1e0] sm:$0xff] %vm380, %v376
      %442 = vst.msk [vmem:[%s251 + $0x1e8] sm:$0xff] %vm380, %v377
      %443 = vst.msk [vmem:[%s251 + $0x1f0] sm:$0xff] %vm380, %v378
      %444 = vst.msk [vmem:[%s251 + $0x1f8] sm:$0xff] %vm380, %v379
      %p445 = scmp.lt.s32.totalorder %s18, 1
      %s446 = scalar_select %p445, %s18, 1
      %p447 = scmp.lt.s32.totalorder %s19, 0
      %s448 = scalar_select %p447, %s19, 0
      %s449 = smul.addr %s446, 64
      %s450 = sadd.s32 %s448, %s449
      %s451 = smul.addr %s450, 8
      %s452 = scalar_lea.vmem %s3, %s451
      // Predicated region
      $region33: #{_lambda_.23} parent=31 // pred_check
        %p453 = pneg %p130
      $region34: #{_lambda_.23} parent=31 // pred_check_branch
        %455 = sbr.rel (%p453) target = $region36
      $region35: #{_lambda_.23} parent=31 // pred_region
        _
      $region36: #{_lambda_.23} parent=31 // pred_fallthru
        _
    $region32: #{_lambda_.23} parent=5 // pred_fallthru
      _
    %p456 = scmp.le.s32.totalorder 2, %s9
    // Predicated region
    $region37: #{_lambda_.23} parent=5 // pred_check
      %p457 = pneg %p456
    $region38: #{_lambda_.23} parent=5 // pred_check_branch
      %459 = sbr.rel (%p457) target = $region40
    $region39: #{_lambda_.23} parent=5 // pred_region
      %s460 = ssub.s32 %s9, 2
      // Predicated region
      $region41: #{_lambda_.23} parent=39 // pred_check
        %p461 = pneg %p136
      $region42: #{_lambda_.23} parent=39 // pred_check_branch
        %463 = sbr.rel (%p461) target = $region44
      $region43: #{_lambda_.23} parent=39 // pred_region
        %p464 = scmp.lt.s32.totalorder %s20, 1
        %s465 = scalar_select %p464, %s20, 1
        %p466 = scmp.lt.s32.totalorder %s21, 0
        %s467 = scalar_select %p466, %s21, 0
        %s468 = smul.addr %s465, 64
        %s469 = sadd.s32 %s467, %s468
        %s470 = smul.addr %s469, 8
        %s471 = scalar_lea.vmem %s3, %s470
      $region44: #{_lambda_.23} parent=39 // pred_fallthru
        _
    $region40: #{_lambda_.23} parent=5 // pred_fallthru
      _
  $region6: #{_lambda_.23} parent=0 // loop_footer
    %s13 = sadd.s32 1, %s9
  $region7: #{_lambda_.23} parent=0 // loop_footer_branch
    %8 = sbr.rel target = $region3
  $region8: #{_lambda_.23} parent=0 // loop_exit
    _

// kernel: _lambda_.20
$region0: #{_lambda_.20}
  #allocation0 [shape = 'u32[]', space=smem, size = 0x4, offset = 0x4, fixed_abs, tag = 'smem constant byte address 0x4 - core index']
  #allocation1 [shape = 'u32[144,128]{1,0:T(1,128)}', space=vmem, size = 0x12000, scoped, tag = 'internal scratch']
  %s0 = inlined_call_operand.vmem [shape: bf16[128,4], index: 0, kind: input, shape index: {}]
  %s1 = inlined_call_operand.vmem [shape: bf16[4,32], index: 1, kind: input, shape index: {}]
  %s2 = inlined_call_operand.vmem [shape: f32[128,32], index: 2, kind: output, shape index: {}]
  %s3 = sld [smem:[#allocation0]]
  $region18: #{_lambda_.20} parent=0
    _
  %s5 = ssub.s32 1, %s3
  %s6 = scalar_select 0, %s5, %s3
  // Predicated region
  $region2: #{_lambda_.20} parent=0 // pred_check
    _
  $region3: #{_lambda_.20} parent=0 // pred_check_branch
    %8 = sbr.rel (0) target = $region5
  $region4: #{_lambda_.20} parent=0 // pred_region
    _
  $region5: #{_lambda_.20} parent=0 // pred_fallthru
    _
  // Predicated region
  $region6: #{_lambda_.20} parent=0 // pred_check
    _
  $region7: #{_lambda_.20} parent=0 // pred_check_branch
    %10 = sbr.rel (0) target = $region9
  $region8: #{_lambda_.20} parent=0 // pred_region
    _
  $region9: #{_lambda_.20} parent=0 // pred_fallthru
    _
  %v12 = vld [vmem:[%s0] sm:$0xf]
  %v13 = vld [vmem:[%s0 + $0x4] sm:$0xf]
  %v14 = vld [vmem:[%s0 + $0x8] sm:$0xf]
  %v15 = vld [vmem:[%s0 + $0xc] sm:$0xf]
  %v16 = vld [vmem:[%s0 + $0x10] sm:$0xf]
  %v17 = vld [vmem:[%s0 + $0x14] sm:$0xf]
  %v18 = vld [vmem:[%s0 + $0x18] sm:$0xf]
  %v19 = vld [vmem:[%s0 + $0x1c] sm:$0xf]
  %v20 = vld [vmem:[%s0 + $0x20] sm:$0xf]
  %v21 = vld [vmem:[%s0 + $0x24] sm:$0xf]
  %v22 = vld [vmem:[%s0 + $0x28] sm:$0xf]
  %v23 = vld [vmem:[%s0 + $0x2c] sm:$0xf]
  %v24 = vld [vmem:[%s0 + $0x30] sm:$0xf]
  %v25 = vld [vmem:[%s0 + $0x34] sm:$0xf]
  %v26 = vld [vmem:[%s0 + $0x38] sm:$0xf]
  %v27 = vld [vmem:[%s0 + $0x3c] sm:$0xf]
  %v28 = vld [vmem:[%s1] sm:$0x3]
  %v45 = vunpack.c.l.b16 %v12
  %v46 = vunpack.c.l.b16 %v13
  %v47 = vunpack.c.l.b16 %v14
  %v48 = vunpack.c.l.b16 %v15
  %v49 = vunpack.c.l.b16 %v16
  %v50 = vunpack.c.l.b16 %v17
  %v51 = vunpack.c.l.b16 %v18
  %v52 = vunpack.c.l.b16 %v19
  %v53 = vunpack.c.l.b16 %v20
  %v54 = vunpack.c.l.b16 %v21
  %v55 = vunpack.c.l.b16 %v22
  %v56 = vunpack.c.l.b16 %v23
  %v57 = vunpack.c.l.b16 %v24
  %v58 = vunpack.c.l.b16 %v25
  %v59 = vunpack.c.l.b16 %v26
  %v60 = vunpack.c.l.b16 %v27
  %v61 = vpack.c.b16 %v46, %v45
  %v62 = vpack.c.b16 %v48, %v47
  %v63 = vpack.c.b16 %v50, %v49
  %v64 = vpack.c.b16 %v52, %v51
  %v65 = vpack.c.b16 %v54, %v53
  %v66 = vpack.c.b16 %v56, %v55
  %v67 = vpack.c.b16 %v58, %v57
  %v68 = vpack.c.b16 %v60, %v59
  %vm69 = vcmask 31744
  %v71 = vsel %vm69, %v61, 0
  %v74 = vsel %vm69, %v62, 0
  %v77 = vsel %vm69, %v63, 0
  %v80 = vsel %vm69, %v64, 0
  %v83 = vsel %vm69, %v65, 0
  %v86 = vsel %vm69, %v66, 0
  %v89 = vsel %vm69, %v67, 0
  %v92 = vsel %vm69, %v68, 0
  %vm94 = vcmask 1041408
  %v96 = vsel %vm94, %v28, 0
  %98 = vmatprep.subr.bf16.mxu0 0
  %99 = vmatpush1.bf16.msra.mxu0 %v96
  %100 = vmatprep.subr.bf16.mxu0 0
  %101 = vmatpush1.bf16.msra.mxu0 0
  %102 = vmatprep.subr.bf16.mxu0 0
  %103 = vmatpush1.bf16.msra.mxu0 0
  %104 = vmatprep.subr.bf16.mxu0 0
  %105 = vmatpush1.bf16.msra.mxu0 0
  %106 = vmatprep.subr.bf16.mxu0 0
  %107 = vmatpush1.bf16.msra.mxu0 0
  %108 = vmatprep.subr.bf16.mxu0 0
  %109 = vmatpush1.bf16.msra.mxu0 0
  %110 = vmatprep.subr.bf16.mxu0 0
  %111 = vmatpush1.bf16.msra.mxu0 0
  %112 = vmatprep.subr.bf16.mxu0 0
  %113 = vmatpush1.bf16.msra.mxu0 0
  %114 = vmatprep.subr.bf16.mxu0 0
  %115 = vmatpush1.bf16.msra.mxu0 0
  %116 = vmatprep.subr.bf16.mxu0 0
  %117 = vmatpush1.bf16.msra.mxu0 0
  %118 = vmatprep.subr.bf16.mxu0 0
  %119 = vmatpush1.bf16.msra.mxu0 0
  %120 = vmatprep.subr.bf16.mxu0 0
  %121 = vmatpush1.bf16.msra.mxu0 0
  %122 = vmatprep.subr.bf16.mxu0 0
  %123 = vmatpush1.bf16.msra.mxu0 0
  %124 = vmatprep.subr.bf16.mxu0 0
  %125 = vmatpush1.bf16.msra.mxu0 0
  %126 = vmatprep.subr.bf16.mxu0 0
  %127 = vmatpush1.bf16.msra.mxu0 0
  %128 = vmatprep.subr.bf16.mxu0 0
  %129 = vmatpush1.bf16.msra.mxu0 0
  %130 = vmatprep.mubr.bf16.mxu0 0
  %131 = vmatmul.mubr.bf16.gmra.mrb[0].mxu0 %v71
  %v132 = vpop.f32.mrb[0].mxu0
  %v133 = vadd.f32 0.0, %v132
  %v134 = vpop.f32.mrb[0].mxu0
  %v135 = vpop.f32.mrb[0].mxu0
  %v136 = vadd.f32 0.0, %v135
  %v137 = vpop.f32.mrb[0].mxu0
  %138 = vmatprep.mubr.bf16.mxu0 0
  %139 = vmatmul.mubr.bf16.gmra.mrb[0].mxu0 %v74
  %v140 = vpop.f32.mrb[0].mxu0
  %v141 = vadd.f32 0.0, %v140
  %v142 = vpop.f32.mrb[0].mxu0
  %v143 = vpop.f32.mrb[0].mxu0
  %v144 = vadd.f32 0.0, %v143
  %v145 = vpop.f32.mrb[0].mxu0
  %146 = vmatprep.mubr.bf16.mxu0 0
  %147 = vmatmul.mubr.bf16.gmra.mrb[0].mxu0 %v77
  %v148 = vpop.f32.mrb[0].mxu0
  %v149 = vadd.f32 0.0, %v148
  %v150 = vpop.f32.mrb[0].mxu0
  %v151 = vpop.f32.mrb[0].mxu0
  %v152 = vadd.f32 0.0, %v151
  %v153 = vpop.f32.mrb[0].mxu0
  %154 = vmatprep.mubr.bf16.mxu0 0
  %155 = vmatmul.mubr.bf16.gmra.mrb[0].mxu0 %v80
  %v156 = vpop.f32.mrb[0].mxu0
  %v157 = vadd.f32 0.0, %v156
  %v158 = vpop.f32.mrb[0].mxu0
  %v159 = vpop.f32.mrb[0].mxu0
  %v160 = vadd.f32 0.0, %v159
  %v161 = vpop.f32.mrb[0].mxu0
  %162 = vmatprep.mubr.bf16.mxu0 0
  %163 = vmatmul.mubr.bf16.gmra.mrb[0].mxu0 %v83
  %v164 = vpop.f32.mrb[0].mxu0
  %v165 = vadd.f32 0.0, %v164
  %v166 = vpop.f32.mrb[0].mxu0
  %v167 = vpop.f32.mrb[0].mxu0
  %v168 = vadd.f32 0.0, %v167
  %v169 = vpop.f32.mrb[0].mxu0
  %170 = vmatprep.mubr.bf16.mxu0 0
  %171 = vmatmul.mubr.bf16.gmra.mrb[0].mxu0 %v86
  %v172 = vpop.f32.mrb[0].mxu0
  %v173 = vadd.f32 0.0, %v172
  %v174 = vpop.f32.mrb[0].mxu0
  %v175 = vpop.f32.mrb[0].mxu0
  %v176 = vadd.f32 0.0, %v175
  %v177 = vpop.f32.mrb[0].mxu0
  %178 = vmatprep.mubr.bf16.mxu0 0
  %179 = vmatmul.mubr.bf16.gmra.mrb[0].mxu0 %v89
  %v180 = vpop.f32.mrb[0].mxu0
  %v181 = vadd.f32 0.0, %v180
  %v182 = vpop.f32.mrb[0].mxu0
  %v183 = vpop.f32.mrb[0].mxu0
  %v184 = vadd.f32 0.0, %v183
  %v185 = vpop.f32.mrb[0].mxu0
  %186 = vmatprep.mubr.bf16.mxu0 0
  %187 = vmatmul.mubr.bf16.gmra.mrb[0].mxu0 %v92
  %v188 = vpop.f32.mrb[0].mxu0
  %v189 = vadd.f32 0.0, %v188
  %v190 = vpop.f32.mrb[0].mxu0
  %v191 = vpop.f32.mrb[0].mxu0
  %v192 = vadd.f32 0.0, %v191
  %v193 = vpop.f32.mrb[0].mxu0
  %194 = vdwg.mxu0
  %vm195 = vcmask 261120
  %196 = vst.msk [vmem:[%s2] sm:$0xff] %vm195, %v133
  %197 = vst.msk [vmem:[%s2 + $0x8] sm:$0xff] %vm195, %v136
  %198 = vst.msk [vmem:[%s2 + $0x10] sm:$0xff] %vm195, %v141
  %199 = vst.msk [vmem:[%s2 + $0x18] sm:$0xff] %vm195, %v144
  %200 = vst.msk [vmem:[%s2 + $0x20] sm:$0xff] %vm195, %v149
  %201 = vst.msk [vmem:[%s2 + $0x28] sm:$0xff] %vm195, %v152
  %202 = vst.msk [vmem:[%s2 + $0x30] sm:$0xff] %vm195, %v157
  %203 = vst.msk [vmem:[%s2 + $0x38] sm:$0xff] %vm195, %v160
  %204 = vst.msk [vmem:[%s2 + $0x40] sm:$0xff] %vm195, %v165
  %205 = vst.msk [vmem:[%s2 + $0x48] sm:$0xff] %vm195, %v168
  %206 = vst.msk [vmem:[%s2 + $0x50] sm:$0xff] %vm195, %v173
  %207 = vst.msk [vmem:[%s2 + $0x58] sm:$0xff] %vm195, %v176
  %208 = vst.msk [vmem:[%s2 + $0x60] sm:$0xff] %vm195, %v181
  %209 = vst.msk [vmem:[%s2 + $0x68] sm:$0xff] %vm195, %v184
  %210 = vst.msk [vmem:[%s2 + $0x70] sm:$0xff] %vm195, %v189
  %211 = vst.msk [vmem:[%s2 + $0x78] sm:$0xff] %vm195, %v192
  // Predicated region
  $region10: #{_lambda_.20} parent=0 // pred_check
    _
  $region11: #{_lambda_.20} parent=0 // pred_check_branch
    %213 = sbr.rel (0) target = $region13
  $region12: #{_lambda_.20} parent=0 // pred_region
    _
  $region13: #{_lambda_.20} parent=0 // pred_fallthru
    _
  // Predicated region
  $region14: #{_lambda_.20} parent=0 // pred_check
    _
  $region15: #{_lambda_.20} parent=0 // pred_check_branch
    %215 = sbr.rel (0) target = $region17
  $region16: #{_lambda_.20} parent=0 // pred_region
    _
  $region17: #{_lambda_.20} parent=0 // pred_fallthru
    _

// kernel: _lambda_.22
$region0: #{_lambda_.22}
  #allocation0 [shape = 'u32[]', space=smem, size = 0x4, offset = 0x4, fixed_abs, tag = 'smem constant byte address 0x4 - core index']
  #allocation1 [shape = 'u32[144,128]{1,0:T(1,128)}', space=vmem, size = 0x12000, scoped, tag = 'internal scratch']
  %s0 = inlined_call_operand.vmem [shape: f32[1,512,2], index: 0, kind: input, shape index: {}]
  %s1 = inlined_call_operand.vmem [shape: f32[1,1,2], index: 1, kind: input, shape index: {}]
  %s2 = inlined_call_operand.vmem [shape: f32[1,1,2], index: 2, kind: input, shape index: {}]
  %s3 = inlined_call_operand.vmem [shape: f32[1,512,2], index: 3, kind: output, shape index: {}]
  %s4 = sld [smem:[#allocation0]]
  $region22: #{_lambda_.22} parent=0
    _
  %s6 = ssub.s32 1, %s4
  %s7 = scalar_select 0, %s6, %s4
  // Predicated region
  $region2: #{_lambda_.22} parent=0 // pred_check
    _
  $region3: #{_lambda_.22} parent=0 // pred_check_branch
    %9 = sbr.rel (0) target = $region5
  $region4: #{_lambda_.22} parent=0 // pred_region
    _
  $region5: #{_lambda_.22} parent=0 // pred_fallthru
    _
  // Predicated region
  $region6: #{_lambda_.22} parent=0 // pred_check
    _
  $region7: #{_lambda_.22} parent=0 // pred_check_branch
    %11 = sbr.rel (0) target = $region9
  $region8: #{_lambda_.22} parent=0 // pred_region
    _
  $region9: #{_lambda_.22} parent=0 // pred_fallthru
    _
  // Predicated region
  $region10: #{_lambda_.22} parent=0 // pred_check
    _
  $region11: #{_lambda_.22} parent=0 // pred_check_branch
    %13 = sbr.rel (0) target = $region13
  $region12: #{_lambda_.22} parent=0 // pred_region
    _
  $region13: #{_lambda_.22} parent=0 // pred_fallthru
    _
  %v14 = vld [vmem:[%s0] sm:$0xff]
  %v15 = vld [vmem:[%s0 + $0x8] sm:$0xff]
  %v16 = vld [vmem:[%s0 + $0x10] sm:$0xff]
  %v17 = vld [vmem:[%s0 + $0x18] sm:$0xff]
  %v18 = vld [vmem:[%s0 + $0x20] sm:$0xff]
  %v19 = vld [vmem:[%s0 + $0x28] sm:$0xff]
  %v20 = vld [vmem:[%s0 + $0x30] sm:$0xff]
  %v21 = vld [vmem:[%s0 + $0x38] sm:$0xff]
  %v22 = vld [vmem:[%s0 + $0x40] sm:$0xff]
  %v23 = vld [vmem:[%s0 + $0x48] sm:$0xff]
  %v24 = vld [vmem:[%s0 + $0x50] sm:$0xff]
  %v25 = vld [vmem:[%s0 + $0x58] sm:$0xff]
  %v26 = vld [vmem:[%s0 + $0x60] sm:$0xff]
  %v27 = vld [vmem:[%s0 + $0x68] sm:$0xff]
  %v28 = vld [vmem:[%s0 + $0x70] sm:$0xff]
  %v29 = vld [vmem:[%s0 + $0x78] sm:$0xff]
  %v30 = vld [vmem:[%s0 + $0x80] sm:$0xff]
  %v31 = vld [vmem:[%s0 + $0x88] sm:$0xff]
  %v32 = vld [vmem:[%s0 + $0x90] sm:$0xff]
  %v33 = vld [vmem:[%s0 + $0x98] sm:$0xff]
  %v34 = vld [vmem:[%s0 + $0xa0] sm:$0xff]
  %v35 = vld [vmem:[%s0 + $0xa8] sm:$0xff]
  %v36 = vld [vmem:[%s0 + $0xb0] sm:$0xff]
  %v37 = vld [vmem:[%s0 + $0xb8] sm:$0xff]
  %v38 = vld [vmem:[%s0 + $0xc0] sm:$0xff]
  %v39 = vld [vmem:[%s0 + $0xc8] sm:$0xff]
  %v40 = vld [vmem:[%s0 + $0xd0] sm:$0xff]
  %v41 = vld [vmem:[%s0 + $0xd8] sm:$0xff]
  %v42 = vld [vmem:[%s0 + $0xe0] sm:$0xff]
  %v43 = vld [vmem:[%s0 + $0xe8] sm:$0xff]
  %v44 = vld [vmem:[%s0 + $0xf0] sm:$0xff]
  %v45 = vld [vmem:[%s0 + $0xf8] sm:$0xff]
  %v46 = vld [vmem:[%s0 + $0x100] sm:$0xff]
  %v47 = vld [vmem:[%s0 + $0x108] sm:$0xff]
  %v48 = vld [vmem:[%s0 + $0x110] sm:$0xff]
  %v49 = vld [vmem:[%s0 + $0x118] sm:$0xff]
  %v50 = vld [vmem:[%s0 + $0x120] sm:$0xff]
  %v51 = vld [vmem:[%s0 + $0x128] sm:$0xff]
  %v52 = vld [vmem:[%s0 + $0x130] sm:$0xff]
  %v53 = vld [vmem:[%s0 + $0x138] sm:$0xff]
  %v54 = vld [vmem:[%s0 + $0x140] sm:$0xff]
  %v55 = vld [vmem:[%s0 + $0x148] sm:$0xff]
  %v56 = vld [vmem:[%s0 + $0x150] sm:$0xff]
  %v57 = vld [vmem:[%s0 + $0x158] sm:$0xff]
  %v58 = vld [vmem:[%s0 + $0x160] sm:$0xff]
  %v59 = vld [vmem:[%s0 + $0x168] sm:$0xff]
  %v60 = vld [vmem:[%s0 + $0x170] sm:$0xff]
  %v61 = vld [vmem:[%s0 + $0x178] sm:$0xff]
  %v62 = vld [vmem:[%s0 + $0x180] sm:$0xff]
  %v63 = vld [vmem:[%s0 + $0x188] sm:$0xff]
  %v64 = vld [vmem:[%s0 + $0x190] sm:$0xff]
  %v65 = vld [vmem:[%s0 + $0x198] sm:$0xff]
  %v66 = vld [vmem:[%s0 + $0x1a0] sm:$0xff]
  %v67 = vld [vmem:[%s0 + $0x1a8] sm:$0xff]
  %v68 = vld [vmem:[%s0 + $0x1b0] sm:$0xff]
  %v69 = vld [vmem:[%s0 + $0x1b8] sm:$0xff]
  %v70 = vld [vmem:[%s0 + $0x1c0] sm:$0xff]
  %v71 = vld [vmem:[%s0 + $0x1c8] sm:$0xff]
  %v72 = vld [vmem:[%s0 + $0x1d0] sm:$0xff]
  %v73 = vld [vmem:[%s0 + $0x1d8] sm:$0xff]
  %v74 = vld [vmem:[%s0 + $0x1e0] sm:$0xff]
  %v75 = vld [vmem:[%s0 + $0x1e8] sm:$0xff]
  %v76 = vld [vmem:[%s0 + $0x1f0] sm:$0xff]
  %v77 = vld [vmem:[%s0 + $0x1f8] sm:$0xff]
  %v78 = vtanh.pop %v14
  %v79 = vtanh.pop %v15
  %v80 = vtanh.pop %v16
  %v81 = vtanh.pop %v17
  %v82 = vtanh.pop %v18
  %v83 = vtanh.pop %v19
  %v84 = vtanh.pop %v20
  %v85 = vtanh.pop %v21
  %v86 = vtanh.pop %v22
  %v87 = vtanh.pop %v23
  %v88 = vtanh.pop %v24
  %v89 = vtanh.pop %v25
  %v90 = vtanh.pop %v26
  %v91 = vtanh.pop %v27
  %v92 = vtanh.pop %v28
  %v93 = vtanh.pop %v29
  %v94 = vtanh.pop %v30
  %v95 = vtanh.pop %v31
  %v96 = vtanh.pop %v32
  %v97 = vtanh.pop %v33
  %v98 = vtanh.pop %v34
  %v99 = vtanh.pop %v35
  %v100 = vtanh.pop %v36
  %v101 = vtanh.pop %v37
  %v102 = vtanh.pop %v38
  %v103 = vtanh.pop %v39
  %v104 = vtanh.pop %v40
  %v105 = vtanh.pop %v41
  %v106 = vtanh.pop %v42
  %v107 = vtanh.pop %v43
  %v108 = vtanh.pop %v44
  %v109 = vtanh.pop %v45
  %v110 = vtanh.pop %v46
  %v111 = vtanh.pop %v47
  %v112 = vtanh.pop %v48
  %v113 = vtanh.pop %v49
  %v114 = vtanh.pop %v50
  %v115 = vtanh.pop %v51
  %v116 = vtanh.pop %v52
  %v117 = vtanh.pop %v53
  %v118 = vtanh.pop %v54
  %v119 = vtanh.pop %v55
  %v120 = vtanh.pop %v56
  %v121 = vtanh.pop %v57
  %v122 = vtanh.pop %v58
  %v123 = vtanh.pop %v59
  %v124 = vtanh.pop %v60
  %v125 = vtanh.pop %v61
  %v126 = vtanh.pop %v62
  %v127 = vtanh.pop %v63
  %v128 = vtanh.pop %v64
  %v129 = vtanh.pop %v65
  %v130 = vtanh.pop %v66
  %v131 = vtanh.pop %v67
  %v132 = vtanh.pop %v68
  %v133 = vtanh.pop %v69
  %v134 = vtanh.pop %v70
  %v135 = vtanh.pop %v71
  %v136 = vtanh.pop %v72
  %v137 = vtanh.pop %v73
  %v138 = vtanh.pop %v74
  %v139 = vtanh.pop %v75
  %v140 = vtanh.pop %v76
  %v141 = vtanh.pop %v77
  %vm142 = vcmask 15360
  %143 = vst.msk [vmem:[%s3] sm:$0xff] %vm142, %v78
  %144 = vst.msk [vmem:[%s3 + $0x8] sm:$0xff] %vm142, %v79
  %145 = vst.msk [vmem:[%s3 + $0x10] sm:$0xff] %vm142, %v80
  %146 = vst.msk [vmem:[%s3 + $0x18] sm:$0xff] %vm142, %v81
  %147 = vst.msk [vmem:[%s3 + $0x20] sm:$0xff] %vm142, %v82
  %148 = vst.msk [vmem:[%s3 + $0x28] sm:$0xff] %vm142, %v83
  %149 = vst.msk [vmem:[%s3 + $0x30] sm:$0xff] %vm142, %v84
  %150 = vst.msk [vmem:[%s3 + $0x38] sm:$0xff] %vm142, %v85
  %151 = vst.msk [vmem:[%s3 + $0x40] sm:$0xff] %vm142, %v86
  %152 = vst.msk [vmem:[%s3 + $0x48] sm:$0xff] %vm142, %v87
  %153 = vst.msk [vmem:[%s3 + $0x50] sm:$0xff] %vm142, %v88
  %154 = vst.msk [vmem:[%s3 + $0x58] sm:$0xff] %vm142, %v89
  %155 = vst.msk [vmem:[%s3 + $0x60] sm:$0xff] %vm142, %v90
  %156 = vst.msk [vmem:[%s3 + $0x68] sm:$0xff] %vm142, %v91
  %157 = vst.msk [vmem:[%s3 + $0x70] sm:$0xff] %vm142, %v92
  %158 = vst.msk [vmem:[%s3 + $0x78] sm:$0xff] %vm142, %v93
  %159 = vst.msk [vmem:[%s3 + $0x80] sm:$0xff] %vm142, %v94
  %160 = vst.msk [vmem:[%s3 + $0x88] sm:$0xff] %vm142, %v95
  %161 = vst.msk [vmem:[%s3 + $0x90] sm:$0xff] %vm142, %v96
  %162 = vst.msk [vmem:[%s3 + $0x98] sm:$0xff] %vm142, %v97
  %163 = vst.msk [vmem:[%s3 + $0xa0] sm:$0xff] %vm142, %v98
  %164 = vst.msk [vmem:[%s3 + $0xa8] sm:$0xff] %vm142, %v99
  %165 = vst.msk [vmem:[%s3 + $0xb0] sm:$0xff] %vm142, %v100
  %166 = vst.msk [vmem:[%s3 + $0xb8] sm:$0xff] %vm142, %v101
  %167 = vst.msk [vmem:[%s3 + $0xc0] sm:$0xff] %vm142, %v102
  %168 = vst.msk [vmem:[%s3 + $0xc8] sm:$0xff] %vm142, %v103
  %169 = vst.msk [vmem:[%s3 + $0xd0] sm:$0xff] %vm142, %v104
  %170 = vst.msk [vmem:[%s3 + $0xd8] sm:$0xff] %vm142, %v105
  %171 = vst.msk [vmem:[%s3 + $0xe0] sm:$0xff] %vm142, %v106
  %172 = vst.msk [vmem:[%s3 + $0xe8] sm:$0xff] %vm142, %v107
  %173 = vst.msk [vmem:[%s3 + $0xf0] sm:$0xff] %vm142, %v108
  %174 = vst.msk [vmem:[%s3 + $0xf8] sm:$0xff] %vm142, %v109
  %175 = vst.msk [vmem:[%s3 + $0x100] sm:$0xff] %vm142, %v110
  %176 = vst.msk [vmem:[%s3 + $0x108] sm:$0xff] %vm142, %v111
  %177 = vst.msk [vmem:[%s3 + $0x110] sm:$0xff] %vm142, %v112
  %178 = vst.msk [vmem:[%s3 + $0x118] sm:$0xff] %vm142, %v113
  %179 = vst.msk [vmem:[%s3 + $0x120] sm:$0xff] %vm142, %v114
  %180 = vst.msk [vmem:[%s3 + $0x128] sm:$0xff] %vm142, %v115
  %181 = vst.msk [vmem:[%s3 + $0x130] sm:$0xff] %vm142, %v116
  %182 = vst.msk [vmem:[%s3 + $0x138] sm:$0xff] %vm142, %v117
  %183 = vst.msk [vmem:[%s3 + $0x140] sm:$0xff] %vm142, %v118
  %184 = vst.msk [vmem:[%s3 + $0x148] sm:$0xff] %vm142, %v119
  %185 = vst.msk [vmem:[%s3 + $0x150] sm:$0xff] %vm142, %v120
  %186 = vst.msk [vmem:[%s3 + $0x158] sm:$0xff] %vm142, %v121
  %187 = vst.msk [vmem:[%s3 + $0x160] sm:$0xff] %vm142, %v122
  %188 = vst.msk [vmem:[%s3 + $0x168] sm:$0xff] %vm142, %v123
  %189 = vst.msk [vmem:[%s3 + $0x170] sm:$0xff] %vm142, %v124
  %190 = vst.msk [vmem:[%s3 + $0x178] sm:$0xff] %vm142, %v125
  %191 = vst.msk [vmem:[%s3 + $0x180] sm:$0xff] %vm142, %v126
  %192 = vst.msk [vmem:[%s3 + $0x188] sm:$0xff] %vm142, %v127
  %193 = vst.msk [vmem:[%s3 + $0x190] sm:$0xff] %vm142, %v128
  %194 = vst.msk [vmem:[%s3 + $0x198] sm:$0xff] %vm142, %v129
  %195 = vst.msk [vmem:[%s3 + $0x1a0] sm:$0xff] %vm142, %v130
  %196 = vst.msk [vmem:[%s3 + $0x1a8] sm:$0xff] %vm142, %v131
  %197 = vst.msk [vmem:[%s3 + $0x1b0] sm:$0xff] %vm142, %v132
  %198 = vst.msk [vmem:[%s3 + $0x1b8] sm:$0xff] %vm142, %v133
  %199 = vst.msk [vmem:[%s3 + $0x1c0] sm:$0xff] %vm142, %v134
  %200 = vst.msk [vmem:[%s3 + $0x1c8] sm:$0xff] %vm142, %v135
  %201 = vst.msk [vmem:[%s3 + $0x1d0] sm:$0xff] %vm142, %v136
  %202 = vst.msk [vmem:[%s3 + $0x1d8] sm:$0xff] %vm142, %v137
  %203 = vst.msk [vmem:[%s3 + $0x1e0] sm:$0xff] %vm142, %v138
  %204 = vst.msk [vmem:[%s3 + $0x1e8] sm:$0xff] %vm142, %v139
  %205 = vst.msk [vmem:[%s3 + $0x1f0] sm:$0xff] %vm142, %v140
  %206 = vst.msk [vmem:[%s3 + $0x1f8] sm:$0xff] %vm142, %v141
  // Predicated region
  $region14: #{_lambda_.22} parent=0 // pred_check
    _
  $region15: #{_lambda_.22} parent=0 // pred_check_branch
    %208 = sbr.rel (0) target = $region17
  $region16: #{_lambda_.22} parent=0 // pred_region
    _
  $region17: #{_lambda_.22} parent=0 // pred_fallthru
    _
  // Predicated region
  $region18: #{_lambda_.22} parent=0 // pred_check
    _
  $region19: #{_lambda_.22} parent=0 // pred_check_branch
    %210 = sbr.rel (0) target = $region21
  $region20: #{_lambda_.22} parent=0 // pred_region
    _
  $region21: #{_lambda_.22} parent=0 // pred_fallthru
    _

</llo_original>
